<compile_context>
chip_gen: v5e
topology: v5e:2x2
jax: 0.10.0
libtpu: 0.0.40
codegen_flags: <defaults>
</compile_context>

<pallas_src>
import functools

import numpy as np

import jax
import jax.numpy as jnp
from jax.experimental import pallas as pl
from jax.experimental.pallas import tpu as pltpu


# ----------------------------------------------------------------------------
# Host-side weight packing (one-time, tiny): banded conv matrices, folded
# flatten for fc1, pre-transposed fc weights, broadcast bias rows.
# ----------------------------------------------------------------------------
def _conv_band(w, w_in, w_out):
    """w: (O, C, KH, KW) -> band (KH, C*w_in, O*w_out) with
    band[ki, c*w_in + jo + kj, o*w_out + jo] = w[o, c, ki, kj]."""
    o_dim, c_dim, kh, kw = w.shape
    kis, rows, cols, src = [], [], [], []
    for o in range(o_dim):
        for c in range(c_dim):
            for ki in range(kh):
                for kj in range(kw):
                    for jo in range(w_out):
                        kis.append(ki)
                        rows.append(c * w_in + jo + kj)
                        cols.append(o * w_out + jo)
                        src.append((o, c, ki, kj))
    src = np.asarray(src)
    vals = w[src[:, 0], src[:, 1], src[:, 2], src[:, 3]]
    band = jnp.zeros((kh, c_dim * w_in, o_dim * w_out), w.dtype)
    return band.at[np.asarray(kis), np.asarray(rows), np.asarray(cols)].set(vals)


def _pack_params(params):
    f32, bf16 = jnp.float32, jnp.bfloat16
    w1b = _conv_band(params["conv1_w"], 32, 28).astype(bf16)         # (5, 32, 168)
    b1r = jnp.repeat(params["conv1_b"], 28)[None, :].astype(f32)     # (1, 168)
    w2b = _conv_band(params["conv2_w"], 14, 10).astype(bf16)         # (5, 84, 160)
    b2r = jnp.repeat(params["conv2_b"], 10)[None, :].astype(f32)     # (1, 160)
    # fc1 with the PyTorch NCHW flatten (f = c*25 + h*5 + w) folded in:
    # wf1[h, c*5 + w, u] = fc1_w[u, c*25 + h*5 + w]
    wf1 = (params["fc1_w"].reshape(120, 16, 5, 5)
           .transpose(2, 1, 3, 0).reshape(5, 80, 120).astype(bf16))  # (5, 80, 120)
    bf1 = params["fc1_b"][None, :].astype(f32)                       # (1, 120)
    wf2 = params["fc2_w"].T.astype(bf16)                             # (120, 84)
    bf2 = params["fc2_b"][None, :].astype(f32)                       # (1, 84)
    wf3 = params["fc3_w"].T.astype(bf16)                             # (84, 15)
    bf3 = params["fc3_b"][None, :].astype(f32)                       # (1, 15)
    return w1b, b1r, w2b, b2r, wf1, bf1, wf2, bf2, wf3, bf3


# Exact 0/1 selection matrices (constants) used to implement 2x2 max-pool and
# the flatten as MXU matmuls (so nothing needs strided slices or relayouts).
def _pool_lane_selectors(c, w):
    wp = w // 2
    e = np.zeros((c * w, c * wp), np.float32)
    o = np.zeros_like(e)
    for ci in range(c):
        for j in range(wp):
            e[ci * w + 2 * j, ci * wp + j] = 1.0
            o[ci * w + 2 * j + 1, ci * wp + j] = 1.0
    return jnp.asarray(np.stack([e, o]))                  # (2, c*w, c*(w//2))


def _pool_row_selectors(tb, h):
    hp = h // 2
    e = np.zeros((tb * hp, tb * h), np.float32)
    o = np.zeros_like(e)
    for n in range(tb):
        for i in range(hp):
            e[n * hp + i, n * h + 2 * i] = 1.0
            o[n * hp + i, n * h + 2 * i + 1] = 1.0
    return jnp.asarray(np.stack([e, o]))                  # (2, tb*h/2, tb*h)


def _flatten_row_selectors(tb, h):
    s = np.zeros((h, tb, tb * h), np.float32)
    for ih in range(h):
        for n in range(tb):
            s[ih, n, n * h + ih] = 1.0
    return jnp.asarray(s)                                 # (h, tb, tb*h)


# ----------------------------------------------------------------------------
# Fused Pallas kernel: conv1+relu+pool1+conv2+relu+pool2+fc1+fc2+fc3
# ----------------------------------------------------------------------------
def _lenet_kernel(x_ref, w1b_ref, b1_ref, t1_ref, s1_ref,
                  w2b_ref, b2_ref, t2_ref, s2_ref, fsel_ref,
                  wf1_ref, bf1_ref, wf2_ref, bf2_ref, wf3_ref, bf3_ref,
                  o_ref, *, tb):
    f32 = jnp.float32
    bf16 = jnp.bfloat16
    x = x_ref[...]                                        # (tb, 32, 32) f32

    # ---- conv1 + bias + relu: 5 banded matmuls, out (tb*28, 168) lanes=(c,w)
    acc1 = None
    for ki in range(5):
        lhs = x[:, ki:ki + 28, :].reshape(tb * 28, 32).astype(bf16)
        d = jnp.dot(lhs, w1b_ref[ki], preferred_element_type=f32)
        acc1 = d if acc1 is None else acc1 + d
    h1 = jnp.maximum(acc1 + b1_ref[...], 0.0)             # (tb*28, 168)

    # ---- pool1: 2x2 max as exact selection matmuls (W pairs, then H pairs)
    q1 = jnp.maximum(jnp.dot(h1, t1_ref[0], preferred_element_type=f32),
                     jnp.dot(h1, t1_ref[1], preferred_element_type=f32))
    p1 = jnp.maximum(jnp.dot(s1_ref[0], q1, preferred_element_type=f32),
                     jnp.dot(s1_ref[1], q1, preferred_element_type=f32))
    p1 = p1.reshape(tb, 14, 84)                           # lanes = (c, w)

    # ---- conv2 + bias + relu: 5 banded matmuls, out (tb*10, 160)
    acc2 = None
    for ki in range(5):
        lhs = p1[:, ki:ki + 10, :].reshape(tb * 10, 84).astype(bf16)
        d = jnp.dot(lhs, w2b_ref[ki], preferred_element_type=f32)
        acc2 = d if acc2 is None else acc2 + d
    h2 = jnp.maximum(acc2 + b2_ref[...], 0.0)             # (tb*10, 160)

    # ---- pool2
    q2 = jnp.maximum(jnp.dot(h2, t2_ref[0], preferred_element_type=f32),
                     jnp.dot(h2, t2_ref[1], preferred_element_type=f32))
    p2 = jnp.maximum(jnp.dot(s2_ref[0], q2, preferred_element_type=f32),
                     jnp.dot(s2_ref[1], q2, preferred_element_type=f32))
    # p2: (tb*5, 80), rows = (n, h), lanes = (c, w)

    # ---- fc1 (flatten folded into wf1): out[n,u] = sum_h rowsel_h(p2) @ wf1[h]
    acc3 = None
    for ih in range(5):
        rows = jnp.dot(fsel_ref[ih], p2, preferred_element_type=f32)   # (tb, 80)
        d = jnp.dot(rows.astype(bf16), wf1_ref[ih], preferred_element_type=f32)
        acc3 = d if acc3 is None else acc3 + d
    a1 = jnp.maximum(acc3 + bf1_ref[...], 0.0)            # (tb, 120)

    # ---- fc2 + relu, fc3
    a2 = jnp.maximum(
        jnp.dot(a1.astype(bf16), wf2_ref[...], preferred_element_type=f32)
        + bf2_ref[...], 0.0)                              # (tb, 84)
    a3 = (jnp.dot(a2.astype(bf16), wf3_ref[...], preferred_element_type=f32)
          + bf3_ref[...])                                 # (tb, 15)
    o_ref[...] = a3


# ----------------------------------------------------------------------------
# Wrapper: one pallas_call, grid over batch tiles (parallel axis for v7x).
# ----------------------------------------------------------------------------
@functools.partial(jax.jit, static_argnames=("batch_tile",))
def net_forward(params, x, batch_tile=8):
    n = x.shape[0]
    tb = n if n < batch_tile else batch_tile
    if n > tb:
        assert tb % 8 == 0, "batch_tile must be a multiple of 8 when tiling"
    npad = pl.cdiv(n, tb) * tb

    x3 = x.reshape(n, 32, 32).astype(jnp.float32)
    if npad != n:
        x3 = jnp.pad(x3, ((0, npad - n), (0, 0), (0, 0)))

    (w1b, b1r, w2b, b2r, wf1, bf1, wf2, bf2, wf3, bf3) = _pack_params(params)
    t1 = _pool_lane_selectors(6, 28)        # (2, 168, 84)
    s1 = _pool_row_selectors(tb, 28)        # (2, tb*14, tb*28)
    t2 = _pool_lane_selectors(16, 10)       # (2, 160, 80)
    s2 = _pool_row_selectors(tb, 10)        # (2, tb*5, tb*10)
    fsel = _flatten_row_selectors(tb, 5)    # (5, tb, tb*5)

    out = pl.pallas_call(
        functools.partial(_lenet_kernel, tb=tb),
        out_shape=jax.ShapeDtypeStruct((npad, 15), jnp.float32),
        grid_spec=pltpu.PrefetchScalarGridSpec(
            num_scalar_prefetch=0,
            grid=(npad // tb,),
            in_specs=[
                pl.BlockSpec((tb, 32, 32), lambda i: (i, 0, 0)),        # x
                pl.BlockSpec((5, 32, 168), lambda i: (0, 0, 0)),        # conv1 band
                pl.BlockSpec((1, 168), lambda i: (0, 0)),               # conv1 bias
                pl.BlockSpec((2, 168, 84), lambda i: (0, 0, 0)),        # pool1 lane sel
                pl.BlockSpec((2, tb * 14, tb * 28), lambda i: (0, 0, 0)),  # pool1 row sel
                pl.BlockSpec((5, 84, 160), lambda i: (0, 0, 0)),        # conv2 band
                pl.BlockSpec((1, 160), lambda i: (0, 0)),               # conv2 bias
                pl.BlockSpec((2, 160, 80), lambda i: (0, 0, 0)),        # pool2 lane sel
                pl.BlockSpec((2, tb * 5, tb * 10), lambda i: (0, 0, 0)),   # pool2 row sel
                pl.BlockSpec((5, tb, tb * 5), lambda i: (0, 0, 0)),     # flatten row sel
                pl.BlockSpec((5, 80, 120), lambda i: (0, 0, 0)),        # fc1 packed
                pl.BlockSpec((1, 120), lambda i: (0, 0)),               # fc1 bias
                pl.BlockSpec((120, 84), lambda i: (0, 0)),              # fc2 w
                pl.BlockSpec((1, 84), lambda i: (0, 0)),                # fc2 bias
                pl.BlockSpec((84, 15), lambda i: (0, 0)),               # fc3 w
                pl.BlockSpec((1, 15), lambda i: (0, 0)),                # fc3 bias
            ],
            out_specs=pl.BlockSpec((tb, 15), lambda i: (i, 0)),
        ),
        compiler_params=pltpu.CompilerParams(
            dimension_semantics=("parallel",)),
    )(x3, w1b, b1r, t1, s1, w2b, b2r, t2, s2, fsel,
      wf1, bf1, wf2, bf2, wf3, bf3)
    return out[:n]


# ----------------------------------------------------------------------------
# Parameter init (deterministic, PyTorch-default-style uniform bounds)
# ----------------------------------------------------------------------------
def _uniform(key, shape, bound):
    return jax.random.uniform(key, shape, jnp.float32, -bound, bound)


def init_params(key):
    ks = jax.random.split(key, 10)
    params = {}
    b = 1.0 / (1 * 5 * 5) ** 0.5
    params["conv1_w"] = _uniform(ks[0], (6, 1, 5, 5), b)
    params["conv1_b"] = _uniform(ks[1], (6,), b)
    b = 1.0 / (6 * 5 * 5) ** 0.5
    params["conv2_w"] = _uniform(ks[2], (16, 6, 5, 5), b)
    params["conv2_b"] = _uniform(ks[3], (16,), b)
    b = 1.0 / 400 ** 0.5
    params["fc1_w"] = _uniform(ks[4], (120, 400), b)
    params["fc1_b"] = _uniform(ks[5], (120,), b)
    b = 1.0 / 120 ** 0.5
    params["fc2_w"] = _uniform(ks[6], (84, 120), b)
    params["fc2_b"] = _uniform(ks[7], (84,), b)
    b = 1.0 / 84 ** 0.5
    params["fc3_w"] = _uniform(ks[8], (15, 84), b)
    params["fc3_b"] = _uniform(ks[9], (15,), b)
    return params


# ----------------------------------------------------------------------------
# Pure-JAX f32 reference (for correctness check)
# ----------------------------------------------------------------------------
def net_forward_ref(params, x):
    def conv(x, w, b):
        y = jax.lax.conv_general_dilated(
            x, w, window_strides=(1, 1), padding="VALID",
            dimension_numbers=("NCHW", "OIHW", "NCHW"))
        return jax.nn.relu(y + b[None, :, None, None])

    def pool(x):
        return jax.lax.reduce_window(
            x, -jnp.inf, jax.lax.max, (1, 1, 2, 2), (1, 1, 2, 2), "VALID")

    x = pool(conv(x, params["conv1_w"], params["conv1_b"]))
    x = pool(conv(x, params["conv2_w"], params["conv2_b"]))
    x = x.reshape(x.shape[0], -1)
    x = jax.nn.relu(x @ params["fc1_w"].T + params["fc1_b"])
    x = jax.nn.relu(x @ params["fc2_w"].T + params["fc2_b"])
    return x @ params["fc3_w"].T + params["fc3_b"]


if __name__ == "__main__":
    key = jax.random.PRNGKey(0)
    pkey, xkey = jax.random.split(key)
    params = init_params(pkey)
    # Input must be (N, 1, 32, 32) so the flatten yields 16*5*5 = 400 features.
    x = jax.random.normal(xkey, (2, 1, 32, 32), jnp.float32)

    out = jax.block_until_ready(net_forward(params, x))
    ref = jax.block_until_ready(net_forward_ref(params, x))

    assert out.shape == (2, 15), out.shape
    max_err = float(jnp.max(jnp.abs(out - ref)))
    # bf16 MXU inputs with f32 accumulation -> compare with a bf16-appropriate
    # tolerance against the f32 reference.
    assert jnp.allclose(out, ref, rtol=5e-2, atol=5e-2), max_err
    print("KERNEL_OK")
</pallas_src>

<mosaic_0001>
module attributes {stable_mosaic.version = 11 : i64} {
  func.func @_lenet_kernel(%arg0: i32, %arg1: memref<2x32x32xf32, #tpu.memory_space<vmem>>, %arg2: memref<5x32x168xbf16, #tpu.memory_space<vmem>>, %arg3: memref<1x168xf32, #tpu.memory_space<vmem>>, %arg4: memref<2x168x84xf32, #tpu.memory_space<vmem>>, %arg5: memref<2x28x56xf32, #tpu.memory_space<vmem>>, %arg6: memref<5x84x160xbf16, #tpu.memory_space<vmem>>, %arg7: memref<1x160xf32, #tpu.memory_space<vmem>>, %arg8: memref<2x160x80xf32, #tpu.memory_space<vmem>>, %arg9: memref<2x10x20xf32, #tpu.memory_space<vmem>>, %arg10: memref<5x2x10xf32, #tpu.memory_space<vmem>>, %arg11: memref<5x80x120xbf16, #tpu.memory_space<vmem>>, %arg12: memref<1x120xf32, #tpu.memory_space<vmem>>, %arg13: memref<120x84xbf16, #tpu.memory_space<vmem>>, %arg14: memref<1x84xf32, #tpu.memory_space<vmem>>, %arg15: memref<84x15xbf16, #tpu.memory_space<vmem>>, %arg16: memref<1x15xf32, #tpu.memory_space<vmem>>, %arg17: memref<2x15xf32, #tpu.memory_space<vmem>>) attributes {dimension_semantics = [#tpu.dimension_semantics<parallel>], iteration_bounds = array<i64: 1>, scalar_prefetch = 0 : i64, scratch_operands = 0 : i64, tpu.core_type = #tpu.core_type<tc>, window_params = [{transform_indices = @transform_0, window_bounds = array<i64: 2, 32, 32>}, {pipeline_mode = #tpu.pipeline_mode<synchronous>, transform_indices = @transform_1, window_bounds = array<i64: 5, 32, 168>}, {pipeline_mode = #tpu.pipeline_mode<synchronous>, transform_indices = @transform_2, window_bounds = array<i64: 1, 168>}, {pipeline_mode = #tpu.pipeline_mode<synchronous>, transform_indices = @transform_3, window_bounds = array<i64: 2, 168, 84>}, {pipeline_mode = #tpu.pipeline_mode<synchronous>, transform_indices = @transform_4, window_bounds = array<i64: 2, 28, 56>}, {pipeline_mode = #tpu.pipeline_mode<synchronous>, transform_indices = @transform_5, window_bounds = array<i64: 5, 84, 160>}, {pipeline_mode = #tpu.pipeline_mode<synchronous>, transform_indices = @transform_6, window_bounds = array<i64: 1, 160>}, {pipeline_mode = #tpu.pipeline_mode<synchronous>, transform_indices = @transform_7, window_bounds = array<i64: 2, 160, 80>}, {pipeline_mode = #tpu.pipeline_mode<synchronous>, transform_indices = @transform_8, window_bounds = array<i64: 2, 10, 20>}, {pipeline_mode = #tpu.pipeline_mode<synchronous>, transform_indices = @transform_9, window_bounds = array<i64: 5, 2, 10>}, {pipeline_mode = #tpu.pipeline_mode<synchronous>, transform_indices = @transform_10, window_bounds = array<i64: 5, 80, 120>}, {pipeline_mode = #tpu.pipeline_mode<synchronous>, transform_indices = @transform_11, window_bounds = array<i64: 1, 120>}, {pipeline_mode = #tpu.pipeline_mode<synchronous>, transform_indices = @transform_12, window_bounds = array<i64: 120, 84>}, {pipeline_mode = #tpu.pipeline_mode<synchronous>, transform_indices = @transform_13, window_bounds = array<i64: 1, 84>}, {pipeline_mode = #tpu.pipeline_mode<synchronous>, transform_indices = @transform_14, window_bounds = array<i64: 84, 15>}, {pipeline_mode = #tpu.pipeline_mode<synchronous>, transform_indices = @transform_15, window_bounds = array<i64: 1, 15>}, {transform_indices = @transform_16, window_bounds = array<i64: 2, 15>}]} {
    %c0 = arith.constant 0 : index
    %c0_0 = arith.constant 0 : index
    %c0_1 = arith.constant 0 : index
    %0 = vector.load %arg1[%c0, %c0_0, %c0_1] : memref<2x32x32xf32, #tpu.memory_space<vmem>>, vector<2x32x32xf32>
    %1 = vector.extract_strided_slice %0 {offsets = [0, 0, 0], sizes = [2, 28, 32], strides = [1, 1, 1]} : vector<2x32x32xf32> to vector<2x28x32xf32>
    %2 = vector.shape_cast %1 : vector<2x28x32xf32> to vector<56x32xf32>
    %3 = arith.truncf %2 : vector<56x32xf32> to vector<56x32xbf16>
    %c0_2 = arith.constant 0 : index
    %c0_3 = arith.constant 0 : index
    %c0_4 = arith.constant 0 : index
    %4 = vector.load %arg2[%c0_2, %c0_3, %c0_4] : memref<5x32x168xbf16, #tpu.memory_space<vmem>>, vector<1x32x168xbf16>
    %5 = vector.shape_cast %4 : vector<1x32x168xbf16> to vector<32x168xbf16>
    %cst = arith.constant dense<0.000000e+00> : vector<56x168xf32>
    %6 = tpu.matmul %3, %5, %cst {dimension_numbers = #tpu.dot_dimension_numbers<[1], [0], [0], [1], [0, 0, 1, 1], [], []>} : vector<56x32xbf16>, vector<32x168xbf16>, vector<56x168xf32> -> vector<56x168xf32>
    %7 = vector.extract_strided_slice %0 {offsets = [0, 1, 0], sizes = [2, 28, 32], strides = [1, 1, 1]} : vector<2x32x32xf32> to vector<2x28x32xf32>
    %8 = vector.shape_cast %7 : vector<2x28x32xf32> to vector<56x32xf32>
    %9 = arith.truncf %8 : vector<56x32xf32> to vector<56x32xbf16>
    %c1 = arith.constant 1 : index
    %c0_5 = arith.constant 0 : index
    %c0_6 = arith.constant 0 : index
    %10 = vector.load %arg2[%c1, %c0_5, %c0_6] : memref<5x32x168xbf16, #tpu.memory_space<vmem>>, vector<1x32x168xbf16>
    %11 = vector.shape_cast %10 : vector<1x32x168xbf16> to vector<32x168xbf16>
    %cst_7 = arith.constant dense<0.000000e+00> : vector<56x168xf32>
    %12 = tpu.matmul %9, %11, %cst_7 {dimension_numbers = #tpu.dot_dimension_numbers<[1], [0], [0], [1], [0, 0, 1, 1], [], []>} : vector<56x32xbf16>, vector<32x168xbf16>, vector<56x168xf32> -> vector<56x168xf32>
    %13 = arith.addf %6, %12 : vector<56x168xf32>
    %14 = vector.extract_strided_slice %0 {offsets = [0, 2, 0], sizes = [2, 28, 32], strides = [1, 1, 1]} : vector<2x32x32xf32> to vector<2x28x32xf32>
    %15 = vector.shape_cast %14 : vector<2x28x32xf32> to vector<56x32xf32>
    %16 = arith.truncf %15 : vector<56x32xf32> to vector<56x32xbf16>
    %c2 = arith.constant 2 : index
    %c0_8 = arith.constant 0 : index
    %c0_9 = arith.constant 0 : index
    %17 = vector.load %arg2[%c2, %c0_8, %c0_9] : memref<5x32x168xbf16, #tpu.memory_space<vmem>>, vector<1x32x168xbf16>
    %18 = vector.shape_cast %17 : vector<1x32x168xbf16> to vector<32x168xbf16>
    %cst_10 = arith.constant dense<0.000000e+00> : vector<56x168xf32>
    %19 = tpu.matmul %16, %18, %cst_10 {dimension_numbers = #tpu.dot_dimension_numbers<[1], [0], [0], [1], [0, 0, 1, 1], [], []>} : vector<56x32xbf16>, vector<32x168xbf16>, vector<56x168xf32> -> vector<56x168xf32>
    %20 = arith.addf %13, %19 : vector<56x168xf32>
    %21 = vector.extract_strided_slice %0 {offsets = [0, 3, 0], sizes = [2, 28, 32], strides = [1, 1, 1]} : vector<2x32x32xf32> to vector<2x28x32xf32>
    %22 = vector.shape_cast %21 : vector<2x28x32xf32> to vector<56x32xf32>
    %23 = arith.truncf %22 : vector<56x32xf32> to vector<56x32xbf16>
    %c3 = arith.constant 3 : index
    %c0_11 = arith.constant 0 : index
    %c0_12 = arith.constant 0 : index
    %24 = vector.load %arg2[%c3, %c0_11, %c0_12] : memref<5x32x168xbf16, #tpu.memory_space<vmem>>, vector<1x32x168xbf16>
    %25 = vector.shape_cast %24 : vector<1x32x168xbf16> to vector<32x168xbf16>
    %cst_13 = arith.constant dense<0.000000e+00> : vector<56x168xf32>
    %26 = tpu.matmul %23, %25, %cst_13 {dimension_numbers = #tpu.dot_dimension_numbers<[1], [0], [0], [1], [0, 0, 1, 1], [], []>} : vector<56x32xbf16>, vector<32x168xbf16>, vector<56x168xf32> -> vector<56x168xf32>
    %27 = arith.addf %20, %26 : vector<56x168xf32>
    %28 = vector.extract_strided_slice %0 {offsets = [0, 4, 0], sizes = [2, 28, 32], strides = [1, 1, 1]} : vector<2x32x32xf32> to vector<2x28x32xf32>
    %29 = vector.shape_cast %28 : vector<2x28x32xf32> to vector<56x32xf32>
    %30 = arith.truncf %29 : vector<56x32xf32> to vector<56x32xbf16>
    %c4 = arith.constant 4 : index
    %c0_14 = arith.constant 0 : index
    %c0_15 = arith.constant 0 : index
    %31 = vector.load %arg2[%c4, %c0_14, %c0_15] : memref<5x32x168xbf16, #tpu.memory_space<vmem>>, vector<1x32x168xbf16>
    %32 = vector.shape_cast %31 : vector<1x32x168xbf16> to vector<32x168xbf16>
    %cst_16 = arith.constant dense<0.000000e+00> : vector<56x168xf32>
    %33 = tpu.matmul %30, %32, %cst_16 {dimension_numbers = #tpu.dot_dimension_numbers<[1], [0], [0], [1], [0, 0, 1, 1], [], []>} : vector<56x32xbf16>, vector<32x168xbf16>, vector<56x168xf32> -> vector<56x168xf32>
    %34 = arith.addf %27, %33 : vector<56x168xf32>
    %c0_17 = arith.constant 0 : index
    %c0_18 = arith.constant 0 : index
    %35 = vector.load %arg3[%c0_17, %c0_18] : memref<1x168xf32, #tpu.memory_space<vmem>>, vector<1x168xf32>
    %36 = vector.broadcast %35 : vector<1x168xf32> to vector<56x168xf32>
    %37 = arith.addf %34, %36 : vector<56x168xf32>
    %cst_19 = arith.constant 0.000000e+00 : f32
    %38 = vector.broadcast %cst_19 : f32 to vector<56x168xf32>
    %39 = arith.maximumf %37, %38 : vector<56x168xf32>
    %c0_20 = arith.constant 0 : index
    %c0_21 = arith.constant 0 : index
    %c0_22 = arith.constant 0 : index
    %40 = vector.load %arg4[%c0_20, %c0_21, %c0_22] : memref<2x168x84xf32, #tpu.memory_space<vmem>>, vector<1x168x84xf32>
    %41 = vector.shape_cast %40 : vector<1x168x84xf32> to vector<168x84xf32>
    %cst_23 = arith.constant dense<0.000000e+00> : vector<56x84xf32>
    %42 = tpu.matmul %39, %41, %cst_23 {dimension_numbers = #tpu.dot_dimension_numbers<[1], [0], [0], [1], [0, 0, 1, 1], [], []>} : vector<56x168xf32>, vector<168x84xf32>, vector<56x84xf32> -> vector<56x84xf32>
    %c1_24 = arith.constant 1 : index
    %c0_25 = arith.constant 0 : index
    %c0_26 = arith.constant 0 : index
    %43 = vector.load %arg4[%c1_24, %c0_25, %c0_26] : memref<2x168x84xf32, #tpu.memory_space<vmem>>, vector<1x168x84xf32>
    %44 = vector.shape_cast %43 : vector<1x168x84xf32> to vector<168x84xf32>
    %cst_27 = arith.constant dense<0.000000e+00> : vector<56x84xf32>
    %45 = tpu.matmul %39, %44, %cst_27 {dimension_numbers = #tpu.dot_dimension_numbers<[1], [0], [0], [1], [0, 0, 1, 1], [], []>} : vector<56x168xf32>, vector<168x84xf32>, vector<56x84xf32> -> vector<56x84xf32>
    %46 = arith.maximumf %42, %45 : vector<56x84xf32>
    %c0_28 = arith.constant 0 : index
    %c0_29 = arith.constant 0 : index
    %c0_30 = arith.constant 0 : index
    %47 = vector.load %arg5[%c0_28, %c0_29, %c0_30] : memref<2x28x56xf32, #tpu.memory_space<vmem>>, vector<1x28x56xf32>
    %48 = vector.shape_cast %47 : vector<1x28x56xf32> to vector<28x56xf32>
    %cst_31 = arith.constant dense<0.000000e+00> : vector<28x84xf32>
    %49 = tpu.matmul %48, %46, %cst_31 {dimension_numbers = #tpu.dot_dimension_numbers<[1], [0], [0], [1], [0, 0, 1, 1], [], []>} : vector<28x56xf32>, vector<56x84xf32>, vector<28x84xf32> -> vector<28x84xf32>
    %c1_32 = arith.constant 1 : index
    %c0_33 = arith.constant 0 : index
    %c0_34 = arith.constant 0 : index
    %50 = vector.load %arg5[%c1_32, %c0_33, %c0_34] : memref<2x28x56xf32, #tpu.memory_space<vmem>>, vector<1x28x56xf32>
    %51 = vector.shape_cast %50 : vector<1x28x56xf32> to vector<28x56xf32>
    %cst_35 = arith.constant dense<0.000000e+00> : vector<28x84xf32>
    %52 = tpu.matmul %51, %46, %cst_35 {dimension_numbers = #tpu.dot_dimension_numbers<[1], [0], [0], [1], [0, 0, 1, 1], [], []>} : vector<28x56xf32>, vector<56x84xf32>, vector<28x84xf32> -> vector<28x84xf32>
    %53 = arith.maximumf %49, %52 : vector<28x84xf32>
    %54 = vector.shape_cast %53 : vector<28x84xf32> to vector<2x14x84xf32>
    %55 = vector.extract_strided_slice %54 {offsets = [0, 0, 0], sizes = [2, 10, 84], strides = [1, 1, 1]} : vector<2x14x84xf32> to vector<2x10x84xf32>
    %56 = vector.shape_cast %55 : vector<2x10x84xf32> to vector<20x84xf32>
    %57 = arith.truncf %56 : vector<20x84xf32> to vector<20x84xbf16>
    %c0_36 = arith.constant 0 : index
    %c0_37 = arith.constant 0 : index
    %c0_38 = arith.constant 0 : index
    %58 = vector.load %arg6[%c0_36, %c0_37, %c0_38] : memref<5x84x160xbf16, #tpu.memory_space<vmem>>, vector<1x84x160xbf16>
    %59 = vector.shape_cast %58 : vector<1x84x160xbf16> to vector<84x160xbf16>
    %cst_39 = arith.constant dense<0.000000e+00> : vector<20x160xf32>
    %60 = tpu.matmul %57, %59, %cst_39 {dimension_numbers = #tpu.dot_dimension_numbers<[1], [0], [0], [1], [0, 0, 1, 1], [], []>} : vector<20x84xbf16>, vector<84x160xbf16>, vector<20x160xf32> -> vector<20x160xf32>
    %61 = vector.extract_strided_slice %54 {offsets = [0, 1, 0], sizes = [2, 10, 84], strides = [1, 1, 1]} : vector<2x14x84xf32> to vector<2x10x84xf32>
    %62 = vector.shape_cast %61 : vector<2x10x84xf32> to vector<20x84xf32>
    %63 = arith.truncf %62 : vector<20x84xf32> to vector<20x84xbf16>
    %c1_40 = arith.constant 1 : index
    %c0_41 = arith.constant 0 : index
    %c0_42 = arith.constant 0 : index
    %64 = vector.load %arg6[%c1_40, %c0_41, %c0_42] : memref<5x84x160xbf16, #tpu.memory_space<vmem>>, vector<1x84x160xbf16>
    %65 = vector.shape_cast %64 : vector<1x84x160xbf16> to vector<84x160xbf16>
    %cst_43 = arith.constant dense<0.000000e+00> : vector<20x160xf32>
    %66 = tpu.matmul %63, %65, %cst_43 {dimension_numbers = #tpu.dot_dimension_numbers<[1], [0], [0], [1], [0, 0, 1, 1], [], []>} : vector<20x84xbf16>, vector<84x160xbf16>, vector<20x160xf32> -> vector<20x160xf32>
    %67 = arith.addf %60, %66 : vector<20x160xf32>
    %68 = vector.extract_strided_slice %54 {offsets = [0, 2, 0], sizes = [2, 10, 84], strides = [1, 1, 1]} : vector<2x14x84xf32> to vector<2x10x84xf32>
    %69 = vector.shape_cast %68 : vector<2x10x84xf32> to vector<20x84xf32>
    %70 = arith.truncf %69 : vector<20x84xf32> to vector<20x84xbf16>
    %c2_44 = arith.constant 2 : index
    %c0_45 = arith.constant 0 : index
    %c0_46 = arith.constant 0 : index
    %71 = vector.load %arg6[%c2_44, %c0_45, %c0_46] : memref<5x84x160xbf16, #tpu.memory_space<vmem>>, vector<1x84x160xbf16>
    %72 = vector.shape_cast %71 : vector<1x84x160xbf16> to vector<84x160xbf16>
    %cst_47 = arith.constant dense<0.000000e+00> : vector<20x160xf32>
    %73 = tpu.matmul %70, %72, %cst_47 {dimension_numbers = #tpu.dot_dimension_numbers<[1], [0], [0], [1], [0, 0, 1, 1], [], []>} : vector<20x84xbf16>, vector<84x160xbf16>, vector<20x160xf32> -> vector<20x160xf32>
    %74 = arith.addf %67, %73 : vector<20x160xf32>
    %75 = vector.extract_strided_slice %54 {offsets = [0, 3, 0], sizes = [2, 10, 84], strides = [1, 1, 1]} : vector<2x14x84xf32> to vector<2x10x84xf32>
    %76 = vector.shape_cast %75 : vector<2x10x84xf32> to vector<20x84xf32>
    %77 = arith.truncf %76 : vector<20x84xf32> to vector<20x84xbf16>
    %c3_48 = arith.constant 3 : index
    %c0_49 = arith.constant 0 : index
    %c0_50 = arith.constant 0 : index
    %78 = vector.load %arg6[%c3_48, %c0_49, %c0_50] : memref<5x84x160xbf16, #tpu.memory_space<vmem>>, vector<1x84x160xbf16>
    %79 = vector.shape_cast %78 : vector<1x84x160xbf16> to vector<84x160xbf16>
    %cst_51 = arith.constant dense<0.000000e+00> : vector<20x160xf32>
    %80 = tpu.matmul %77, %79, %cst_51 {dimension_numbers = #tpu.dot_dimension_numbers<[1], [0], [0], [1], [0, 0, 1, 1], [], []>} : vector<20x84xbf16>, vector<84x160xbf16>, vector<20x160xf32> -> vector<20x160xf32>
    %81 = arith.addf %74, %80 : vector<20x160xf32>
    %82 = vector.extract_strided_slice %54 {offsets = [0, 4, 0], sizes = [2, 10, 84], strides = [1, 1, 1]} : vector<2x14x84xf32> to vector<2x10x84xf32>
    %83 = vector.shape_cast %82 : vector<2x10x84xf32> to vector<20x84xf32>
    %84 = arith.truncf %83 : vector<20x84xf32> to vector<20x84xbf16>
    %c4_52 = arith.constant 4 : index
    %c0_53 = arith.constant 0 : index
    %c0_54 = arith.constant 0 : index
    %85 = vector.load %arg6[%c4_52, %c0_53, %c0_54] : memref<5x84x160xbf16, #tpu.memory_space<vmem>>, vector<1x84x160xbf16>
    %86 = vector.shape_cast %85 : vector<1x84x160xbf16> to vector<84x160xbf16>
    %cst_55 = arith.constant dense<0.000000e+00> : vector<20x160xf32>
    %87 = tpu.matmul %84, %86, %cst_55 {dimension_numbers = #tpu.dot_dimension_numbers<[1], [0], [0], [1], [0, 0, 1, 1], [], []>} : vector<20x84xbf16>, vector<84x160xbf16>, vector<20x160xf32> -> vector<20x160xf32>
    %88 = arith.addf %81, %87 : vector<20x160xf32>
    %c0_56 = arith.constant 0 : index
    %c0_57 = arith.constant 0 : index
    %89 = vector.load %arg7[%c0_56, %c0_57] : memref<1x160xf32, #tpu.memory_space<vmem>>, vector<1x160xf32>
    %90 = vector.broadcast %89 : vector<1x160xf32> to vector<20x160xf32>
    %91 = arith.addf %88, %90 : vector<20x160xf32>
    %cst_58 = arith.constant 0.000000e+00 : f32
    %92 = vector.broadcast %cst_58 : f32 to vector<20x160xf32>
    %93 = arith.maximumf %91, %92 : vector<20x160xf32>
    %c0_59 = arith.constant 0 : index
    %c0_60 = arith.constant 0 : index
    %c0_61 = arith.constant 0 : index
    %94 = vector.load %arg8[%c0_59, %c0_60, %c0_61] : memref<2x160x80xf32, #tpu.memory_space<vmem>>, vector<1x160x80xf32>
    %95 = vector.shape_cast %94 : vector<1x160x80xf32> to vector<160x80xf32>
    %cst_62 = arith.constant dense<0.000000e+00> : vector<20x80xf32>
    %96 = tpu.matmul %93, %95, %cst_62 {dimension_numbers = #tpu.dot_dimension_numbers<[1], [0], [0], [1], [0, 0, 1, 1], [], []>} : vector<20x160xf32>, vector<160x80xf32>, vector<20x80xf32> -> vector<20x80xf32>
    %c1_63 = arith.constant 1 : index
    %c0_64 = arith.constant 0 : index
    %c0_65 = arith.constant 0 : index
    %97 = vector.load %arg8[%c1_63, %c0_64, %c0_65] : memref<2x160x80xf32, #tpu.memory_space<vmem>>, vector<1x160x80xf32>
    %98 = vector.shape_cast %97 : vector<1x160x80xf32> to vector<160x80xf32>
    %cst_66 = arith.constant dense<0.000000e+00> : vector<20x80xf32>
    %99 = tpu.matmul %93, %98, %cst_66 {dimension_numbers = #tpu.dot_dimension_numbers<[1], [0], [0], [1], [0, 0, 1, 1], [], []>} : vector<20x160xf32>, vector<160x80xf32>, vector<20x80xf32> -> vector<20x80xf32>
    %100 = arith.maximumf %96, %99 : vector<20x80xf32>
    %c0_67 = arith.constant 0 : index
    %c0_68 = arith.constant 0 : index
    %c0_69 = arith.constant 0 : index
    %101 = vector.load %arg9[%c0_67, %c0_68, %c0_69] : memref<2x10x20xf32, #tpu.memory_space<vmem>>, vector<1x10x20xf32>
    %102 = vector.shape_cast %101 : vector<1x10x20xf32> to vector<10x20xf32>
    %cst_70 = arith.constant dense<0.000000e+00> : vector<10x80xf32>
    %103 = tpu.matmul %102, %100, %cst_70 {dimension_numbers = #tpu.dot_dimension_numbers<[1], [0], [0], [1], [0, 0, 1, 1], [], []>} : vector<10x20xf32>, vector<20x80xf32>, vector<10x80xf32> -> vector<10x80xf32>
    %c1_71 = arith.constant 1 : index
    %c0_72 = arith.constant 0 : index
    %c0_73 = arith.constant 0 : index
    %104 = vector.load %arg9[%c1_71, %c0_72, %c0_73] : memref<2x10x20xf32, #tpu.memory_space<vmem>>, vector<1x10x20xf32>
    %105 = vector.shape_cast %104 : vector<1x10x20xf32> to vector<10x20xf32>
    %cst_74 = arith.constant dense<0.000000e+00> : vector<10x80xf32>
    %106 = tpu.matmul %105, %100, %cst_74 {dimension_numbers = #tpu.dot_dimension_numbers<[1], [0], [0], [1], [0, 0, 1, 1], [], []>} : vector<10x20xf32>, vector<20x80xf32>, vector<10x80xf32> -> vector<10x80xf32>
    %107 = arith.maximumf %103, %106 : vector<10x80xf32>
    %c0_75 = arith.constant 0 : index
    %c0_76 = arith.constant 0 : index
    %c0_77 = arith.constant 0 : index
    %108 = vector.load %arg10[%c0_75, %c0_76, %c0_77] : memref<5x2x10xf32, #tpu.memory_space<vmem>>, vector<1x2x10xf32>
    %109 = vector.shape_cast %108 : vector<1x2x10xf32> to vector<2x10xf32>
    %cst_78 = arith.constant dense<0.000000e+00> : vector<2x80xf32>
    %110 = tpu.matmul %109, %107, %cst_78 {dimension_numbers = #tpu.dot_dimension_numbers<[1], [0], [0], [1], [0, 0, 1, 1], [], []>} : vector<2x10xf32>, vector<10x80xf32>, vector<2x80xf32> -> vector<2x80xf32>
    %111 = arith.truncf %110 : vector<2x80xf32> to vector<2x80xbf16>
    %c0_79 = arith.constant 0 : index
    %c0_80 = arith.constant 0 : index
    %c0_81 = arith.constant 0 : index
    %112 = vector.load %arg11[%c0_79, %c0_80, %c0_81] : memref<5x80x120xbf16, #tpu.memory_space<vmem>>, vector<1x80x120xbf16>
    %113 = vector.shape_cast %112 : vector<1x80x120xbf16> to vector<80x120xbf16>
    %cst_82 = arith.constant dense<0.000000e+00> : vector<2x120xf32>
    %114 = tpu.matmul %111, %113, %cst_82 {dimension_numbers = #tpu.dot_dimension_numbers<[1], [0], [0], [1], [0, 0, 1, 1], [], []>} : vector<2x80xbf16>, vector<80x120xbf16>, vector<2x120xf32> -> vector<2x120xf32>
    %c1_83 = arith.constant 1 : index
    %c0_84 = arith.constant 0 : index
    %c0_85 = arith.constant 0 : index
    %115 = vector.load %arg10[%c1_83, %c0_84, %c0_85] : memref<5x2x10xf32, #tpu.memory_space<vmem>>, vector<1x2x10xf32>
    %116 = vector.shape_cast %115 : vector<1x2x10xf32> to vector<2x10xf32>
    %cst_86 = arith.constant dense<0.000000e+00> : vector<2x80xf32>
    %117 = tpu.matmul %116, %107, %cst_86 {dimension_numbers = #tpu.dot_dimension_numbers<[1], [0], [0], [1], [0, 0, 1, 1], [], []>} : vector<2x10xf32>, vector<10x80xf32>, vector<2x80xf32> -> vector<2x80xf32>
    %118 = arith.truncf %117 : vector<2x80xf32> to vector<2x80xbf16>
    %c1_87 = arith.constant 1 : index
    %c0_88 = arith.constant 0 : index
    %c0_89 = arith.constant 0 : index
    %119 = vector.load %arg11[%c1_87, %c0_88, %c0_89] : memref<5x80x120xbf16, #tpu.memory_space<vmem>>, vector<1x80x120xbf16>
    %120 = vector.shape_cast %119 : vector<1x80x120xbf16> to vector<80x120xbf16>
    %cst_90 = arith.constant dense<0.000000e+00> : vector<2x120xf32>
    %121 = tpu.matmul %118, %120, %cst_90 {dimension_numbers = #tpu.dot_dimension_numbers<[1], [0], [0], [1], [0, 0, 1, 1], [], []>} : vector<2x80xbf16>, vector<80x120xbf16>, vector<2x120xf32> -> vector<2x120xf32>
    %122 = arith.addf %114, %121 : vector<2x120xf32>
    %c2_91 = arith.constant 2 : index
    %c0_92 = arith.constant 0 : index
    %c0_93 = arith.constant 0 : index
    %123 = vector.load %arg10[%c2_91, %c0_92, %c0_93] : memref<5x2x10xf32, #tpu.memory_space<vmem>>, vector<1x2x10xf32>
    %124 = vector.shape_cast %123 : vector<1x2x10xf32> to vector<2x10xf32>
    %cst_94 = arith.constant dense<0.000000e+00> : vector<2x80xf32>
    %125 = tpu.matmul %124, %107, %cst_94 {dimension_numbers = #tpu.dot_dimension_numbers<[1], [0], [0], [1], [0, 0, 1, 1], [], []>} : vector<2x10xf32>, vector<10x80xf32>, vector<2x80xf32> -> vector<2x80xf32>
    %126 = arith.truncf %125 : vector<2x80xf32> to vector<2x80xbf16>
    %c2_95 = arith.constant 2 : index
    %c0_96 = arith.constant 0 : index
    %c0_97 = arith.constant 0 : index
    %127 = vector.load %arg11[%c2_95, %c0_96, %c0_97] : memref<5x80x120xbf16, #tpu.memory_space<vmem>>, vector<1x80x120xbf16>
    %128 = vector.shape_cast %127 : vector<1x80x120xbf16> to vector<80x120xbf16>
    %cst_98 = arith.constant dense<0.000000e+00> : vector<2x120xf32>
    %129 = tpu.matmul %126, %128, %cst_98 {dimension_numbers = #tpu.dot_dimension_numbers<[1], [0], [0], [1], [0, 0, 1, 1], [], []>} : vector<2x80xbf16>, vector<80x120xbf16>, vector<2x120xf32> -> vector<2x120xf32>
    %130 = arith.addf %122, %129 : vector<2x120xf32>
    %c3_99 = arith.constant 3 : index
    %c0_100 = arith.constant 0 : index
    %c0_101 = arith.constant 0 : index
    %131 = vector.load %arg10[%c3_99, %c0_100, %c0_101] : memref<5x2x10xf32, #tpu.memory_space<vmem>>, vector<1x2x10xf32>
    %132 = vector.shape_cast %131 : vector<1x2x10xf32> to vector<2x10xf32>
    %cst_102 = arith.constant dense<0.000000e+00> : vector<2x80xf32>
    %133 = tpu.matmul %132, %107, %cst_102 {dimension_numbers = #tpu.dot_dimension_numbers<[1], [0], [0], [1], [0, 0, 1, 1], [], []>} : vector<2x10xf32>, vector<10x80xf32>, vector<2x80xf32> -> vector<2x80xf32>
    %134 = arith.truncf %133 : vector<2x80xf32> to vector<2x80xbf16>
    %c3_103 = arith.constant 3 : index
    %c0_104 = arith.constant 0 : index
    %c0_105 = arith.constant 0 : index
    %135 = vector.load %arg11[%c3_103, %c0_104, %c0_105] : memref<5x80x120xbf16, #tpu.memory_space<vmem>>, vector<1x80x120xbf16>
    %136 = vector.shape_cast %135 : vector<1x80x120xbf16> to vector<80x120xbf16>
    %cst_106 = arith.constant dense<0.000000e+00> : vector<2x120xf32>
    %137 = tpu.matmul %134, %136, %cst_106 {dimension_numbers = #tpu.dot_dimension_numbers<[1], [0], [0], [1], [0, 0, 1, 1], [], []>} : vector<2x80xbf16>, vector<80x120xbf16>, vector<2x120xf32> -> vector<2x120xf32>
    %138 = arith.addf %130, %137 : vector<2x120xf32>
    %c4_107 = arith.constant 4 : index
    %c0_108 = arith.constant 0 : index
    %c0_109 = arith.constant 0 : index
    %139 = vector.load %arg10[%c4_107, %c0_108, %c0_109] : memref<5x2x10xf32, #tpu.memory_space<vmem>>, vector<1x2x10xf32>
    %140 = vector.shape_cast %139 : vector<1x2x10xf32> to vector<2x10xf32>
    %cst_110 = arith.constant dense<0.000000e+00> : vector<2x80xf32>
    %141 = tpu.matmul %140, %107, %cst_110 {dimension_numbers = #tpu.dot_dimension_numbers<[1], [0], [0], [1], [0, 0, 1, 1], [], []>} : vector<2x10xf32>, vector<10x80xf32>, vector<2x80xf32> -> vector<2x80xf32>
    %142 = arith.truncf %141 : vector<2x80xf32> to vector<2x80xbf16>
    %c4_111 = arith.constant 4 : index
    %c0_112 = arith.constant 0 : index
    %c0_113 = arith.constant 0 : index
    %143 = vector.load %arg11[%c4_111, %c0_112, %c0_113] : memref<5x80x120xbf16, #tpu.memory_space<vmem>>, vector<1x80x120xbf16>
    %144 = vector.shape_cast %143 : vector<1x80x120xbf16> to vector<80x120xbf16>
    %cst_114 = arith.constant dense<0.000000e+00> : vector<2x120xf32>
    %145 = tpu.matmul %142, %144, %cst_114 {dimension_numbers = #tpu.dot_dimension_numbers<[1], [0], [0], [1], [0, 0, 1, 1], [], []>} : vector<2x80xbf16>, vector<80x120xbf16>, vector<2x120xf32> -> vector<2x120xf32>
    %146 = arith.addf %138, %145 : vector<2x120xf32>
    %c0_115 = arith.constant 0 : index
    %c0_116 = arith.constant 0 : index
    %147 = vector.load %arg12[%c0_115, %c0_116] : memref<1x120xf32, #tpu.memory_space<vmem>>, vector<1x120xf32>
    %148 = vector.broadcast %147 : vector<1x120xf32> to vector<2x120xf32>
    %149 = arith.addf %146, %148 : vector<2x120xf32>
    %cst_117 = arith.constant 0.000000e+00 : f32
    %150 = vector.broadcast %cst_117 : f32 to vector<2x120xf32>
    %151 = arith.maximumf %149, %150 : vector<2x120xf32>
    %152 = arith.truncf %151 : vector<2x120xf32> to vector<2x120xbf16>
    %c0_118 = arith.constant 0 : index
    %c0_119 = arith.constant 0 : index
    %153 = vector.load %arg13[%c0_118, %c0_119] : memref<120x84xbf16, #tpu.memory_space<vmem>>, vector<120x84xbf16>
    %cst_120 = arith.constant dense<0.000000e+00> : vector<2x84xf32>
    %154 = tpu.matmul %152, %153, %cst_120 {dimension_numbers = #tpu.dot_dimension_numbers<[1], [0], [0], [1], [0, 0, 1, 1], [], []>} : vector<2x120xbf16>, vector<120x84xbf16>, vector<2x84xf32> -> vector<2x84xf32>
    %c0_121 = arith.constant 0 : index
    %c0_122 = arith.constant 0 : index
    %155 = vector.load %arg14[%c0_121, %c0_122] : memref<1x84xf32, #tpu.memory_space<vmem>>, vector<1x84xf32>
    %156 = vector.broadcast %155 : vector<1x84xf32> to vector<2x84xf32>
    %157 = arith.addf %154, %156 : vector<2x84xf32>
    %cst_123 = arith.constant 0.000000e+00 : f32
    %158 = vector.broadcast %cst_123 : f32 to vector<2x84xf32>
    %159 = arith.maximumf %157, %158 : vector<2x84xf32>
    %160 = arith.truncf %159 : vector<2x84xf32> to vector<2x84xbf16>
    %c0_124 = arith.constant 0 : index
    %c0_125 = arith.constant 0 : index
    %161 = vector.load %arg15[%c0_124, %c0_125] : memref<84x15xbf16, #tpu.memory_space<vmem>>, vector<84x15xbf16>
    %cst_126 = arith.constant dense<0.000000e+00> : vector<2x15xf32>
    %162 = tpu.matmul %160, %161, %cst_126 {dimension_numbers = #tpu.dot_dimension_numbers<[1], [0], [0], [1], [0, 0, 1, 1], [], []>} : vector<2x84xbf16>, vector<84x15xbf16>, vector<2x15xf32> -> vector<2x15xf32>
    %c0_127 = arith.constant 0 : index
    %c0_128 = arith.constant 0 : index
    %163 = vector.load %arg16[%c0_127, %c0_128] : memref<1x15xf32, #tpu.memory_space<vmem>>, vector<1x15xf32>
    %164 = vector.broadcast %163 : vector<1x15xf32> to vector<2x15xf32>
    %165 = arith.addf %162, %164 : vector<2x15xf32>
    %c0_129 = arith.constant 0 : index
    %c0_130 = arith.constant 0 : index
    %166 = vector.load %arg17[%c0_129, %c0_130] : memref<2x15xf32, #tpu.memory_space<vmem>>, vector<2x15xf32>
    tpu.vector_store %arg17[%c0_129, %c0_130], %165 {strides = array<i32>} : memref<2x15xf32, #tpu.memory_space<vmem>>, vector<2x15xf32>,
    return
  }
  func.func @transform_0(%arg0: i32) -> (i32, i32, i32) {
    %c0_i32 = arith.constant 0 : i32
    %c0_i32_0 = arith.constant 0 : i32
    %c0_i32_1 = arith.constant 0 : i32
    return %arg0, %c0_i32, %c0_i32_0 : i32, i32, i32
  }
  func.func @transform_1(%arg0: i32) -> (i32, i32, i32) {
    %c0_i32 = arith.constant 0 : i32
    %c0_i32_0 = arith.constant 0 : i32
    %c0_i32_1 = arith.constant 0 : i32
    %c0_i32_2 = arith.constant 0 : i32
    return %c0_i32, %c0_i32_0, %c0_i32_1 : i32, i32, i32
  }
  func.func @transform_2(%arg0: i32) -> (i32, i32) {
    %c0_i32 = arith.constant 0 : i32
    %c0_i32_0 = arith.constant 0 : i32
    %c0_i32_1 = arith.constant 0 : i32
    return %c0_i32, %c0_i32_0 : i32, i32
  }
  func.func @transform_3(%arg0: i32) -> (i32, i32, i32) {
    %c0_i32 = arith.constant 0 : i32
    %c0_i32_0 = arith.constant 0 : i32
    %c0_i32_1 = arith.constant 0 : i32
    %c0_i32_2 = arith.constant 0 : i32
    return %c0_i32, %c0_i32_0, %c0_i32_1 : i32, i32, i32
  }
  func.func @transform_4(%arg0: i32) -> (i32, i32, i32) {
    %c0_i32 = arith.constant 0 : i32
    %c0_i32_0 = arith.constant 0 : i32
    %c0_i32_1 = arith.constant 0 : i32
    %c0_i32_2 = arith.constant 0 : i32
    return %c0_i32, %c0_i32_0, %c0_i32_1 : i32, i32, i32
  }
  func.func @transform_5(%arg0: i32) -> (i32, i32, i32) {
    %c0_i32 = arith.constant 0 : i32
    %c0_i32_0 = arith.constant 0 : i32
    %c0_i32_1 = arith.constant 0 : i32
    %c0_i32_2 = arith.constant 0 : i32
    return %c0_i32, %c0_i32_0, %c0_i32_1 : i32, i32, i32
  }
  func.func @transform_6(%arg0: i32) -> (i32, i32) {
    %c0_i32 = arith.constant 0 : i32
    %c0_i32_0 = arith.constant 0 : i32
    %c0_i32_1 = arith.constant 0 : i32
    return %c0_i32, %c0_i32_0 : i32, i32
  }
  func.func @transform_7(%arg0: i32) -> (i32, i32, i32) {
    %c0_i32 = arith.constant 0 : i32
    %c0_i32_0 = arith.constant 0 : i32
    %c0_i32_1 = arith.constant 0 : i32
    %c0_i32_2 = arith.constant 0 : i32
    return %c0_i32, %c0_i32_0, %c0_i32_1 : i32, i32, i32
  }
  func.func @transform_8(%arg0: i32) -> (i32, i32, i32) {
    %c0_i32 = arith.constant 0 : i32
    %c0_i32_0 = arith.constant 0 : i32
    %c0_i32_1 = arith.constant 0 : i32
    %c0_i32_2 = arith.constant 0 : i32
    return %c0_i32, %c0_i32_0, %c0_i32_1 : i32, i32, i32
  }
  func.func @transform_9(%arg0: i32) -> (i32, i32, i32) {
    %c0_i32 = arith.constant 0 : i32
    %c0_i32_0 = arith.constant 0 : i32
    %c0_i32_1 = arith.constant 0 : i32
    %c0_i32_2 = arith.constant 0 : i32
    return %c0_i32, %c0_i32_0, %c0_i32_1 : i32, i32, i32
  }
  func.func @transform_10(%arg0: i32) -> (i32, i32, i32) {
    %c0_i32 = arith.constant 0 : i32
    %c0_i32_0 = arith.constant 0 : i32
    %c0_i32_1 = arith.constant 0 : i32
    %c0_i32_2 = arith.constant 0 : i32
    return %c0_i32, %c0_i32_0, %c0_i32_1 : i32, i32, i32
  }
  func.func @transform_11(%arg0: i32) -> (i32, i32) {
    %c0_i32 = arith.constant 0 : i32
    %c0_i32_0 = arith.constant 0 : i32
    %c0_i32_1 = arith.constant 0 : i32
    return %c0_i32, %c0_i32_0 : i32, i32
  }
  func.func @transform_12(%arg0: i32) -> (i32, i32) {
    %c0_i32 = arith.constant 0 : i32
    %c0_i32_0 = arith.constant 0 : i32
    %c0_i32_1 = arith.constant 0 : i32
    return %c0_i32, %c0_i32_0 : i32, i32
  }
  func.func @transform_13(%arg0: i32) -> (i32, i32) {
    %c0_i32 = arith.constant 0 : i32
    %c0_i32_0 = arith.constant 0 : i32
    %c0_i32_1 = arith.constant 0 : i32
    return %c0_i32, %c0_i32_0 : i32, i32
  }
  func.func @transform_14(%arg0: i32) -> (i32, i32) {
    %c0_i32 = arith.constant 0 : i32
    %c0_i32_0 = arith.constant 0 : i32
    %c0_i32_1 = arith.constant 0 : i32
    return %c0_i32, %c0_i32_0 : i32, i32
  }
  func.func @transform_15(%arg0: i32) -> (i32, i32) {
    %c0_i32 = arith.constant 0 : i32
    %c0_i32_0 = arith.constant 0 : i32
    %c0_i32_1 = arith.constant 0 : i32
    return %c0_i32, %c0_i32_0 : i32, i32
  }
  func.func @transform_16(%arg0: i32) -> (i32, i32) {
    %c0_i32 = arith.constant 0 : i32
    %c0_i32_0 = arith.constant 0 : i32
    return %arg0, %c0_i32 : i32, i32
  }
}

</mosaic_0001>

<llo_original>
// kernel: net_forward.1
$region0: #{net_forward.1}
  #allocation0 [shape = 'u32[]', space=smem, size = 0x4, offset = 0x4, fixed_abs, tag = 'smem constant byte address 0x4 - core index']
  #allocation1 [shape = 'u32[72,128]{1,0:T(1,128)}', space=vmem, size = 0x9000, scoped, tag = 'internal scratch']
  %s0 = inlined_call_operand.vmem [shape: f32[2,32,32], index: 0, kind: input, shape index: {}]
  %s1 = inlined_call_operand.vmem [shape: bf16[5,32,168], index: 1, kind: input, shape index: {}]
  %s2 = inlined_call_operand.vmem [shape: f32[1,168], index: 2, kind: input, shape index: {}]
  %s3 = inlined_call_operand.vmem [shape: f32[2,168,84], index: 3, kind: input, shape index: {}]
  %s4 = inlined_call_operand.vmem [shape: f32[2,28,56], index: 4, kind: input, shape index: {}]
  %s5 = inlined_call_operand.vmem [shape: bf16[5,84,160], index: 5, kind: input, shape index: {}]
  %s6 = inlined_call_operand.vmem [shape: f32[1,160], index: 6, kind: input, shape index: {}]
  %s7 = inlined_call_operand.vmem [shape: f32[2,160,80], index: 7, kind: input, shape index: {}]
  %s8 = inlined_call_operand.vmem [shape: f32[2,10,20], index: 8, kind: input, shape index: {}]
  %s9 = inlined_call_operand.vmem [shape: f32[5,2,10], index: 9, kind: input, shape index: {}]
  %s10 = inlined_call_operand.vmem [shape: bf16[5,80,120], index: 10, kind: input, shape index: {}]
  %s11 = inlined_call_operand.vmem [shape: f32[1,120], index: 11, kind: input, shape index: {}]
  %s12 = inlined_call_operand.vmem [shape: bf16[120,84], index: 12, kind: input, shape index: {}]
  %s13 = inlined_call_operand.vmem [shape: f32[1,84], index: 13, kind: input, shape index: {}]
  %s14 = inlined_call_operand.vmem [shape: bf16[84,15], index: 14, kind: input, shape index: {}]
  %s15 = inlined_call_operand.vmem [shape: f32[1,15], index: 15, kind: input, shape index: {}]
  %s16 = inlined_call_operand.hbm [shape: f32[2,15], index: 16, kind: output, shape index: {}]
  %s17 = sld [smem:[#allocation0]]
  $region74: #{net_forward.1} parent=0
    _
  %s19 = ssub.s32 1, %s17
  %s20 = scalar_select 0, %s19, %s17
  $region1: #{net_forward.1} parent=0
    #allocation2 [shape = 'u8[1024]{0}', space=vmem, size = 0x400, scoped, tag = 'output window, operand 0, single buffered']
    #allocation3 [shape = 's32[1]{0}', space=sflag, size = 0x4, scoped, tag = 'scoped memory for net_forward.1']
    %21 = vsyncpa [#allocation3], 0
    // Predicated region
    $region2: #{net_forward.1} parent=1 // pred_check
      _
    $region3: #{net_forward.1} parent=1 // pred_check_branch
      %23 = sbr.rel (0) target = $region5
    $region4: #{net_forward.1} parent=1 // pred_region
      _
    $region5: #{net_forward.1} parent=1 // pred_fallthru
      _
    // Predicated region
    $region6: #{net_forward.1} parent=1 // pred_check
      _
    $region7: #{net_forward.1} parent=1 // pred_check_branch
      %25 = sbr.rel (0) target = $region9
    $region8: #{net_forward.1} parent=1 // pred_region
      _
    $region9: #{net_forward.1} parent=1 // pred_fallthru
      _
    // Predicated region
    $region10: #{net_forward.1} parent=1 // pred_check
      _
    $region11: #{net_forward.1} parent=1 // pred_check_branch
      %27 = sbr.rel (0) target = $region13
    $region12: #{net_forward.1} parent=1 // pred_region
      _
    $region13: #{net_forward.1} parent=1 // pred_fallthru
      _
    // Predicated region
    $region14: #{net_forward.1} parent=1 // pred_check
      _
    $region15: #{net_forward.1} parent=1 // pred_check_branch
      %29 = sbr.rel (0) target = $region17
    $region16: #{net_forward.1} parent=1 // pred_region
      _
    $region17: #{net_forward.1} parent=1 // pred_fallthru
      _
    // Predicated region
    $region18: #{net_forward.1} parent=1 // pred_check
      _
    $region19: #{net_forward.1} parent=1 // pred_check_branch
      %31 = sbr.rel (0) target = $region21
    $region20: #{net_forward.1} parent=1 // pred_region
      _
    $region21: #{net_forward.1} parent=1 // pred_fallthru
      _
    // Predicated region
    $region22: #{net_forward.1} parent=1 // pred_check
      _
    $region23: #{net_forward.1} parent=1 // pred_check_branch
      %33 = sbr.rel (0) target = $region25
    $region24: #{net_forward.1} parent=1 // pred_region
      _
    $region25: #{net_forward.1} parent=1 // pred_fallthru
      _
    // Predicated region
    $region26: #{net_forward.1} parent=1 // pred_check
      _
    $region27: #{net_forward.1} parent=1 // pred_check_branch
      %35 = sbr.rel (0) target = $region29
    $region28: #{net_forward.1} parent=1 // pred_region
      _
    $region29: #{net_forward.1} parent=1 // pred_fallthru
      _
    // Predicated region
    $region30: #{net_forward.1} parent=1 // pred_check
      _
    $region31: #{net_forward.1} parent=1 // pred_check_branch
      %37 = sbr.rel (0) target = $region33
    $region32: #{net_forward.1} parent=1 // pred_region
      _
    $region33: #{net_forward.1} parent=1 // pred_fallthru
      _
    // Predicated region
    $region34: #{net_forward.1} parent=1 // pred_check
      _
    $region35: #{net_forward.1} parent=1 // pred_check_branch
      %39 = sbr.rel (0) target = $region37
    $region36: #{net_forward.1} parent=1 // pred_region
      _
    $region37: #{net_forward.1} parent=1 // pred_fallthru
      _
    // Predicated region
    $region38: #{net_forward.1} parent=1 // pred_check
      _
    $region39: #{net_forward.1} parent=1 // pred_check_branch
      %41 = sbr.rel (0) target = $region41
    $region40: #{net_forward.1} parent=1 // pred_region
      _
    $region41: #{net_forward.1} parent=1 // pred_fallthru
      _
    // Predicated region
    $region42: #{net_forward.1} parent=1 // pred_check
      _
    $region43: #{net_forward.1} parent=1 // pred_check_branch
      %43 = sbr.rel (0) target = $region45
    $region44: #{net_forward.1} parent=1 // pred_region
      _
    $region45: #{net_forward.1} parent=1 // pred_fallthru
      _
    // Predicated region
    $region46: #{net_forward.1} parent=1 // pred_check
      _
    $region47: #{net_forward.1} parent=1 // pred_check_branch
      %45 = sbr.rel (0) target = $region49
    $region48: #{net_forward.1} parent=1 // pred_region
      _
    $region49: #{net_forward.1} parent=1 // pred_fallthru
      _
    // Predicated region
    $region50: #{net_forward.1} parent=1 // pred_check
      _
    $region51: #{net_forward.1} parent=1 // pred_check_branch
      %47 = sbr.rel (0) target = $region53
    $region52: #{net_forward.1} parent=1 // pred_region
      _
    $region53: #{net_forward.1} parent=1 // pred_fallthru
      _
    // Predicated region
    $region54: #{net_forward.1} parent=1 // pred_check
      _
    $region55: #{net_forward.1} parent=1 // pred_check_branch
      %49 = sbr.rel (0) target = $region57
    $region56: #{net_forward.1} parent=1 // pred_region
      _
    $region57: #{net_forward.1} parent=1 // pred_fallthru
      _
    // Predicated region
    $region58: #{net_forward.1} parent=1 // pred_check
      _
    $region59: #{net_forward.1} parent=1 // pred_check_branch
      %51 = sbr.rel (0) target = $region61
    $region60: #{net_forward.1} parent=1 // pred_region
      _
    $region61: #{net_forward.1} parent=1 // pred_fallthru
      _
    // Predicated region
    $region62: #{net_forward.1} parent=1 // pred_check
      _
    $region63: #{net_forward.1} parent=1 // pred_check_branch
      %53 = sbr.rel (0) target = $region65
    $region64: #{net_forward.1} parent=1 // pred_region
      _
    $region65: #{net_forward.1} parent=1 // pred_fallthru
      _
    %v55 = vld [vmem:[%s0] sm:$0xff]
    %v56 = vld [vmem:[%s0 + $0x8] sm:$0xff]
    %v57 = vld [vmem:[%s0 + $0x10] sm:$0xff]
    %v58 = vld [vmem:[%s0 + $0x18] sm:$0xff]
    %v59 = vld [vmem:[%s0 + $0x20] sm:$0xff]
    %v60 = vld [vmem:[%s0 + $0x28] sm:$0xff]
    %v61 = vld [vmem:[%s0 + $0x30] sm:$0xff]
    %v62 = vld [vmem:[%s0 + $0x38] sm:$0xff]
    %v71 = vrot.slane %v55, 4
    %v72 = vrot.slane %v56, 4
    %v73 = vrot.slane %v57, 4
    %v74 = vrot.slane %v59, 4
    %v75 = vrot.slane %v60, 4
    %v76 = vrot.slane %v61, 4
    %77 = vst [vmem:[#allocation1] ss:$2 sm:$0xff] %v55
    %s78 = scalar_lea.vmem [#allocation1], 1
    %79 = vst [vmem:[%s78] ss:$2 sm:$0xff] %v71
    %s80 = scalar_lea.vmem [#allocation1], 16
    %81 = vst [vmem:[%s80] ss:$2 sm:$0xff] %v56
    %s82 = scalar_lea.vmem [#allocation1], 17
    %83 = vst [vmem:[%s82] ss:$2 sm:$0xff] %v72
    %s84 = scalar_lea.vmem [#allocation1], 32
    %85 = vst [vmem:[%s84] ss:$2 sm:$0xff] %v57
    %s86 = scalar_lea.vmem [#allocation1], 33
    %87 = vst [vmem:[%s86] ss:$2 sm:$0xff] %v73
    %s88 = scalar_lea.vmem [#allocation1], 48
    %89 = vst [vmem:[%s88] ss:$2 sm:$0xff] %v58
    %s90 = scalar_lea.vmem [#allocation1], 49
    %91 = vst [vmem:[%s90] ss:$2 sm:$0xff] %v59
    %v92 = vld.sshfl [vmem:[#allocation1] sm:$0xff pattern:$0x75316420]
    %v93 = vld.sshfl [vmem:[#allocation1 + $0x10] sm:$0xff pattern:$0x75316420]
    %v94 = vld.sshfl [vmem:[#allocation1 + $0x20] sm:$0xff pattern:$0x75316420]
    %v95 = vld.sshfl [vmem:[#allocation1 + $0x30] sm:$0xff pattern:$0x75316420]
    %96 = vst [vmem:[#allocation1] ss:$2 sm:$0xff] %v74
    %97 = vst [vmem:[%s78] ss:$2 sm:$0xff] %v60
    %98 = vst [vmem:[%s80] ss:$2 sm:$0xff] %v75
    %99 = vst [vmem:[%s82] ss:$2 sm:$0xff] %v61
    %100 = vst [vmem:[%s84] ss:$2 sm:$0xff] %v76
    %101 = vst [vmem:[%s86] ss:$2 sm:$0xff] %v62
    %v102 = vld.sshfl [vmem:[#allocation1] sm:$0xff pattern:$0x75316420]
    %v103 = vld.sshfl [vmem:[#allocation1 + $0x10] sm:$0xff pattern:$0x75316420]
    %v104 = vld.sshfl [vmem:[#allocation1 + $0x20] sm:$0xff pattern:$0x75316420]
    %v112 = vpack.c.bf16 %v93, %v92
    %v113 = vpack.c.bf16 %v95, %v94
    %v114 = vpack.c.bf16 %v103, %v102
    %v115 = vpack.c.bf16 %v104, %v104
    %v116 = vld [vmem:[%s1] sm:$0xff]
    %v117 = vld [vmem:[%s1 + $0x8] sm:$0xff]
    %v118 = vld [vmem:[%s1 + $0x10] sm:$0xff]
    %v119 = vld [vmem:[%s1 + $0x18] sm:$0xff]
    %v120 = vrot.slane %v58, 4
    %v121 = vrot.slane %v62, 4
    %vm122 = vcmask 1042432
    %vm123 = vcmask 1046532
    %vm124 = vmor %vm122, %vm123
    %v125 = vrot.slane %v55, 5
    %v126 = vrot.slane %v125, 4
    %v127 = vrot.slane %v71, 5
    %v128 = vsel %vm124, %v126, %v127
    %v129 = vrot.slane %v127, 4
    %v130 = vrot.slane %v56, 5
    %v131 = vsel %vm124, %v129, %v130
    %v132 = vrot.slane %v130, 4
    %v133 = vrot.slane %v72, 5
    %v134 = vsel %vm124, %v132, %v133
    %v135 = vrot.slane %v133, 4
    %v136 = vrot.slane %v57, 5
    %v137 = vsel %vm124, %v135, %v136
    %v138 = vrot.slane %v136, 4
    %v139 = vrot.slane %v73, 5
    %v140 = vsel %vm124, %v138, %v139
    %v141 = vrot.slane %v139, 4
    %v142 = vrot.slane %v58, 5
    %v143 = vsel %vm124, %v141, %v142
    %v144 = vrot.slane %v142, 4
    %v145 = vrot.slane %v120, 5
    %v146 = vsel %vm124, %v144, %v145
    %v147 = vrot.slane %v59, 5
    %v148 = vrot.slane %v147, 4
    %v149 = vrot.slane %v74, 5
    %v150 = vsel %vm124, %v148, %v149
    %v151 = vrot.slane %v149, 4
    %v152 = vrot.slane %v60, 5
    %v153 = vsel %vm124, %v151, %v152
    %v154 = vrot.slane %v152, 4
    %v155 = vrot.slane %v75, 5
    %v156 = vsel %vm124, %v154, %v155
    %v157 = vrot.slane %v155, 4
    %v158 = vrot.slane %v61, 5
    %v159 = vsel %vm124, %v157, %v158
    %v160 = vrot.slane %v158, 4
    %v161 = vrot.slane %v76, 5
    %v162 = vsel %vm124, %v160, %v161
    %v163 = vrot.slane %v161, 4
    %v164 = vrot.slane %v62, 5
    %v165 = vsel %vm124, %v163, %v164
    %v166 = vrot.slane %v164, 4
    %v167 = vrot.slane %v121, 5
    %v168 = vsel %vm124, %v166, %v167
    %169 = vst [vmem:[#allocation1] ss:$2 sm:$0xff] %v128
    %s170 = scalar_lea.vmem [#allocation1], 1
    %171 = vst [vmem:[%s170] ss:$2 sm:$0xff] %v131
    %s172 = scalar_lea.vmem [#allocation1], 16
    %173 = vst [vmem:[%s172] ss:$2 sm:$0xff] %v134
    %s174 = scalar_lea.vmem [#allocation1], 17
    %175 = vst [vmem:[%s174] ss:$2 sm:$0xff] %v137
    %s176 = scalar_lea.vmem [#allocation1], 32
    %177 = vst [vmem:[%s176] ss:$2 sm:$0xff] %v140
    %s178 = scalar_lea.vmem [#allocation1], 33
    %179 = vst [vmem:[%s178] ss:$2 sm:$0xff] %v143
    %s180 = scalar_lea.vmem [#allocation1], 48
    %181 = vst [vmem:[%s180] ss:$2 sm:$0xff] %v146
    %s182 = scalar_lea.vmem [#allocation1], 49
    %183 = vst [vmem:[%s182] ss:$2 sm:$0xff] %v150
    %v184 = vld.sshfl [vmem:[#allocation1] sm:$0xff pattern:$0x75316420]
    %v185 = vld.sshfl [vmem:[#allocation1 + $0x10] sm:$0xff pattern:$0x75316420]
    %v186 = vld.sshfl [vmem:[#allocation1 + $0x20] sm:$0xff pattern:$0x75316420]
    %v187 = vld.sshfl [vmem:[#allocation1 + $0x30] sm:$0xff pattern:$0x75316420]
    %188 = vst [vmem:[#allocation1] ss:$2 sm:$0xff] %v153
    %189 = vst [vmem:[%s170] ss:$2 sm:$0xff] %v156
    %190 = vst [vmem:[%s172] ss:$2 sm:$0xff] %v159
    %191 = vst [vmem:[%s174] ss:$2 sm:$0xff] %v162
    %192 = vst [vmem:[%s176] ss:$2 sm:$0xff] %v165
    %193 = vst [vmem:[%s178] ss:$2 sm:$0xff] %v168
    %v194 = vld.sshfl [vmem:[#allocation1] sm:$0xff pattern:$0x75316420]
    %v195 = vld.sshfl [vmem:[#allocation1 + $0x10] sm:$0xff pattern:$0x75316420]
    %v196 = vld.sshfl [vmem:[#allocation1 + $0x20] sm:$0xff pattern:$0x75316420]
    %v204 = vpack.c.bf16 %v185, %v184
    %v205 = vpack.c.bf16 %v187, %v186
    %v206 = vpack.c.bf16 %v195, %v194
    %v207 = vpack.c.bf16 %v196, %v196
    %s208 = scalar_lea.vmem %s1, 32
    %v209 = vld [vmem:[%s208] sm:$0xff]
    %v210 = vld [vmem:[%s208 + $0x8] sm:$0xff]
    %v211 = vld [vmem:[%s208 + $0x10] sm:$0xff]
    %v212 = vld [vmem:[%s208 + $0x18] sm:$0xff]
    %v217 = vunpack.c.l.b16 %v209
    %v218 = vunpack.c.h.b16 %v209
    %v219 = vunpack.c.l.b16 %v210
    %v220 = vunpack.c.h.b16 %v210
    %v221 = vunpack.c.l.b16 %v211
    %v222 = vunpack.c.h.b16 %v211
    %v223 = vunpack.c.l.b16 %v212
    %v224 = vunpack.c.h.b16 %v212
    %v225 = vpack.c.b16 %v219, %v217
    %v226 = vpack.c.b16 %v220, %v218
    %v227 = vpack.c.b16 %v223, %v221
    %v228 = vpack.c.b16 %v224, %v222
    %vm233 = vcmask 261120
    %v235 = vsel %vm233, %v204, 0
    %v238 = vsel %vm233, %v205, 0
    %v241 = vsel %vm233, %v206, 0
    %v244 = vsel %vm233, %v207, 0
    %246 = vmatpush.bf16.msra.mxu0 0
    %247 = vmatpush.bf16.msra.mxu0 0
    %248 = vmatpush.bf16.msra.mxu0 0
    %249 = vmatpush.bf16.msra.mxu0 0
    %250 = vmatpush.bf16.msra.mxu0 0
    %251 = vmatpush.bf16.msra.mxu0 0
    %252 = vmatpush.bf16.msra.mxu0 %v227
    %253 = vmatpush.bf16.msra.mxu0 %v225
    %254 = vmatmul.bf16.gmra.mxu0 %v235
    %v255 = vpop.f32.mrf.mxu0
    %v256 = vadd.f32 0.0, %v255
    %v257 = vpop.f32.mrf.mxu0
    %v258 = vadd.f32 0.0, %v257
    %259 = vmatmul.bf16.gmra.mxu0 %v238
    %v260 = vpop.f32.mrf.mxu0
    %v261 = vadd.f32 0.0, %v260
    %v262 = vpop.f32.mrf.mxu0
    %v263 = vadd.f32 0.0, %v262
    %264 = vmatmul.bf16.gmra.mxu0 %v241
    %v265 = vpop.f32.mrf.mxu0
    %v266 = vadd.f32 0.0, %v265
    %v267 = vpop.f32.mrf.mxu0
    %v268 = vadd.f32 0.0, %v267
    %269 = vmatmul.bf16.gmra.mxu0 %v244
    %v270 = vpop.f32.mrf.mxu0
    %v271 = vadd.f32 0.0, %v270
    %v272 = vpop.f32.mrf.mxu0
    %273 = vdwg.mxu0
    %274 = vmatpush.bf16.msra.mxu0 0
    %275 = vmatpush.bf16.msra.mxu0 0
    %276 = vmatpush.bf16.msra.mxu0 0
    %277 = vmatpush.bf16.msra.mxu0 0
    %278 = vmatpush.bf16.msra.mxu0 0
    %279 = vmatpush.bf16.msra.mxu0 0
    %280 = vmatpush.bf16.msra.mxu0 %v228
    %281 = vmatpush.bf16.msra.mxu0 %v226
    %282 = vmatmul.bf16.gmra.mxu0 %v235
    %v283 = vpop.f32.mrf.mxu0
    %v284 = vadd.f32 0.0, %v283
    %v285 = vpop.f32.mrf.mxu0
    %v286 = vadd.f32 0.0, %v285
    %287 = vmatmul.bf16.gmra.mxu0 %v238
    %v288 = vpop.f32.mrf.mxu0
    %v289 = vadd.f32 0.0, %v288
    %v290 = vpop.f32.mrf.mxu0
    %v291 = vadd.f32 0.0, %v290
    %292 = vmatmul.bf16.gmra.mxu0 %v241
    %v293 = vpop.f32.mrf.mxu0
    %v294 = vadd.f32 0.0, %v293
    %v295 = vpop.f32.mrf.mxu0
    %v296 = vadd.f32 0.0, %v295
    %297 = vmatmul.bf16.gmra.mxu0 %v244
    %v298 = vpop.f32.mrf.mxu0
    %v299 = vadd.f32 0.0, %v298
    %v300 = vpop.f32.mrf.mxu0
    %301 = vdwg.mxu0
    %v306 = vunpack.c.l.b16 %v116
    %v307 = vunpack.c.h.b16 %v116
    %v308 = vunpack.c.l.b16 %v117
    %v309 = vunpack.c.h.b16 %v117
    %v310 = vunpack.c.l.b16 %v118
    %v311 = vunpack.c.h.b16 %v118
    %v312 = vunpack.c.l.b16 %v119
    %v313 = vunpack.c.h.b16 %v119
    %v314 = vpack.c.b16 %v308, %v306
    %v315 = vpack.c.b16 %v309, %v307
    %v316 = vpack.c.b16 %v312, %v310
    %v317 = vpack.c.b16 %v313, %v311
    %v323 = vsel %vm233, %v112, 0
    %v326 = vsel %vm233, %v113, 0
    %v329 = vsel %vm233, %v114, 0
    %v332 = vsel %vm233, %v115, 0
    %334 = vmatpush.bf16.msra.mxu0 0
    %335 = vmatpush.bf16.msra.mxu0 0
    %336 = vmatpush.bf16.msra.mxu0 0
    %337 = vmatpush.bf16.msra.mxu0 0
    %338 = vmatpush.bf16.msra.mxu0 0
    %339 = vmatpush.bf16.msra.mxu0 0
    %340 = vmatpush.bf16.msra.mxu0 %v316
    %341 = vmatpush.bf16.msra.mxu0 %v314
    %342 = vmatmul.bf16.gmra.mxu0 %v323
    %v343 = vpop.f32.mrf.mxu0
    %v344 = vadd.f32 %v256, %v343
    %v345 = vpop.f32.mrf.mxu0
    %v346 = vadd.f32 %v258, %v345
    %347 = vmatmul.bf16.gmra.mxu0 %v326
    %v348 = vpop.f32.mrf.mxu0
    %v349 = vadd.f32 %v261, %v348
    %v350 = vpop.f32.mrf.mxu0
    %v351 = vadd.f32 %v263, %v350
    %352 = vmatmul.bf16.gmra.mxu0 %v329
    %v353 = vpop.f32.mrf.mxu0
    %v354 = vadd.f32 %v266, %v353
    %v355 = vpop.f32.mrf.mxu0
    %v356 = vadd.f32 %v268, %v355
    %357 = vmatmul.bf16.gmra.mxu0 %v332
    %v358 = vpop.f32.mrf.mxu0
    %v359 = vadd.f32 %v271, %v358
    %v360 = vpop.f32.mrf.mxu0
    %361 = vdwg.mxu0
    %362 = vmatpush.bf16.msra.mxu0 0
    %363 = vmatpush.bf16.msra.mxu0 0
    %364 = vmatpush.bf16.msra.mxu0 0
    %365 = vmatpush.bf16.msra.mxu0 0
    %366 = vmatpush.bf16.msra.mxu0 0
    %367 = vmatpush.bf16.msra.mxu0 0
    %368 = vmatpush.bf16.msra.mxu0 %v317
    %369 = vmatpush.bf16.msra.mxu0 %v315
    %370 = vmatmul.bf16.gmra.mxu0 %v323
    %v371 = vpop.f32.mrf.mxu0
    %v372 = vadd.f32 %v284, %v371
    %v373 = vpop.f32.mrf.mxu0
    %v374 = vadd.f32 %v286, %v373
    %375 = vmatmul.bf16.gmra.mxu0 %v326
    %v376 = vpop.f32.mrf.mxu0
    %v377 = vadd.f32 %v289, %v376
    %v378 = vpop.f32.mrf.mxu0
    %v379 = vadd.f32 %v291, %v378
    %380 = vmatmul.bf16.gmra.mxu0 %v329
    %v381 = vpop.f32.mrf.mxu0
    %v382 = vadd.f32 %v294, %v381
    %v383 = vpop.f32.mrf.mxu0
    %v384 = vadd.f32 %v296, %v383
    %385 = vmatmul.bf16.gmra.mxu0 %v332
    %v386 = vpop.f32.mrf.mxu0
    %v387 = vadd.f32 %v299, %v386
    %v388 = vpop.f32.mrf.mxu0
    %389 = vdwg.mxu0
    %vm390 = vcmask 1041408
    %vm391 = vcmask 1045508
    %vm392 = vmor %vm390, %vm391
    %v393 = vrot.slane %v55, 6
    %v394 = vrot.slane %v393, 4
    %v395 = vrot.slane %v71, 6
    %v396 = vsel %vm392, %v394, %v395
    %v397 = vrot.slane %v395, 4
    %v398 = vrot.slane %v56, 6
    %v399 = vsel %vm392, %v397, %v398
    %v400 = vrot.slane %v398, 4
    %v401 = vrot.slane %v72, 6
    %v402 = vsel %vm392, %v400, %v401
    %v403 = vrot.slane %v401, 4
    %v404 = vrot.slane %v57, 6
    %v405 = vsel %vm392, %v403, %v404
    %v406 = vrot.slane %v404, 4
    %v407 = vrot.slane %v73, 6
    %v408 = vsel %vm392, %v406, %v407
    %v409 = vrot.slane %v407, 4
    %v410 = vrot.slane %v58, 6
    %v411 = vsel %vm392, %v409, %v410
    %v412 = vrot.slane %v410, 4
    %v413 = vrot.slane %v120, 6
    %v414 = vsel %vm392, %v412, %v413
    %v415 = vrot.slane %v59, 6
    %v416 = vrot.slane %v415, 4
    %v417 = vrot.slane %v74, 6
    %v418 = vsel %vm392, %v416, %v417
    %v419 = vrot.slane %v417, 4
    %v420 = vrot.slane %v60, 6
    %v421 = vsel %vm392, %v419, %v420
    %v422 = vrot.slane %v420, 4
    %v423 = vrot.slane %v75, 6
    %v424 = vsel %vm392, %v422, %v423
    %v425 = vrot.slane %v423, 4
    %v426 = vrot.slane %v61, 6
    %v427 = vsel %vm392, %v425, %v426
    %v428 = vrot.slane %v426, 4
    %v429 = vrot.slane %v76, 6
    %v430 = vsel %vm392, %v428, %v429
    %v431 = vrot.slane %v429, 4
    %v432 = vrot.slane %v62, 6
    %v433 = vsel %vm392, %v431, %v432
    %v434 = vrot.slane %v432, 4
    %v435 = vrot.slane %v121, 6
    %v436 = vsel %vm392, %v434, %v435
    %437 = vst [vmem:[#allocation1] ss:$2 sm:$0xff] %v396
    %s438 = scalar_lea.vmem [#allocation1], 1
    %439 = vst [vmem:[%s438] ss:$2 sm:$0xff] %v399
    %s440 = scalar_lea.vmem [#allocation1], 16
    %441 = vst [vmem:[%s440] ss:$2 sm:$0xff] %v402
    %s442 = scalar_lea.vmem [#allocation1], 17
    %443 = vst [vmem:[%s442] ss:$2 sm:$0xff] %v405
    %s444 = scalar_lea.vmem [#allocation1], 32
    %445 = vst [vmem:[%s444] ss:$2 sm:$0xff] %v408
    %s446 = scalar_lea.vmem [#allocation1], 33
    %447 = vst [vmem:[%s446] ss:$2 sm:$0xff] %v411
    %s448 = scalar_lea.vmem [#allocation1], 48
    %449 = vst [vmem:[%s448] ss:$2 sm:$0xff] %v414
    %s450 = scalar_lea.vmem [#allocation1], 49
    %451 = vst [vmem:[%s450] ss:$2 sm:$0xff] %v418
    %v452 = vld.sshfl [vmem:[#allocation1] sm:$0xff pattern:$0x75316420]
    %v453 = vld.sshfl [vmem:[#allocation1 + $0x10] sm:$0xff pattern:$0x75316420]
    %v454 = vld.sshfl [vmem:[#allocation1 + $0x20] sm:$0xff pattern:$0x75316420]
    %v455 = vld.sshfl [vmem:[#allocation1 + $0x30] sm:$0xff pattern:$0x75316420]
    %456 = vst [vmem:[#allocation1] ss:$2 sm:$0xff] %v421
    %457 = vst [vmem:[%s438] ss:$2 sm:$0xff] %v424
    %458 = vst [vmem:[%s440] ss:$2 sm:$0xff] %v427
    %459 = vst [vmem:[%s442] ss:$2 sm:$0xff] %v430
    %460 = vst [vmem:[%s444] ss:$2 sm:$0xff] %v433
    %461 = vst [vmem:[%s446] ss:$2 sm:$0xff] %v436
    %v462 = vld.sshfl [vmem:[#allocation1] sm:$0xff pattern:$0x75316420]
    %v463 = vld.sshfl [vmem:[#allocation1 + $0x10] sm:$0xff pattern:$0x75316420]
    %v464 = vld.sshfl [vmem:[#allocation1 + $0x20] sm:$0xff pattern:$0x75316420]
    %v472 = vpack.c.bf16 %v453, %v452
    %v473 = vpack.c.bf16 %v455, %v454
    %v474 = vpack.c.bf16 %v463, %v462
    %v475 = vpack.c.bf16 %v464, %v464
    %s476 = scalar_lea.vmem %s1, 64
    %v477 = vld [vmem:[%s476] sm:$0xff]
    %v478 = vld [vmem:[%s476 + $0x8] sm:$0xff]
    %v479 = vld [vmem:[%s476 + $0x10] sm:$0xff]
    %v480 = vld [vmem:[%s476 + $0x18] sm:$0xff]
    %v485 = vunpack.c.l.b16 %v477
    %v486 = vunpack.c.h.b16 %v477
    %v487 = vunpack.c.l.b16 %v478
    %v488 = vunpack.c.h.b16 %v478
    %v489 = vunpack.c.l.b16 %v479
    %v490 = vunpack.c.h.b16 %v479
    %v491 = vunpack.c.l.b16 %v480
    %v492 = vunpack.c.h.b16 %v480
    %v493 = vpack.c.b16 %v487, %v485
    %v494 = vpack.c.b16 %v488, %v486
    %v495 = vpack.c.b16 %v491, %v489
    %v496 = vpack.c.b16 %v492, %v490
    %v502 = vsel %vm233, %v472, 0
    %v505 = vsel %vm233, %v473, 0
    %v508 = vsel %vm233, %v474, 0
    %v511 = vsel %vm233, %v475, 0
    %513 = vmatpush.bf16.msra.mxu0 0
    %514 = vmatpush.bf16.msra.mxu0 0
    %515 = vmatpush.bf16.msra.mxu0 0
    %516 = vmatpush.bf16.msra.mxu0 0
    %517 = vmatpush.bf16.msra.mxu0 0
    %518 = vmatpush.bf16.msra.mxu0 0
    %519 = vmatpush.bf16.msra.mxu0 %v495
    %520 = vmatpush.bf16.msra.mxu0 %v493
    %521 = vmatmul.bf16.gmra.mxu0 %v502
    %v522 = vpop.f32.mrf.mxu0
    %v523 = vadd.f32 0.0, %v522
    %v524 = vpop.f32.mrf.mxu0
    %v525 = vadd.f32 0.0, %v524
    %526 = vmatmul.bf16.gmra.mxu0 %v505
    %v527 = vpop.f32.mrf.mxu0
    %v528 = vadd.f32 0.0, %v527
    %v529 = vpop.f32.mrf.mxu0
    %v530 = vadd.f32 0.0, %v529
    %531 = vmatmul.bf16.gmra.mxu0 %v508
    %v532 = vpop.f32.mrf.mxu0
    %v533 = vadd.f32 0.0, %v532
    %v534 = vpop.f32.mrf.mxu0
    %v535 = vadd.f32 0.0, %v534
    %536 = vmatmul.bf16.gmra.mxu0 %v511
    %v537 = vpop.f32.mrf.mxu0
    %v538 = vadd.f32 0.0, %v537
    %v539 = vpop.f32.mrf.mxu0
    %540 = vdwg.mxu0
    %541 = vmatpush.bf16.msra.mxu0 0
    %542 = vmatpush.bf16.msra.mxu0 0
    %543 = vmatpush.bf16.msra.mxu0 0
    %544 = vmatpush.bf16.msra.mxu0 0
    %545 = vmatpush.bf16.msra.mxu0 0
    %546 = vmatpush.bf16.msra.mxu0 0
    %547 = vmatpush.bf16.msra.mxu0 %v496
    %548 = vmatpush.bf16.msra.mxu0 %v494
    %549 = vmatmul.bf16.gmra.mxu0 %v502
    %v550 = vpop.f32.mrf.mxu0
    %v551 = vadd.f32 0.0, %v550
    %v552 = vpop.f32.mrf.mxu0
    %v553 = vadd.f32 0.0, %v552
    %554 = vmatmul.bf16.gmra.mxu0 %v505
    %v555 = vpop.f32.mrf.mxu0
    %v556 = vadd.f32 0.0, %v555
    %v557 = vpop.f32.mrf.mxu0
    %v558 = vadd.f32 0.0, %v557
    %559 = vmatmul.bf16.gmra.mxu0 %v508
    %v560 = vpop.f32.mrf.mxu0
    %v561 = vadd.f32 0.0, %v560
    %v562 = vpop.f32.mrf.mxu0
    %v563 = vadd.f32 0.0, %v562
    %564 = vmatmul.bf16.gmra.mxu0 %v511
    %v565 = vpop.f32.mrf.mxu0
    %v566 = vadd.f32 0.0, %v565
    %v567 = vpop.f32.mrf.mxu0
    %568 = vdwg.mxu0
    %v569 = vadd.f32 %v344, %v523
    %v570 = vadd.f32 %v372, %v551
    %v571 = vadd.f32 %v346, %v525
    %v572 = vadd.f32 %v374, %v553
    %v573 = vadd.f32 %v349, %v528
    %v574 = vadd.f32 %v377, %v556
    %v575 = vadd.f32 %v351, %v530
    %v576 = vadd.f32 %v379, %v558
    %v577 = vadd.f32 %v354, %v533
    %v578 = vadd.f32 %v382, %v561
    %v579 = vadd.f32 %v356, %v535
    %v580 = vadd.f32 %v384, %v563
    %v581 = vadd.f32 %v359, %v538
    %v582 = vadd.f32 %v387, %v566
    %vm583 = vcmask 1040384
    %vm584 = vcmask 1044484
    %vm585 = vmor %vm583, %vm584
    %v586 = vrot.slane %v55, 7
    %v587 = vrot.slane %v586, 4
    %v588 = vrot.slane %v71, 7
    %v589 = vsel %vm585, %v587, %v588
    %v590 = vrot.slane %v588, 4
    %v591 = vrot.slane %v56, 7
    %v592 = vsel %vm585, %v590, %v591
    %v593 = vrot.slane %v591, 4
    %v594 = vrot.slane %v72, 7
    %v595 = vsel %vm585, %v593, %v594
    %v596 = vrot.slane %v594, 4
    %v597 = vrot.slane %v57, 7
    %v598 = vsel %vm585, %v596, %v597
    %v599 = vrot.slane %v597, 4
    %v600 = vrot.slane %v73, 7
    %v601 = vsel %vm585, %v599, %v600
    %v602 = vrot.slane %v600, 4
    %v603 = vrot.slane %v58, 7
    %v604 = vsel %vm585, %v602, %v603
    %v605 = vrot.slane %v603, 4
    %v606 = vrot.slane %v120, 7
    %v607 = vsel %vm585, %v605, %v606
    %v608 = vrot.slane %v59, 7
    %v609 = vrot.slane %v608, 4
    %v610 = vrot.slane %v74, 7
    %v611 = vsel %vm585, %v609, %v610
    %v612 = vrot.slane %v610, 4
    %v613 = vrot.slane %v60, 7
    %v614 = vsel %vm585, %v612, %v613
    %v615 = vrot.slane %v613, 4
    %v616 = vrot.slane %v75, 7
    %v617 = vsel %vm585, %v615, %v616
    %v618 = vrot.slane %v616, 4
    %v619 = vrot.slane %v61, 7
    %v620 = vsel %vm585, %v618, %v619
    %v621 = vrot.slane %v619, 4
    %v622 = vrot.slane %v76, 7
    %v623 = vsel %vm585, %v621, %v622
    %v624 = vrot.slane %v622, 4
    %v625 = vrot.slane %v62, 7
    %v626 = vsel %vm585, %v624, %v625
    %v627 = vrot.slane %v625, 4
    %v628 = vrot.slane %v121, 7
    %v629 = vsel %vm585, %v627, %v628
    %630 = vst [vmem:[#allocation1] ss:$2 sm:$0xff] %v589
    %s631 = scalar_lea.vmem [#allocation1], 1
    %632 = vst [vmem:[%s631] ss:$2 sm:$0xff] %v592
    %s633 = scalar_lea.vmem [#allocation1], 16
    %634 = vst [vmem:[%s633] ss:$2 sm:$0xff] %v595
    %s635 = scalar_lea.vmem [#allocation1], 17
    %636 = vst [vmem:[%s635] ss:$2 sm:$0xff] %v598
    %s637 = scalar_lea.vmem [#allocation1], 32
    %638 = vst [vmem:[%s637] ss:$2 sm:$0xff] %v601
    %s639 = scalar_lea.vmem [#allocation1], 33
    %640 = vst [vmem:[%s639] ss:$2 sm:$0xff] %v604
    %s641 = scalar_lea.vmem [#allocation1], 48
    %642 = vst [vmem:[%s641] ss:$2 sm:$0xff] %v607
    %s643 = scalar_lea.vmem [#allocation1], 49
    %644 = vst [vmem:[%s643] ss:$2 sm:$0xff] %v611
    %v645 = vld.sshfl [vmem:[#allocation1] sm:$0xff pattern:$0x75316420]
    %v646 = vld.sshfl [vmem:[#allocation1 + $0x10] sm:$0xff pattern:$0x75316420]
    %v647 = vld.sshfl [vmem:[#allocation1 + $0x20] sm:$0xff pattern:$0x75316420]
    %v648 = vld.sshfl [vmem:[#allocation1 + $0x30] sm:$0xff pattern:$0x75316420]
    %649 = vst [vmem:[#allocation1] ss:$2 sm:$0xff] %v614
    %650 = vst [vmem:[%s631] ss:$2 sm:$0xff] %v617
    %651 = vst [vmem:[%s633] ss:$2 sm:$0xff] %v620
    %652 = vst [vmem:[%s635] ss:$2 sm:$0xff] %v623
    %653 = vst [vmem:[%s637] ss:$2 sm:$0xff] %v626
    %654 = vst [vmem:[%s639] ss:$2 sm:$0xff] %v629
    %v655 = vld.sshfl [vmem:[#allocation1] sm:$0xff pattern:$0x75316420]
    %v656 = vld.sshfl [vmem:[#allocation1 + $0x10] sm:$0xff pattern:$0x75316420]
    %v657 = vld.sshfl [vmem:[#allocation1 + $0x20] sm:$0xff pattern:$0x75316420]
    %v665 = vpack.c.bf16 %v646, %v645
    %v666 = vpack.c.bf16 %v648, %v647
    %v667 = vpack.c.bf16 %v656, %v655
    %v668 = vpack.c.bf16 %v657, %v657
    %s669 = scalar_lea.vmem %s1, 96
    %v670 = vld [vmem:[%s669] sm:$0xff]
    %v671 = vld [vmem:[%s669 + $0x8] sm:$0xff]
    %v672 = vld [vmem:[%s669 + $0x10] sm:$0xff]
    %v673 = vld [vmem:[%s669 + $0x18] sm:$0xff]
    %v678 = vunpack.c.l.b16 %v670
    %v679 = vunpack.c.h.b16 %v670
    %v680 = vunpack.c.l.b16 %v671
    %v681 = vunpack.c.h.b16 %v671
    %v682 = vunpack.c.l.b16 %v672
    %v683 = vunpack.c.h.b16 %v672
    %v684 = vunpack.c.l.b16 %v673
    %v685 = vunpack.c.h.b16 %v673
    %v686 = vpack.c.b16 %v680, %v678
    %v687 = vpack.c.b16 %v681, %v679
    %v688 = vpack.c.b16 %v684, %v682
    %v689 = vpack.c.b16 %v685, %v683
    %v695 = vsel %vm233, %v665, 0
    %v698 = vsel %vm233, %v666, 0
    %v701 = vsel %vm233, %v667, 0
    %v704 = vsel %vm233, %v668, 0
    %706 = vmatpush.bf16.msra.mxu0 0
    %707 = vmatpush.bf16.msra.mxu0 0
    %708 = vmatpush.bf16.msra.mxu0 0
    %709 = vmatpush.bf16.msra.mxu0 0
    %710 = vmatpush.bf16.msra.mxu0 0
    %711 = vmatpush.bf16.msra.mxu0 0
    %712 = vmatpush.bf16.msra.mxu0 %v688
    %713 = vmatpush.bf16.msra.mxu0 %v686
    %714 = vmatmul.bf16.gmra.mxu0 %v695
    %v715 = vpop.f32.mrf.mxu0
    %v716 = vadd.f32 0.0, %v715
    %v717 = vpop.f32.mrf.mxu0
    %v718 = vadd.f32 0.0, %v717
    %719 = vmatmul.bf16.gmra.mxu0 %v698
    %v720 = vpop.f32.mrf.mxu0
    %v721 = vadd.f32 0.0, %v720
    %v722 = vpop.f32.mrf.mxu0
    %v723 = vadd.f32 0.0, %v722
    %724 = vmatmul.bf16.gmra.mxu0 %v701
    %v725 = vpop.f32.mrf.mxu0
    %v726 = vadd.f32 0.0, %v725
    %v727 = vpop.f32.mrf.mxu0
    %v728 = vadd.f32 0.0, %v727
    %729 = vmatmul.bf16.gmra.mxu0 %v704
    %v730 = vpop.f32.mrf.mxu0
    %v731 = vadd.f32 0.0, %v730
    %v732 = vpop.f32.mrf.mxu0
    %733 = vdwg.mxu0
    %734 = vmatpush.bf16.msra.mxu0 0
    %735 = vmatpush.bf16.msra.mxu0 0
    %736 = vmatpush.bf16.msra.mxu0 0
    %737 = vmatpush.bf16.msra.mxu0 0
    %738 = vmatpush.bf16.msra.mxu0 0
    %739 = vmatpush.bf16.msra.mxu0 0
    %740 = vmatpush.bf16.msra.mxu0 %v689
    %741 = vmatpush.bf16.msra.mxu0 %v687
    %742 = vmatmul.bf16.gmra.mxu0 %v695
    %v743 = vpop.f32.mrf.mxu0
    %v744 = vadd.f32 0.0, %v743
    %v745 = vpop.f32.mrf.mxu0
    %v746 = vadd.f32 0.0, %v745
    %747 = vmatmul.bf16.gmra.mxu0 %v698
    %v748 = vpop.f32.mrf.mxu0
    %v749 = vadd.f32 0.0, %v748
    %v750 = vpop.f32.mrf.mxu0
    %v751 = vadd.f32 0.0, %v750
    %752 = vmatmul.bf16.gmra.mxu0 %v701
    %v753 = vpop.f32.mrf.mxu0
    %v754 = vadd.f32 0.0, %v753
    %v755 = vpop.f32.mrf.mxu0
    %v756 = vadd.f32 0.0, %v755
    %757 = vmatmul.bf16.gmra.mxu0 %v704
    %v758 = vpop.f32.mrf.mxu0
    %v759 = vadd.f32 0.0, %v758
    %v760 = vpop.f32.mrf.mxu0
    %761 = vdwg.mxu0
    %v762 = vadd.f32 %v569, %v716
    %v763 = vadd.f32 %v570, %v744
    %v764 = vadd.f32 %v571, %v718
    %v765 = vadd.f32 %v572, %v746
    %v766 = vadd.f32 %v573, %v721
    %v767 = vadd.f32 %v574, %v749
    %v768 = vadd.f32 %v575, %v723
    %v769 = vadd.f32 %v576, %v751
    %v770 = vadd.f32 %v577, %v726
    %v771 = vadd.f32 %v578, %v754
    %v772 = vadd.f32 %v579, %v728
    %v773 = vadd.f32 %v580, %v756
    %v774 = vadd.f32 %v581, %v731
    %v775 = vadd.f32 %v582, %v759
    %776 = vst.sshfl [vmem:[#allocation1] sm:$0xff pattern:$0x75316420] %v55
    %777 = vst.sshfl [vmem:[#allocation1 + $0x10] sm:$0xff pattern:$0x75316420] %v56
    %778 = vst.sshfl [vmem:[#allocation1 + $0x20] sm:$0xff pattern:$0x75316420] %v57
    %779 = vst.sshfl [vmem:[#allocation1 + $0x30] sm:$0xff pattern:$0x75316420] %v58
    %s780 = scalar_lea.vmem [#allocation1], 1
    %v781 = vld [vmem:[%s780] ss:$2 sm:$0xff]
    %s782 = scalar_lea.vmem [#allocation1], 16
    %v783 = vld [vmem:[%s782] ss:$2 sm:$0xff]
    %s784 = scalar_lea.vmem [#allocation1], 17
    %v785 = vld [vmem:[%s784] ss:$2 sm:$0xff]
    %s786 = scalar_lea.vmem [#allocation1], 32
    %v787 = vld [vmem:[%s786] ss:$2 sm:$0xff]
    %s788 = scalar_lea.vmem [#allocation1], 33
    %v789 = vld [vmem:[%s788] ss:$2 sm:$0xff]
    %s790 = scalar_lea.vmem [#allocation1], 48
    %v791 = vld [vmem:[%s790] ss:$2 sm:$0xff]
    %s792 = scalar_lea.vmem [#allocation1], 49
    %v793 = vld [vmem:[%s792] ss:$2 sm:$0xff]
    %794 = vst.sshfl [vmem:[#allocation1] sm:$0xff pattern:$0x75316420] %v59
    %795 = vst.sshfl [vmem:[#allocation1 + $0x10] sm:$0xff pattern:$0x75316420] %v60
    %796 = vst.sshfl [vmem:[#allocation1 + $0x20] sm:$0xff pattern:$0x75316420] %v61
    %797 = vst.sshfl [vmem:[#allocation1 + $0x30] sm:$0xff pattern:$0x75316420] %v62
    %v798 = vld [vmem:[%s780] ss:$2 sm:$0xff]
    %v799 = vld [vmem:[%s782] ss:$2 sm:$0xff]
    %v800 = vld [vmem:[%s784] ss:$2 sm:$0xff]
    %v801 = vld [vmem:[%s786] ss:$2 sm:$0xff]
    %v802 = vld [vmem:[%s788] ss:$2 sm:$0xff]
    %v803 = vld [vmem:[%s790] ss:$2 sm:$0xff]
    %v804 = vld [vmem:[%s792] ss:$2 sm:$0xff]
    %805 = vst [vmem:[#allocation1] ss:$2 sm:$0xff] %v781
    %s806 = scalar_lea.vmem [#allocation1], 1
    %807 = vst [vmem:[%s806] ss:$2 sm:$0xff] %v783
    %s808 = scalar_lea.vmem [#allocation1], 16
    %809 = vst [vmem:[%s808] ss:$2 sm:$0xff] %v785
    %s810 = scalar_lea.vmem [#allocation1], 17
    %811 = vst [vmem:[%s810] ss:$2 sm:$0xff] %v787
    %s812 = scalar_lea.vmem [#allocation1], 32
    %813 = vst [vmem:[%s812] ss:$2 sm:$0xff] %v789
    %s814 = scalar_lea.vmem [#allocation1], 33
    %815 = vst [vmem:[%s814] ss:$2 sm:$0xff] %v791
    %s816 = scalar_lea.vmem [#allocation1], 48
    %817 = vst [vmem:[%s816] ss:$2 sm:$0xff] %v793
    %s818 = scalar_lea.vmem [#allocation1], 49
    %819 = vst [vmem:[%s818] ss:$2 sm:$0xff] %v798
    %v820 = vld.sshfl [vmem:[#allocation1] sm:$0xff pattern:$0x75316420]
    %v821 = vld.sshfl [vmem:[#allocation1 + $0x10] sm:$0xff pattern:$0x75316420]
    %v822 = vld.sshfl [vmem:[#allocation1 + $0x20] sm:$0xff pattern:$0x75316420]
    %v823 = vld.sshfl [vmem:[#allocation1 + $0x30] sm:$0xff pattern:$0x75316420]
    %824 = vst [vmem:[#allocation1] ss:$2 sm:$0xff] %v799
    %825 = vst [vmem:[%s806] ss:$2 sm:$0xff] %v800
    %826 = vst [vmem:[%s808] ss:$2 sm:$0xff] %v801
    %827 = vst [vmem:[%s810] ss:$2 sm:$0xff] %v802
    %828 = vst [vmem:[%s812] ss:$2 sm:$0xff] %v803
    %829 = vst [vmem:[%s814] ss:$2 sm:$0xff] %v804
    %v830 = vld.sshfl [vmem:[#allocation1] sm:$0xff pattern:$0x75316420]
    %v831 = vld.sshfl [vmem:[#allocation1 + $0x10] sm:$0xff pattern:$0x75316420]
    %v832 = vld.sshfl [vmem:[#allocation1 + $0x20] sm:$0xff pattern:$0x75316420]
    %v840 = vpack.c.bf16 %v821, %v820
    %v841 = vpack.c.bf16 %v823, %v822
    %v842 = vpack.c.bf16 %v831, %v830
    %v843 = vpack.c.bf16 %v832, %v832
    %s844 = scalar_lea.vmem %s1, 128
    %v845 = vld [vmem:[%s844] sm:$0xff]
    %v846 = vld [vmem:[%s844 + $0x8] sm:$0xff]
    %v847 = vld [vmem:[%s844 + $0x10] sm:$0xff]
    %v848 = vld [vmem:[%s844 + $0x18] sm:$0xff]
    %v853 = vunpack.c.l.b16 %v845
    %v854 = vunpack.c.h.b16 %v845
    %v855 = vunpack.c.l.b16 %v846
    %v856 = vunpack.c.h.b16 %v846
    %v857 = vunpack.c.l.b16 %v847
    %v858 = vunpack.c.h.b16 %v847
    %v859 = vunpack.c.l.b16 %v848
    %v860 = vunpack.c.h.b16 %v848
    %v861 = vpack.c.b16 %v855, %v853
    %v862 = vpack.c.b16 %v856, %v854
    %v863 = vpack.c.b16 %v859, %v857
    %v864 = vpack.c.b16 %v860, %v858
    %v870 = vsel %vm233, %v840, 0
    %v873 = vsel %vm233, %v841, 0
    %v876 = vsel %vm233, %v842, 0
    %v879 = vsel %vm233, %v843, 0
    %881 = vmatpush.bf16.msra.mxu0 0
    %882 = vmatpush.bf16.msra.mxu0 0
    %883 = vmatpush.bf16.msra.mxu0 0
    %884 = vmatpush.bf16.msra.mxu0 0
    %885 = vmatpush.bf16.msra.mxu0 0
    %886 = vmatpush.bf16.msra.mxu0 0
    %887 = vmatpush.bf16.msra.mxu0 %v863
    %888 = vmatpush.bf16.msra.mxu0 %v861
    %889 = vmatmul.bf16.gmra.mxu0 %v870
    %v890 = vpop.f32.mrf.mxu0
    %v891 = vadd.f32 0.0, %v890
    %v892 = vpop.f32.mrf.mxu0
    %v893 = vadd.f32 0.0, %v892
    %894 = vmatmul.bf16.gmra.mxu0 %v873
    %v895 = vpop.f32.mrf.mxu0
    %v896 = vadd.f32 0.0, %v895
    %v897 = vpop.f32.mrf.mxu0
    %v898 = vadd.f32 0.0, %v897
    %899 = vmatmul.bf16.gmra.mxu0 %v876
    %v900 = vpop.f32.mrf.mxu0
    %v901 = vadd.f32 0.0, %v900
    %v902 = vpop.f32.mrf.mxu0
    %v903 = vadd.f32 0.0, %v902
    %904 = vmatmul.bf16.gmra.mxu0 %v879
    %v905 = vpop.f32.mrf.mxu0
    %v906 = vadd.f32 0.0, %v905
    %v907 = vpop.f32.mrf.mxu0
    %908 = vdwg.mxu0
    %909 = vmatpush.bf16.msra.mxu0 0
    %910 = vmatpush.bf16.msra.mxu0 0
    %911 = vmatpush.bf16.msra.mxu0 0
    %912 = vmatpush.bf16.msra.mxu0 0
    %913 = vmatpush.bf16.msra.mxu0 0
    %914 = vmatpush.bf16.msra.mxu0 0
    %915 = vmatpush.bf16.msra.mxu0 %v864
    %916 = vmatpush.bf16.msra.mxu0 %v862
    %917 = vmatmul.bf16.gmra.mxu0 %v870
    %v918 = vpop.f32.mrf.mxu0
    %v919 = vadd.f32 0.0, %v918
    %v920 = vpop.f32.mrf.mxu0
    %v921 = vadd.f32 0.0, %v920
    %922 = vmatmul.bf16.gmra.mxu0 %v873
    %v923 = vpop.f32.mrf.mxu0
    %v924 = vadd.f32 0.0, %v923
    %v925 = vpop.f32.mrf.mxu0
    %v926 = vadd.f32 0.0, %v925
    %927 = vmatmul.bf16.gmra.mxu0 %v876
    %v928 = vpop.f32.mrf.mxu0
    %v929 = vadd.f32 0.0, %v928
    %v930 = vpop.f32.mrf.mxu0
    %v931 = vadd.f32 0.0, %v930
    %932 = vmatmul.bf16.gmra.mxu0 %v879
    %v933 = vpop.f32.mrf.mxu0
    %v934 = vadd.f32 0.0, %v933
    %v935 = vpop.f32.mrf.mxu0
    %936 = vdwg.mxu0
    %v937 = vadd.f32 %v762, %v891
    %v938 = vadd.f32 %v763, %v919
    %v939 = vadd.f32 %v764, %v893
    %v940 = vadd.f32 %v765, %v921
    %v941 = vadd.f32 %v766, %v896
    %v942 = vadd.f32 %v767, %v924
    %v943 = vadd.f32 %v768, %v898
    %v944 = vadd.f32 %v769, %v926
    %v945 = vadd.f32 %v770, %v901
    %v946 = vadd.f32 %v771, %v929
    %v947 = vadd.f32 %v772, %v903
    %v948 = vadd.f32 %v773, %v931
    %v949 = vadd.f32 %v774, %v906
    %v950 = vadd.f32 %v775, %v934
    %v951 = vld [vmem:[%s2] sm:$0x3]
    %v953 = vperm.slane %v951, 0
    %v954 = vperm.slane %v951, 1
    %v957 = vadd.f32 %v937, %v953
    %v958 = vadd.f32 %v938, %v954
    %v959 = vadd.f32 %v939, %v953
    %v960 = vadd.f32 %v940, %v954
    %v961 = vadd.f32 %v941, %v953
    %v962 = vadd.f32 %v942, %v954
    %v963 = vadd.f32 %v943, %v953
    %v964 = vadd.f32 %v944, %v954
    %v965 = vadd.f32 %v945, %v953
    %v966 = vadd.f32 %v946, %v954
    %v967 = vadd.f32 %v947, %v953
    %v968 = vadd.f32 %v948, %v954
    %v969 = vadd.f32 %v949, %v953
    %v970 = vadd.f32 %v950, %v954
    %v971 = vmax.f32 %v957, 0.0
    %v972 = vmax.f32 %v958, 0.0
    %v973 = vmax.f32 %v959, 0.0
    %v974 = vmax.f32 %v960, 0.0
    %v975 = vmax.f32 %v961, 0.0
    %v976 = vmax.f32 %v962, 0.0
    %v977 = vmax.f32 %v963, 0.0
    %v978 = vmax.f32 %v964, 0.0
    %v979 = vmax.f32 %v965, 0.0
    %v980 = vmax.f32 %v966, 0.0
    %v981 = vmax.f32 %v967, 0.0
    %v982 = vmax.f32 %v968, 0.0
    %v983 = vmax.f32 %v969, 0.0
    %v984 = vmax.f32 %v970, 0.0
    %v985 = vld [vmem:[%s3] sm:$0xff]
    %v986 = vld [vmem:[%s3 + $0x8] sm:$0xff]
    %v987 = vld [vmem:[%s3 + $0x10] sm:$0xff]
    %v988 = vld [vmem:[%s3 + $0x18] sm:$0xff]
    %v989 = vld [vmem:[%s3 + $0x20] sm:$0xff]
    %v990 = vld [vmem:[%s3 + $0x28] sm:$0xff]
    %v991 = vld [vmem:[%s3 + $0x30] sm:$0xff]
    %v992 = vld [vmem:[%s3 + $0x38] sm:$0xff]
    %v993 = vld [vmem:[%s3 + $0x40] sm:$0xff]
    %v994 = vld [vmem:[%s3 + $0x48] sm:$0xff]
    %v995 = vld [vmem:[%s3 + $0x50] sm:$0xff]
    %v996 = vld [vmem:[%s3 + $0x58] sm:$0xff]
    %v997 = vld [vmem:[%s3 + $0x60] sm:$0xff]
    %v998 = vld [vmem:[%s3 + $0x68] sm:$0xff]
    %v999 = vld [vmem:[%s3 + $0x70] sm:$0xff]
    %v1000 = vld [vmem:[%s3 + $0x78] sm:$0xff]
    %v1001 = vld [vmem:[%s3 + $0x80] sm:$0xff]
    %v1002 = vld [vmem:[%s3 + $0x88] sm:$0xff]
    %v1003 = vld [vmem:[%s3 + $0x90] sm:$0xff]
    %v1004 = vld [vmem:[%s3 + $0x98] sm:$0xff]
    %v1005 = vld [vmem:[%s3 + $0xa0] sm:$0xff]
    %vm1006 = vcmask 326656
    %v1008 = vsel %vm1006, %v972, 0
    %v1011 = vsel %vm1006, %v974, 0
    %v1014 = vsel %vm1006, %v976, 0
    %v1017 = vsel %vm1006, %v978, 0
    %v1020 = vsel %vm1006, %v980, 0
    %v1023 = vsel %vm1006, %v982, 0
    %v1026 = vsel %vm1006, %v984, 0
    %1028 = vmatpush.msra.mxu0 %v1000
    %1029 = vmatpush.msra.mxu0 %v999
    %1030 = vmatpush.msra.mxu0 %v998
    %1031 = vmatpush.msra.mxu0 %v997
    %1032 = vmatpush.msra.mxu0 %v996
    %1033 = vmatpush.msra.mxu0 %v995
    %1034 = vmatpush.msra.mxu0 %v994
    %1035 = vmatpush.msra.mxu0 %v993
    %1036 = vmatpush.msra.mxu0 %v992
    %1037 = vmatpush.msra.mxu0 %v991
    %1038 = vmatpush.msra.mxu0 %v990
    %1039 = vmatpush.msra.mxu0 %v989
    %1040 = vmatpush.msra.mxu0 %v988
    %1041 = vmatpush.msra.mxu0 %v987
    %1042 = vmatpush.msra.mxu0 %v986
    %1043 = vmatpush.msra.mxu0 %v985
    %1044 = vmatmul.f32.gmra.mxu0 %v971
    %v1045 = vpop.f32.mrf.mxu0
    %v1046 = vadd.f32 0.0, %v1045
    %1047 = vmatmul.f32.gmra.mxu0 %v973
    %v1048 = vpop.f32.mrf.mxu0
    %v1049 = vadd.f32 0.0, %v1048
    %1050 = vmatmul.f32.gmra.mxu0 %v975
    %v1051 = vpop.f32.mrf.mxu0
    %v1052 = vadd.f32 0.0, %v1051
    %1053 = vmatmul.f32.gmra.mxu0 %v977
    %v1054 = vpop.f32.mrf.mxu0
    %v1055 = vadd.f32 0.0, %v1054
    %1056 = vmatmul.f32.gmra.mxu0 %v979
    %v1057 = vpop.f32.mrf.mxu0
    %v1058 = vadd.f32 0.0, %v1057
    %1059 = vmatmul.f32.gmra.mxu0 %v981
    %v1060 = vpop.f32.mrf.mxu0
    %v1061 = vadd.f32 0.0, %v1060
    %1062 = vmatmul.f32.gmra.mxu0 %v983
    %v1063 = vpop.f32.mrf.mxu0
    %v1064 = vadd.f32 0.0, %v1063
    %1065 = vdwg.mxu0
    %1066 = vmatpush.msra.mxu0 0.0
    %1067 = vmatpush.msra.mxu0 0.0
    %1068 = vmatpush.msra.mxu0 0.0
    %1069 = vmatpush.msra.mxu0 0.0
    %1070 = vmatpush.msra.mxu0 0.0
    %1071 = vmatpush.msra.mxu0 0.0
    %1072 = vmatpush.msra.mxu0 0.0
    %1073 = vmatpush.msra.mxu0 0.0
    %1074 = vmatpush.msra.mxu0 0.0
    %1075 = vmatpush.msra.mxu0 0.0
    %1076 = vmatpush.msra.mxu0 0.0
    %1077 = vmatpush.msra.mxu0 %v1005
    %1078 = vmatpush.msra.mxu0 %v1004
    %1079 = vmatpush.msra.mxu0 %v1003
    %1080 = vmatpush.msra.mxu0 %v1002
    %1081 = vmatpush.msra.mxu0 %v1001
    %1082 = vmatmul.f32.gmra.mxu0 %v1008
    %v1083 = vpop.f32.mrf.mxu0
    %v1084 = vadd.f32 %v1046, %v1083
    %1085 = vmatmul.f32.gmra.mxu0 %v1011
    %v1086 = vpop.f32.mrf.mxu0
    %v1087 = vadd.f32 %v1049, %v1086
    %1088 = vmatmul.f32.gmra.mxu0 %v1014
    %v1089 = vpop.f32.mrf.mxu0
    %v1090 = vadd.f32 %v1052, %v1089
    %1091 = vmatmul.f32.gmra.mxu0 %v1017
    %v1092 = vpop.f32.mrf.mxu0
    %v1093 = vadd.f32 %v1055, %v1092
    %1094 = vmatmul.f32.gmra.mxu0 %v1020
    %v1095 = vpop.f32.mrf.mxu0
    %v1096 = vadd.f32 %v1058, %v1095
    %1097 = vmatmul.f32.gmra.mxu0 %v1023
    %v1098 = vpop.f32.mrf.mxu0
    %v1099 = vadd.f32 %v1061, %v1098
    %1100 = vmatmul.f32.gmra.mxu0 %v1026
    %v1101 = vpop.f32.mrf.mxu0
    %v1102 = vadd.f32 %v1064, %v1101
    %1103 = vdwg.mxu0
    %s1104 = scalar_lea.vmem %s3, 168
    %v1105 = vld [vmem:[%s1104] sm:$0xff]
    %v1106 = vld [vmem:[%s1104 + $0x8] sm:$0xff]
    %v1107 = vld [vmem:[%s1104 + $0x10] sm:$0xff]
    %v1108 = vld [vmem:[%s1104 + $0x18] sm:$0xff]
    %v1109 = vld [vmem:[%s1104 + $0x20] sm:$0xff]
    %v1110 = vld [vmem:[%s1104 + $0x28] sm:$0xff]
    %v1111 = vld [vmem:[%s1104 + $0x30] sm:$0xff]
    %v1112 = vld [vmem:[%s1104 + $0x38] sm:$0xff]
    %v1113 = vld [vmem:[%s1104 + $0x40] sm:$0xff]
    %v1114 = vld [vmem:[%s1104 + $0x48] sm:$0xff]
    %v1115 = vld [vmem:[%s1104 + $0x50] sm:$0xff]
    %v1116 = vld [vmem:[%s1104 + $0x58] sm:$0xff]
    %v1117 = vld [vmem:[%s1104 + $0x60] sm:$0xff]
    %v1118 = vld [vmem:[%s1104 + $0x68] sm:$0xff]
    %v1119 = vld [vmem:[%s1104 + $0x70] sm:$0xff]
    %v1120 = vld [vmem:[%s1104 + $0x78] sm:$0xff]
    %v1121 = vld [vmem:[%s1104 + $0x80] sm:$0xff]
    %v1122 = vld [vmem:[%s1104 + $0x88] sm:$0xff]
    %v1123 = vld [vmem:[%s1104 + $0x90] sm:$0xff]
    %v1124 = vld [vmem:[%s1104 + $0x98] sm:$0xff]
    %v1125 = vld [vmem:[%s1104 + $0xa0] sm:$0xff]
    %1126 = vmatpush.msra.mxu0 %v1120
    %1127 = vmatpush.msra.mxu0 %v1119
    %1128 = vmatpush.msra.mxu0 %v1118
    %1129 = vmatpush.msra.mxu0 %v1117
    %1130 = vmatpush.msra.mxu0 %v1116
    %1131 = vmatpush.msra.mxu0 %v1115
    %1132 = vmatpush.msra.mxu0 %v1114
    %1133 = vmatpush.msra.mxu0 %v1113
    %1134 = vmatpush.msra.mxu0 %v1112
    %1135 = vmatpush.msra.mxu0 %v1111
    %1136 = vmatpush.msra.mxu0 %v1110
    %1137 = vmatpush.msra.mxu0 %v1109
    %1138 = vmatpush.msra.mxu0 %v1108
    %1139 = vmatpush.msra.mxu0 %v1107
    %1140 = vmatpush.msra.mxu0 %v1106
    %1141 = vmatpush.msra.mxu0 %v1105
    %1142 = vmatmul.f32.gmra.mxu0 %v971
    %v1143 = vpop.f32.mrf.mxu0
    %v1144 = vadd.f32 0.0, %v1143
    %1145 = vmatmul.f32.gmra.mxu0 %v973
    %v1146 = vpop.f32.mrf.mxu0
    %v1147 = vadd.f32 0.0, %v1146
    %1148 = vmatmul.f32.gmra.mxu0 %v975
    %v1149 = vpop.f32.mrf.mxu0
    %v1150 = vadd.f32 0.0, %v1149
    %1151 = vmatmul.f32.gmra.mxu0 %v977
    %v1152 = vpop.f32.mrf.mxu0
    %v1153 = vadd.f32 0.0, %v1152
    %1154 = vmatmul.f32.gmra.mxu0 %v979
    %v1155 = vpop.f32.mrf.mxu0
    %v1156 = vadd.f32 0.0, %v1155
    %1157 = vmatmul.f32.gmra.mxu0 %v981
    %v1158 = vpop.f32.mrf.mxu0
    %v1159 = vadd.f32 0.0, %v1158
    %1160 = vmatmul.f32.gmra.mxu0 %v983
    %v1161 = vpop.f32.mrf.mxu0
    %v1162 = vadd.f32 0.0, %v1161
    %1163 = vdwg.mxu0
    %1164 = vmatpush.msra.mxu0 0.0
    %1165 = vmatpush.msra.mxu0 0.0
    %1166 = vmatpush.msra.mxu0 0.0
    %1167 = vmatpush.msra.mxu0 0.0
    %1168 = vmatpush.msra.mxu0 0.0
    %1169 = vmatpush.msra.mxu0 0.0
    %1170 = vmatpush.msra.mxu0 0.0
    %1171 = vmatpush.msra.mxu0 0.0
    %1172 = vmatpush.msra.mxu0 0.0
    %1173 = vmatpush.msra.mxu0 0.0
    %1174 = vmatpush.msra.mxu0 0.0
    %1175 = vmatpush.msra.mxu0 %v1125
    %1176 = vmatpush.msra.mxu0 %v1124
    %1177 = vmatpush.msra.mxu0 %v1123
    %1178 = vmatpush.msra.mxu0 %v1122
    %1179 = vmatpush.msra.mxu0 %v1121
    %1180 = vmatmul.f32.gmra.mxu0 %v1008
    %v1181 = vpop.f32.mrf.mxu0
    %v1182 = vadd.f32 %v1144, %v1181
    %1183 = vmatmul.f32.gmra.mxu0 %v1011
    %v1184 = vpop.f32.mrf.mxu0
    %v1185 = vadd.f32 %v1147, %v1184
    %1186 = vmatmul.f32.gmra.mxu0 %v1014
    %v1187 = vpop.f32.mrf.mxu0
    %v1188 = vadd.f32 %v1150, %v1187
    %1189 = vmatmul.f32.gmra.mxu0 %v1017
    %v1190 = vpop.f32.mrf.mxu0
    %v1191 = vadd.f32 %v1153, %v1190
    %1192 = vmatmul.f32.gmra.mxu0 %v1020
    %v1193 = vpop.f32.mrf.mxu0
    %v1194 = vadd.f32 %v1156, %v1193
    %1195 = vmatmul.f32.gmra.mxu0 %v1023
    %v1196 = vpop.f32.mrf.mxu0
    %v1197 = vadd.f32 %v1159, %v1196
    %1198 = vmatmul.f32.gmra.mxu0 %v1026
    %v1199 = vpop.f32.mrf.mxu0
    %v1200 = vadd.f32 %v1162, %v1199
    %1201 = vdwg.mxu0
    %v1202 = vmax.f32 %v1084, %v1182
    %v1203 = vmax.f32 %v1087, %v1185
    %v1204 = vmax.f32 %v1090, %v1188
    %v1205 = vmax.f32 %v1093, %v1191
    %v1206 = vmax.f32 %v1096, %v1194
    %v1207 = vmax.f32 %v1099, %v1197
    %v1208 = vmax.f32 %v1102, %v1200
    %v1209 = vld [vmem:[%s4] sm:$0xff]
    %v1210 = vld [vmem:[%s4 + $0x8] sm:$0xff]
    %v1211 = vld [vmem:[%s4 + $0x10] sm:$0xff]
    %v1212 = vld [vmem:[%s4 + $0x18] sm:$0xf]
    %vm1213 = vcmask 457728
    %v1215 = vsel %vm1213, %v1209, 0
    %v1218 = vsel %vm1213, %v1210, 0
    %v1221 = vsel %vm1213, %v1211, 0
    %v1224 = vsel %vm1213, %v1212, 0
    %1226 = vmatpush.msra.mxu0 0.0
    %1227 = vmatpush.msra.mxu0 0.0
    %1228 = vmatpush.msra.mxu0 0.0
    %1229 = vmatpush.msra.mxu0 0.0
    %1230 = vmatpush.msra.mxu0 0.0
    %1231 = vmatpush.msra.mxu0 0.0
    %1232 = vmatpush.msra.mxu0 0.0
    %1233 = vmatpush.msra.mxu0 0.0
    %1234 = vmatpush.msra.mxu0 0.0
    %1235 = vmatpush.msra.mxu0 %v1208
    %1236 = vmatpush.msra.mxu0 %v1207
    %1237 = vmatpush.msra.mxu0 %v1206
    %1238 = vmatpush.msra.mxu0 %v1205
    %1239 = vmatpush.msra.mxu0 %v1204
    %1240 = vmatpush.msra.mxu0 %v1203
    %1241 = vmatpush.msra.mxu0 %v1202
    %1242 = vmatmul.f32.gmra.mxu0 %v1215
    %v1243 = vpop.f32.mrf.mxu0
    %v1244 = vadd.f32 0.0, %v1243
    %1245 = vmatmul.f32.gmra.mxu0 %v1218
    %v1246 = vpop.f32.mrf.mxu0
    %v1247 = vadd.f32 0.0, %v1246
    %1248 = vmatmul.f32.gmra.mxu0 %v1221
    %v1249 = vpop.f32.mrf.mxu0
    %v1250 = vadd.f32 0.0, %v1249
    %1251 = vmatmul.f32.gmra.mxu0 %v1224
    %v1252 = vpop.f32.mrf.mxu0
    %v1253 = vadd.f32 0.0, %v1252
    %1254 = vdwg.mxu0
    %s1255 = scalar_lea.vmem %s4, 32
    %v1256 = vld [vmem:[%s1255] sm:$0xff]
    %v1257 = vld [vmem:[%s1255 + $0x8] sm:$0xff]
    %v1258 = vld [vmem:[%s1255 + $0x10] sm:$0xff]
    %v1259 = vld [vmem:[%s1255 + $0x18] sm:$0xf]
    %v1261 = vsel %vm1213, %v1256, 0
    %v1264 = vsel %vm1213, %v1257, 0
    %v1267 = vsel %vm1213, %v1258, 0
    %v1270 = vsel %vm1213, %v1259, 0
    %1272 = vmatpush.msra.mxu0 0.0
    %1273 = vmatpush.msra.mxu0 0.0
    %1274 = vmatpush.msra.mxu0 0.0
    %1275 = vmatpush.msra.mxu0 0.0
    %1276 = vmatpush.msra.mxu0 0.0
    %1277 = vmatpush.msra.mxu0 0.0
    %1278 = vmatpush.msra.mxu0 0.0
    %1279 = vmatpush.msra.mxu0 0.0
    %1280 = vmatpush.msra.mxu0 0.0
    %1281 = vmatpush.msra.mxu0 %v1208
    %1282 = vmatpush.msra.mxu0 %v1207
    %1283 = vmatpush.msra.mxu0 %v1206
    %1284 = vmatpush.msra.mxu0 %v1205
    %1285 = vmatpush.msra.mxu0 %v1204
    %1286 = vmatpush.msra.mxu0 %v1203
    %1287 = vmatpush.msra.mxu0 %v1202
    %1288 = vmatmul.f32.gmra.mxu0 %v1261
    %v1289 = vpop.f32.mrf.mxu0
    %v1290 = vadd.f32 0.0, %v1289
    %1291 = vmatmul.f32.gmra.mxu0 %v1264
    %v1292 = vpop.f32.mrf.mxu0
    %v1293 = vadd.f32 0.0, %v1292
    %1294 = vmatmul.f32.gmra.mxu0 %v1267
    %v1295 = vpop.f32.mrf.mxu0
    %v1296 = vadd.f32 0.0, %v1295
    %1297 = vmatmul.f32.gmra.mxu0 %v1270
    %v1298 = vpop.f32.mrf.mxu0
    %v1299 = vadd.f32 0.0, %v1298
    %1300 = vdwg.mxu0
    %v1301 = vmax.f32 %v1244, %v1290
    %v1302 = vmax.f32 %v1247, %v1293
    %v1303 = vmax.f32 %v1250, %v1296
    %v1304 = vmax.f32 %v1253, %v1299
    %v1309 = vrot.slane %v1301, 2
    %v1310 = vrot.slane %v1301, 4
    %v1311 = vrot.slane %v1301, 6
    %v1312 = vrot.slane %v1302, 2
    %v1313 = vrot.slane %v1302, 4
    %v1314 = vrot.slane %v1302, 6
    %v1315 = vrot.slane %v1303, 2
    %v1316 = vrot.slane %v1303, 4
    %v1317 = vrot.slane %v1303, 6
    %v1318 = vrot.slane %v1304, 2
    %1319 = vst [vmem:[#allocation1] ss:$4 sm:$0xff] %v1301
    %s1320 = scalar_lea.vmem [#allocation1], 1
    %1321 = vst [vmem:[%s1320] ss:$4 sm:$0xff] %v1309
    %s1322 = scalar_lea.vmem [#allocation1], 2
    %1323 = vst [vmem:[%s1322] ss:$4 sm:$0xff] %v1310
    %s1324 = scalar_lea.vmem [#allocation1], 3
    %1325 = vst [vmem:[%s1324] ss:$4 sm:$0xff] %v1311
    %s1326 = scalar_lea.vmem [#allocation1], 32
    %1327 = vst [vmem:[%s1326] ss:$4 sm:$0xff] %v1302
    %s1328 = scalar_lea.vmem [#allocation1], 33
    %1329 = vst [vmem:[%s1328] ss:$4 sm:$0xff] %v1314
    %s1330 = scalar_lea.vmem [#allocation1], 34
    %1331 = vst [vmem:[%s1330] ss:$4 sm:$0xff] %v1303
    %s1332 = scalar_lea.vmem [#allocation1], 35
    %1333 = vst [vmem:[%s1332] ss:$4 sm:$0xff] %v1315
    %v1334 = vld.sshfl [vmem:[#allocation1] sm:$0xff pattern:$0x73625140]
    %v1335 = vld.sshfl [vmem:[#allocation1 + $0x20] sm:$0xff pattern:$0x73625140]
    %1336 = vst [vmem:[#allocation1] ss:$4 sm:$0xff] %v1316
    %1337 = vst [vmem:[%s1320] ss:$4 sm:$0xff] %v1317
    %v1338 = vld.sshfl [vmem:[#allocation1] sm:$0xff pattern:$0x73625140]
    %v1342 = vpack.c.bf16 %v1335, %v1334
    %v1343 = vpack.c.bf16 %v1338, %v1338
    %v1344 = vld [vmem:[%s5] sm:$0xff]
    %v1345 = vld [vmem:[%s5 + $0x8] sm:$0xff]
    %v1346 = vld [vmem:[%s5 + $0x10] sm:$0xff]
    %v1347 = vld [vmem:[%s5 + $0x18] sm:$0xff]
    %v1348 = vld [vmem:[%s5 + $0x20] sm:$0xff]
    %v1349 = vld [vmem:[%s5 + $0x28] sm:$0xff]
    %v1350 = vld [vmem:[%s5 + $0x30] sm:$0xff]
    %v1351 = vld [vmem:[%s5 + $0x38] sm:$0xff]
    %v1352 = vld [vmem:[%s5 + $0x40] sm:$0xff]
    %v1353 = vld [vmem:[%s5 + $0x48] sm:$0xff]
    %v1354 = vld [vmem:[%s5 + $0x50] sm:$0x33]
    %vm1355 = vcmask 1042434
    %vm1356 = vmor %vm583, %vm1355
    %vm1357 = vmor %vm1356, %vm584
    %vm1358 = vcmask 1046534
    %vm1359 = vmor %vm1357, %vm1358
    %v1360 = vrot.slane %v1301, 7
    %v1361 = vrot.slane %v1360, 2
    %v1362 = vrot.slane %v1309, 7
    %v1363 = vsel %vm1359, %v1361, %v1362
    %v1364 = vrot.slane %v1362, 2
    %v1365 = vrot.slane %v1310, 7
    %v1366 = vsel %vm1359, %v1364, %v1365
    %v1367 = vrot.slane %v1365, 2
    %v1368 = vrot.slane %v1311, 7
    %v1369 = vsel %vm1359, %v1367, %v1368
    %v1370 = vrot.slane %v1368, 2
    %v1371 = vrot.slane %v1302, 7
    %v1372 = vsel %vm1359, %v1370, %v1371
    %v1373 = vrot.slane %v1371, 2
    %v1374 = vrot.slane %v1312, 7
    %v1375 = vsel %vm1359, %v1373, %v1374
    %v1376 = vrot.slane %v1314, 7
    %v1377 = vrot.slane %v1376, 2
    %v1378 = vrot.slane %v1303, 7
    %v1379 = vsel %vm1359, %v1377, %v1378
    %v1380 = vrot.slane %v1378, 2
    %v1381 = vrot.slane %v1315, 7
    %v1382 = vsel %vm1359, %v1380, %v1381
    %v1383 = vrot.slane %v1381, 2
    %v1384 = vrot.slane %v1316, 7
    %v1385 = vsel %vm1359, %v1383, %v1384
    %v1386 = vrot.slane %v1384, 2
    %v1387 = vrot.slane %v1317, 7
    %v1388 = vsel %vm1359, %v1386, %v1387
    %v1389 = vrot.slane %v1387, 2
    %v1390 = vrot.slane %v1304, 7
    %v1391 = vsel %vm1359, %v1389, %v1390
    %1392 = vst [vmem:[#allocation1] ss:$4 sm:$0xff] %v1363
    %s1393 = scalar_lea.vmem [#allocation1], 1
    %1394 = vst [vmem:[%s1393] ss:$4 sm:$0xff] %v1366
    %s1395 = scalar_lea.vmem [#allocation1], 2
    %1396 = vst [vmem:[%s1395] ss:$4 sm:$0xff] %v1369
    %s1397 = scalar_lea.vmem [#allocation1], 3
    %1398 = vst [vmem:[%s1397] ss:$4 sm:$0xff] %v1372
    %s1399 = scalar_lea.vmem [#allocation1], 32
    %1400 = vst [vmem:[%s1399] ss:$4 sm:$0xff] %v1375
    %s1401 = scalar_lea.vmem [#allocation1], 33
    %1402 = vst [vmem:[%s1401] ss:$4 sm:$0xff] %v1379
    %s1403 = scalar_lea.vmem [#allocation1], 34
    %1404 = vst [vmem:[%s1403] ss:$4 sm:$0xff] %v1382
    %s1405 = scalar_lea.vmem [#allocation1], 35
    %1406 = vst [vmem:[%s1405] ss:$4 sm:$0xff] %v1385
    %v1407 = vld.sshfl [vmem:[#allocation1] sm:$0xff pattern:$0x73625140]
    %v1408 = vld.sshfl [vmem:[#allocation1 + $0x20] sm:$0xff pattern:$0x73625140]
    %1409 = vst [vmem:[#allocation1] ss:$4 sm:$0xff] %v1388
    %1410 = vst [vmem:[%s1393] ss:$4 sm:$0xff] %v1391
    %v1411 = vld.sshfl [vmem:[#allocation1] sm:$0xff pattern:$0x73625140]
    %v1415 = vpack.c.bf16 %v1408, %v1407
    %v1416 = vpack.c.bf16 %v1411, %v1411
    %s1417 = scalar_lea.vmem %s5, 88
    %v1418 = vld [vmem:[%s1417] sm:$0xff]
    %v1419 = vld [vmem:[%s1417 + $0x8] sm:$0xff]
    %v1420 = vld [vmem:[%s1417 + $0x10] sm:$0xff]
    %v1421 = vld [vmem:[%s1417 + $0x18] sm:$0xff]
    %v1422 = vld [vmem:[%s1417 + $0x20] sm:$0xff]
    %v1423 = vld [vmem:[%s1417 + $0x28] sm:$0xff]
    %v1424 = vld [vmem:[%s1417 + $0x30] sm:$0xff]
    %v1425 = vld [vmem:[%s1417 + $0x38] sm:$0xff]
    %v1426 = vld [vmem:[%s1417 + $0x40] sm:$0xff]
    %v1427 = vld [vmem:[%s1417 + $0x48] sm:$0xff]
    %v1428 = vld [vmem:[%s1417 + $0x50] sm:$0x33]
    %v1440 = vunpack.c.l.b16 %v1418
    %v1441 = vunpack.c.h.b16 %v1418
    %v1442 = vunpack.c.l.b16 %v1419
    %v1443 = vunpack.c.h.b16 %v1419
    %v1444 = vunpack.c.l.b16 %v1420
    %v1445 = vunpack.c.h.b16 %v1420
    %v1446 = vunpack.c.l.b16 %v1421
    %v1447 = vunpack.c.h.b16 %v1421
    %v1448 = vunpack.c.l.b16 %v1422
    %v1449 = vunpack.c.h.b16 %v1422
    %v1450 = vunpack.c.l.b16 %v1423
    %v1451 = vunpack.c.h.b16 %v1423
    %v1452 = vunpack.c.l.b16 %v1424
    %v1453 = vunpack.c.h.b16 %v1424
    %v1454 = vunpack.c.l.b16 %v1425
    %v1455 = vunpack.c.h.b16 %v1425
    %v1456 = vunpack.c.l.b16 %v1426
    %v1457 = vunpack.c.h.b16 %v1426
    %v1458 = vunpack.c.l.b16 %v1427
    %v1459 = vunpack.c.h.b16 %v1427
    %v1460 = vunpack.c.l.b16 %v1428
    %v1461 = vunpack.c.h.b16 %v1428
    %v1462 = vpack.c.b16 %v1442, %v1440
    %v1463 = vpack.c.b16 %v1443, %v1441
    %v1464 = vpack.c.b16 %v1446, %v1444
    %v1465 = vpack.c.b16 %v1447, %v1445
    %v1466 = vpack.c.b16 %v1450, %v1448
    %v1467 = vpack.c.b16 %v1451, %v1449
    %v1468 = vpack.c.b16 %v1454, %v1452
    %v1469 = vpack.c.b16 %v1455, %v1453
    %v1470 = vpack.c.b16 %v1458, %v1456
    %v1471 = vpack.c.b16 %v1459, %v1457
    %v1472 = vpack.c.b16 %v1460, %v1460
    %v1473 = vpack.c.b16 %v1461, %v1461
    %vm1484 = vcmask 687104
    %v1486 = vsel %vm1484, %v1415, 0
    %v1489 = vsel %vm1484, %v1416, 0
    %v1492 = vsel %vm390, %v1472, 0
    %v1495 = vsel %vm390, %v1473, 0
    %1497 = vmatpush.bf16.msra.mxu0 0
    %1498 = vmatpush.bf16.msra.mxu0 0
    %1499 = vmatpush.bf16.msra.mxu0 %v1492
    %1500 = vmatpush.bf16.msra.mxu0 %v1470
    %1501 = vmatpush.bf16.msra.mxu0 %v1468
    %1502 = vmatpush.bf16.msra.mxu0 %v1466
    %1503 = vmatpush.bf16.msra.mxu0 %v1464
    %1504 = vmatpush.bf16.msra.mxu0 %v1462
    %1505 = vmatmul.bf16.gmra.mxu0 %v1486
    %v1506 = vpop.f32.mrf.mxu0
    %v1507 = vadd.f32 0.0, %v1506
    %v1508 = vpop.f32.mrf.mxu0
    %v1509 = vadd.f32 0.0, %v1508
    %1510 = vmatmul.bf16.gmra.mxu0 %v1489
    %v1511 = vpop.f32.mrf.mxu0
    %v1512 = vadd.f32 0.0, %v1511
    %v1513 = vpop.f32.mrf.mxu0
    %1514 = vdwg.mxu0
    %1515 = vmatpush.bf16.msra.mxu0 0
    %1516 = vmatpush.bf16.msra.mxu0 0
    %1517 = vmatpush.bf16.msra.mxu0 %v1495
    %1518 = vmatpush.bf16.msra.mxu0 %v1471
    %1519 = vmatpush.bf16.msra.mxu0 %v1469
    %1520 = vmatpush.bf16.msra.mxu0 %v1467
    %1521 = vmatpush.bf16.msra.mxu0 %v1465
    %1522 = vmatpush.bf16.msra.mxu0 %v1463
    %1523 = vmatmul.bf16.gmra.mxu0 %v1486
    %v1524 = vpop.f32.mrf.mxu0
    %v1525 = vadd.f32 0.0, %v1524
    %v1526 = vpop.f32.mrf.mxu0
    %v1527 = vadd.f32 0.0, %v1526
    %1528 = vmatmul.bf16.gmra.mxu0 %v1489
    %v1529 = vpop.f32.mrf.mxu0
    %v1530 = vadd.f32 0.0, %v1529
    %v1531 = vpop.f32.mrf.mxu0
    %1532 = vdwg.mxu0
    %v1544 = vunpack.c.l.b16 %v1344
    %v1545 = vunpack.c.h.b16 %v1344
    %v1546 = vunpack.c.l.b16 %v1345
    %v1547 = vunpack.c.h.b16 %v1345
    %v1548 = vunpack.c.l.b16 %v1346
    %v1549 = vunpack.c.h.b16 %v1346
    %v1550 = vunpack.c.l.b16 %v1347
    %v1551 = vunpack.c.h.b16 %v1347
    %v1552 = vunpack.c.l.b16 %v1348
    %v1553 = vunpack.c.h.b16 %v1348
    %v1554 = vunpack.c.l.b16 %v1349
    %v1555 = vunpack.c.h.b16 %v1349
    %v1556 = vunpack.c.l.b16 %v1350
    %v1557 = vunpack.c.h.b16 %v1350
    %v1558 = vunpack.c.l.b16 %v1351
    %v1559 = vunpack.c.h.b16 %v1351
    %v1560 = vunpack.c.l.b16 %v1352
    %v1561 = vunpack.c.h.b16 %v1352
    %v1562 = vunpack.c.l.b16 %v1353
    %v1563 = vunpack.c.h.b16 %v1353
    %v1564 = vunpack.c.l.b16 %v1354
    %v1565 = vunpack.c.h.b16 %v1354
    %v1566 = vpack.c.b16 %v1546, %v1544
    %v1567 = vpack.c.b16 %v1547, %v1545
    %v1568 = vpack.c.b16 %v1550, %v1548
    %v1569 = vpack.c.b16 %v1551, %v1549
    %v1570 = vpack.c.b16 %v1554, %v1552
    %v1571 = vpack.c.b16 %v1555, %v1553
    %v1572 = vpack.c.b16 %v1558, %v1556
    %v1573 = vpack.c.b16 %v1559, %v1557
    %v1574 = vpack.c.b16 %v1562, %v1560
    %v1575 = vpack.c.b16 %v1563, %v1561
    %v1576 = vpack.c.b16 %v1564, %v1564
    %v1577 = vpack.c.b16 %v1565, %v1565
    %v1589 = vsel %vm1484, %v1342, 0
    %v1592 = vsel %vm1484, %v1343, 0
    %v1595 = vsel %vm390, %v1576, 0
    %v1598 = vsel %vm390, %v1577, 0
    %1600 = vmatpush.bf16.msra.mxu0 0
    %1601 = vmatpush.bf16.msra.mxu0 0
    %1602 = vmatpush.bf16.msra.mxu0 %v1595
    %1603 = vmatpush.bf16.msra.mxu0 %v1574
    %1604 = vmatpush.bf16.msra.mxu0 %v1572
    %1605 = vmatpush.bf16.msra.mxu0 %v1570
    %1606 = vmatpush.bf16.msra.mxu0 %v1568
    %1607 = vmatpush.bf16.msra.mxu0 %v1566
    %1608 = vmatmul.bf16.gmra.mxu0 %v1589
    %v1609 = vpop.f32.mrf.mxu0
    %v1610 = vadd.f32 %v1507, %v1609
    %v1611 = vpop.f32.mrf.mxu0
    %v1612 = vadd.f32 %v1509, %v1611
    %1613 = vmatmul.bf16.gmra.mxu0 %v1592
    %v1614 = vpop.f32.mrf.mxu0
    %v1615 = vadd.f32 %v1512, %v1614
    %v1616 = vpop.f32.mrf.mxu0
    %1617 = vdwg.mxu0
    %1618 = vmatpush.bf16.msra.mxu0 0
    %1619 = vmatpush.bf16.msra.mxu0 0
    %1620 = vmatpush.bf16.msra.mxu0 %v1598
    %1621 = vmatpush.bf16.msra.mxu0 %v1575
    %1622 = vmatpush.bf16.msra.mxu0 %v1573
    %1623 = vmatpush.bf16.msra.mxu0 %v1571
    %1624 = vmatpush.bf16.msra.mxu0 %v1569
    %1625 = vmatpush.bf16.msra.mxu0 %v1567
    %1626 = vmatmul.bf16.gmra.mxu0 %v1589
    %v1627 = vpop.f32.mrf.mxu0
    %v1628 = vadd.f32 %v1525, %v1627
    %v1629 = vpop.f32.mrf.mxu0
    %v1630 = vadd.f32 %v1527, %v1629
    %1631 = vmatmul.bf16.gmra.mxu0 %v1592
    %v1632 = vpop.f32.mrf.mxu0
    %v1633 = vadd.f32 %v1530, %v1632
    %v1634 = vpop.f32.mrf.mxu0
    %1635 = vdwg.mxu0
    %1636 = vst [vmem:[#allocation1] ss:$4 sm:$0xff] %v1309
    %s1637 = scalar_lea.vmem [#allocation1], 1
    %1638 = vst [vmem:[%s1637] ss:$4 sm:$0xff] %v1310
    %s1639 = scalar_lea.vmem [#allocation1], 2
    %1640 = vst [vmem:[%s1639] ss:$4 sm:$0xff] %v1311
    %s1641 = scalar_lea.vmem [#allocation1], 3
    %1642 = vst [vmem:[%s1641] ss:$4 sm:$0xff] %v1302
    %s1643 = scalar_lea.vmem [#allocation1], 32
    %1644 = vst [vmem:[%s1643] ss:$4 sm:$0xff] %v1312
    %s1645 = scalar_lea.vmem [#allocation1], 33
    %1646 = vst [vmem:[%s1645] ss:$4 sm:$0xff] %v1303
    %s1647 = scalar_lea.vmem [#allocation1], 34
    %1648 = vst [vmem:[%s1647] ss:$4 sm:$0xff] %v1315
    %s1649 = scalar_lea.vmem [#allocation1], 35
    %1650 = vst [vmem:[%s1649] ss:$4 sm:$0xff] %v1316
    %v1651 = vld.sshfl [vmem:[#allocation1] sm:$0xff pattern:$0x73625140]
    %v1652 = vld.sshfl [vmem:[#allocation1 + $0x20] sm:$0xff pattern:$0x73625140]
    %1653 = vst [vmem:[#allocation1] ss:$4 sm:$0xff] %v1317
    %1654 = vst [vmem:[%s1637] ss:$4 sm:$0xff] %v1304
    %v1655 = vld.sshfl [vmem:[#allocation1] sm:$0xff pattern:$0x73625140]
    %v1659 = vpack.c.bf16 %v1652, %v1651
    %v1660 = vpack.c.bf16 %v1655, %v1655
    %s1661 = scalar_lea.vmem %s5, 176
    %v1662 = vld [vmem:[%s1661] sm:$0xff]
    %v1663 = vld [vmem:[%s1661 + $0x8] sm:$0xff]
    %v1664 = vld [vmem:[%s1661 + $0x10] sm:$0xff]
    %v1665 = vld [vmem:[%s1661 + $0x18] sm:$0xff]
    %v1666 = vld [vmem:[%s1661 + $0x20] sm:$0xff]
    %v1667 = vld [vmem:[%s1661 + $0x28] sm:$0xff]
    %v1668 = vld [vmem:[%s1661 + $0x30] sm:$0xff]
    %v1669 = vld [vmem:[%s1661 + $0x38] sm:$0xff]
    %v1670 = vld [vmem:[%s1661 + $0x40] sm:$0xff]
    %v1671 = vld [vmem:[%s1661 + $0x48] sm:$0xff]
    %v1672 = vld [vmem:[%s1661 + $0x50] sm:$0x33]
    %v1684 = vunpack.c.l.b16 %v1662
    %v1685 = vunpack.c.h.b16 %v1662
    %v1686 = vunpack.c.l.b16 %v1663
    %v1687 = vunpack.c.h.b16 %v1663
    %v1688 = vunpack.c.l.b16 %v1664
    %v1689 = vunpack.c.h.b16 %v1664
    %v1690 = vunpack.c.l.b16 %v1665
    %v1691 = vunpack.c.h.b16 %v1665
    %v1692 = vunpack.c.l.b16 %v1666
    %v1693 = vunpack.c.h.b16 %v1666
    %v1694 = vunpack.c.l.b16 %v1667
    %v1695 = vunpack.c.h.b16 %v1667
    %v1696 = vunpack.c.l.b16 %v1668
    %v1697 = vunpack.c.h.b16 %v1668
    %v1698 = vunpack.c.l.b16 %v1669
    %v1699 = vunpack.c.h.b16 %v1669
    %v1700 = vunpack.c.l.b16 %v1670
    %v1701 = vunpack.c.h.b16 %v1670
    %v1702 = vunpack.c.l.b16 %v1671
    %v1703 = vunpack.c.h.b16 %v1671
    %v1704 = vunpack.c.l.b16 %v1672
    %v1705 = vunpack.c.h.b16 %v1672
    %v1706 = vpack.c.b16 %v1686, %v1684
    %v1707 = vpack.c.b16 %v1687, %v1685
    %v1708 = vpack.c.b16 %v1690, %v1688
    %v1709 = vpack.c.b16 %v1691, %v1689
    %v1710 = vpack.c.b16 %v1694, %v1692
    %v1711 = vpack.c.b16 %v1695, %v1693
    %v1712 = vpack.c.b16 %v1698, %v1696
    %v1713 = vpack.c.b16 %v1699, %v1697
    %v1714 = vpack.c.b16 %v1702, %v1700
    %v1715 = vpack.c.b16 %v1703, %v1701
    %v1716 = vpack.c.b16 %v1704, %v1704
    %v1717 = vpack.c.b16 %v1705, %v1705
    %v1729 = vsel %vm1484, %v1659, 0
    %v1732 = vsel %vm1484, %v1660, 0
    %v1735 = vsel %vm390, %v1716, 0
    %v1738 = vsel %vm390, %v1717, 0
    %1740 = vmatpush.bf16.msra.mxu0 0
    %1741 = vmatpush.bf16.msra.mxu0 0
    %1742 = vmatpush.bf16.msra.mxu0 %v1735
    %1743 = vmatpush.bf16.msra.mxu0 %v1714
    %1744 = vmatpush.bf16.msra.mxu0 %v1712
    %1745 = vmatpush.bf16.msra.mxu0 %v1710
    %1746 = vmatpush.bf16.msra.mxu0 %v1708
    %1747 = vmatpush.bf16.msra.mxu0 %v1706
    %1748 = vmatmul.bf16.gmra.mxu0 %v1729
    %v1749 = vpop.f32.mrf.mxu0
    %v1750 = vadd.f32 0.0, %v1749
    %v1751 = vpop.f32.mrf.mxu0
    %v1752 = vadd.f32 0.0, %v1751
    %1753 = vmatmul.bf16.gmra.mxu0 %v1732
    %v1754 = vpop.f32.mrf.mxu0
    %v1755 = vadd.f32 0.0, %v1754
    %v1756 = vpop.f32.mrf.mxu0
    %1757 = vdwg.mxu0
    %1758 = vmatpush.bf16.msra.mxu0 0
    %1759 = vmatpush.bf16.msra.mxu0 0
    %1760 = vmatpush.bf16.msra.mxu0 %v1738
    %1761 = vmatpush.bf16.msra.mxu0 %v1715
    %1762 = vmatpush.bf16.msra.mxu0 %v1713
    %1763 = vmatpush.bf16.msra.mxu0 %v1711
    %1764 = vmatpush.bf16.msra.mxu0 %v1709
    %1765 = vmatpush.bf16.msra.mxu0 %v1707
    %1766 = vmatmul.bf16.gmra.mxu0 %v1729
    %v1767 = vpop.f32.mrf.mxu0
    %v1768 = vadd.f32 0.0, %v1767
    %v1769 = vpop.f32.mrf.mxu0
    %v1770 = vadd.f32 0.0, %v1769
    %1771 = vmatmul.bf16.gmra.mxu0 %v1732
    %v1772 = vpop.f32.mrf.mxu0
    %v1773 = vadd.f32 0.0, %v1772
    %v1774 = vpop.f32.mrf.mxu0
    %1775 = vdwg.mxu0
    %v1776 = vadd.f32 %v1610, %v1750
    %v1777 = vadd.f32 %v1628, %v1768
    %v1778 = vadd.f32 %v1612, %v1752
    %v1779 = vadd.f32 %v1630, %v1770
    %v1780 = vadd.f32 %v1615, %v1755
    %v1781 = vadd.f32 %v1633, %v1773
    %v1782 = vrot.slane %v1374, 2
    %v1783 = vrot.slane %v1313, 7
    %v1784 = vsel %vm1359, %v1782, %v1783
    %v1785 = vrot.slane %v1390, 2
    %v1786 = vrot.slane %v1318, 7
    %v1787 = vsel %vm1359, %v1785, %v1786
    %1788 = vst [vmem:[#allocation1] ss:$4 sm:$0xff] %v1366
    %s1789 = scalar_lea.vmem [#allocation1], 1
    %1790 = vst [vmem:[%s1789] ss:$4 sm:$0xff] %v1369
    %s1791 = scalar_lea.vmem [#allocation1], 2
    %1792 = vst [vmem:[%s1791] ss:$4 sm:$0xff] %v1372
    %s1793 = scalar_lea.vmem [#allocation1], 3
    %1794 = vst [vmem:[%s1793] ss:$4 sm:$0xff] %v1375
    %s1795 = scalar_lea.vmem [#allocation1], 32
    %1796 = vst [vmem:[%s1795] ss:$4 sm:$0xff] %v1784
    %s1797 = scalar_lea.vmem [#allocation1], 33
    %1798 = vst [vmem:[%s1797] ss:$4 sm:$0xff] %v1382
    %s1799 = scalar_lea.vmem [#allocation1], 34
    %1800 = vst [vmem:[%s1799] ss:$4 sm:$0xff] %v1385
    %s1801 = scalar_lea.vmem [#allocation1], 35
    %1802 = vst [vmem:[%s1801] ss:$4 sm:$0xff] %v1388
    %v1803 = vld.sshfl [vmem:[#allocation1] sm:$0xff pattern:$0x73625140]
    %v1804 = vld.sshfl [vmem:[#allocation1 + $0x20] sm:$0xff pattern:$0x73625140]
    %1805 = vst [vmem:[#allocation1] ss:$4 sm:$0xff] %v1391
    %1806 = vst [vmem:[%s1789] ss:$4 sm:$0xff] %v1787
    %v1807 = vld.sshfl [vmem:[#allocation1] sm:$0xff pattern:$0x73625140]
    %v1811 = vpack.c.bf16 %v1804, %v1803
    %v1812 = vpack.c.bf16 %v1807, %v1807
    %s1813 = scalar_lea.vmem %s5, 264
    %v1814 = vld [vmem:[%s1813] sm:$0xff]
    %v1815 = vld [vmem:[%s1813 + $0x8] sm:$0xff]
    %v1816 = vld [vmem:[%s1813 + $0x10] sm:$0xff]
    %v1817 = vld [vmem:[%s1813 + $0x18] sm:$0xff]
    %v1818 = vld [vmem:[%s1813 + $0x20] sm:$0xff]
    %v1819 = vld [vmem:[%s1813 + $0x28] sm:$0xff]
    %v1820 = vld [vmem:[%s1813 + $0x30] sm:$0xff]
    %v1821 = vld [vmem:[%s1813 + $0x38] sm:$0xff]
    %v1822 = vld [vmem:[%s1813 + $0x40] sm:$0xff]
    %v1823 = vld [vmem:[%s1813 + $0x48] sm:$0xff]
    %v1824 = vld [vmem:[%s1813 + $0x50] sm:$0x33]
    %v1836 = vunpack.c.l.b16 %v1814
    %v1837 = vunpack.c.h.b16 %v1814
    %v1838 = vunpack.c.l.b16 %v1815
    %v1839 = vunpack.c.h.b16 %v1815
    %v1840 = vunpack.c.l.b16 %v1816
    %v1841 = vunpack.c.h.b16 %v1816
    %v1842 = vunpack.c.l.b16 %v1817
    %v1843 = vunpack.c.h.b16 %v1817
    %v1844 = vunpack.c.l.b16 %v1818
    %v1845 = vunpack.c.h.b16 %v1818
    %v1846 = vunpack.c.l.b16 %v1819
    %v1847 = vunpack.c.h.b16 %v1819
    %v1848 = vunpack.c.l.b16 %v1820
    %v1849 = vunpack.c.h.b16 %v1820
    %v1850 = vunpack.c.l.b16 %v1821
    %v1851 = vunpack.c.h.b16 %v1821
    %v1852 = vunpack.c.l.b16 %v1822
    %v1853 = vunpack.c.h.b16 %v1822
    %v1854 = vunpack.c.l.b16 %v1823
    %v1855 = vunpack.c.h.b16 %v1823
    %v1856 = vunpack.c.l.b16 %v1824
    %v1857 = vunpack.c.h.b16 %v1824
    %v1858 = vpack.c.b16 %v1838, %v1836
    %v1859 = vpack.c.b16 %v1839, %v1837
    %v1860 = vpack.c.b16 %v1842, %v1840
    %v1861 = vpack.c.b16 %v1843, %v1841
    %v1862 = vpack.c.b16 %v1846, %v1844
    %v1863 = vpack.c.b16 %v1847, %v1845
    %v1864 = vpack.c.b16 %v1850, %v1848
    %v1865 = vpack.c.b16 %v1851, %v1849
    %v1866 = vpack.c.b16 %v1854, %v1852
    %v1867 = vpack.c.b16 %v1855, %v1853
    %v1868 = vpack.c.b16 %v1856, %v1856
    %v1869 = vpack.c.b16 %v1857, %v1857
    %v1881 = vsel %vm1484, %v1811, 0
    %v1884 = vsel %vm1484, %v1812, 0
    %v1887 = vsel %vm390, %v1868, 0
    %v1890 = vsel %vm390, %v1869, 0
    %1892 = vmatpush.bf16.msra.mxu0 0
    %1893 = vmatpush.bf16.msra.mxu0 0
    %1894 = vmatpush.bf16.msra.mxu0 %v1887
    %1895 = vmatpush.bf16.msra.mxu0 %v1866
    %1896 = vmatpush.bf16.msra.mxu0 %v1864
    %1897 = vmatpush.bf16.msra.mxu0 %v1862
    %1898 = vmatpush.bf16.msra.mxu0 %v1860
    %1899 = vmatpush.bf16.msra.mxu0 %v1858
    %1900 = vmatmul.bf16.gmra.mxu0 %v1881
    %v1901 = vpop.f32.mrf.mxu0
    %v1902 = vadd.f32 0.0, %v1901
    %v1903 = vpop.f32.mrf.mxu0
    %v1904 = vadd.f32 0.0, %v1903
    %1905 = vmatmul.bf16.gmra.mxu0 %v1884
    %v1906 = vpop.f32.mrf.mxu0
    %v1907 = vadd.f32 0.0, %v1906
    %v1908 = vpop.f32.mrf.mxu0
    %1909 = vdwg.mxu0
    %1910 = vmatpush.bf16.msra.mxu0 0
    %1911 = vmatpush.bf16.msra.mxu0 0
    %1912 = vmatpush.bf16.msra.mxu0 %v1890
    %1913 = vmatpush.bf16.msra.mxu0 %v1867
    %1914 = vmatpush.bf16.msra.mxu0 %v1865
    %1915 = vmatpush.bf16.msra.mxu0 %v1863
    %1916 = vmatpush.bf16.msra.mxu0 %v1861
    %1917 = vmatpush.bf16.msra.mxu0 %v1859
    %1918 = vmatmul.bf16.gmra.mxu0 %v1881
    %v1919 = vpop.f32.mrf.mxu0
    %v1920 = vadd.f32 0.0, %v1919
    %v1921 = vpop.f32.mrf.mxu0
    %v1922 = vadd.f32 0.0, %v1921
    %1923 = vmatmul.bf16.gmra.mxu0 %v1884
    %v1924 = vpop.f32.mrf.mxu0
    %v1925 = vadd.f32 0.0, %v1924
    %v1926 = vpop.f32.mrf.mxu0
    %1927 = vdwg.mxu0
    %v1928 = vadd.f32 %v1776, %v1902
    %v1929 = vadd.f32 %v1777, %v1920
    %v1930 = vadd.f32 %v1778, %v1904
    %v1931 = vadd.f32 %v1779, %v1922
    %v1932 = vadd.f32 %v1780, %v1907
    %v1933 = vadd.f32 %v1781, %v1925
    %1934 = vst [vmem:[#allocation1] ss:$4 sm:$0xff] %v1310
    %s1935 = scalar_lea.vmem [#allocation1], 1
    %1936 = vst [vmem:[%s1935] ss:$4 sm:$0xff] %v1311
    %s1937 = scalar_lea.vmem [#allocation1], 2
    %1938 = vst [vmem:[%s1937] ss:$4 sm:$0xff] %v1302
    %s1939 = scalar_lea.vmem [#allocation1], 3
    %1940 = vst [vmem:[%s1939] ss:$4 sm:$0xff] %v1312
    %s1941 = scalar_lea.vmem [#allocation1], 32
    %1942 = vst [vmem:[%s1941] ss:$4 sm:$0xff] %v1313
    %s1943 = scalar_lea.vmem [#allocation1], 33
    %1944 = vst [vmem:[%s1943] ss:$4 sm:$0xff] %v1315
    %s1945 = scalar_lea.vmem [#allocation1], 34
    %1946 = vst [vmem:[%s1945] ss:$4 sm:$0xff] %v1316
    %s1947 = scalar_lea.vmem [#allocation1], 35
    %1948 = vst [vmem:[%s1947] ss:$4 sm:$0xff] %v1317
    %v1949 = vld.sshfl [vmem:[#allocation1] sm:$0xff pattern:$0x73625140]
    %v1950 = vld.sshfl [vmem:[#allocation1 + $0x20] sm:$0xff pattern:$0x73625140]
    %1951 = vst [vmem:[#allocation1] ss:$4 sm:$0xff] %v1304
    %1952 = vst [vmem:[%s1935] ss:$4 sm:$0xff] %v1318
    %v1953 = vld.sshfl [vmem:[#allocation1] sm:$0xff pattern:$0x73625140]
    %v1957 = vpack.c.bf16 %v1950, %v1949
    %v1958 = vpack.c.bf16 %v1953, %v1953
    %s1959 = scalar_lea.vmem %s5, 352
    %v1960 = vld [vmem:[%s1959] sm:$0xff]
    %v1961 = vld [vmem:[%s1959 + $0x8] sm:$0xff]
    %v1962 = vld [vmem:[%s1959 + $0x10] sm:$0xff]
    %v1963 = vld [vmem:[%s1959 + $0x18] sm:$0xff]
    %v1964 = vld [vmem:[%s1959 + $0x20] sm:$0xff]
    %v1965 = vld [vmem:[%s1959 + $0x28] sm:$0xff]
    %v1966 = vld [vmem:[%s1959 + $0x30] sm:$0xff]
    %v1967 = vld [vmem:[%s1959 + $0x38] sm:$0xff]
    %v1968 = vld [vmem:[%s1959 + $0x40] sm:$0xff]
    %v1969 = vld [vmem:[%s1959 + $0x48] sm:$0xff]
    %v1970 = vld [vmem:[%s1959 + $0x50] sm:$0x33]
    %v1982 = vunpack.c.l.b16 %v1960
    %v1983 = vunpack.c.h.b16 %v1960
    %v1984 = vunpack.c.l.b16 %v1961
    %v1985 = vunpack.c.h.b16 %v1961
    %v1986 = vunpack.c.l.b16 %v1962
    %v1987 = vunpack.c.h.b16 %v1962
    %v1988 = vunpack.c.l.b16 %v1963
    %v1989 = vunpack.c.h.b16 %v1963
    %v1990 = vunpack.c.l.b16 %v1964
    %v1991 = vunpack.c.h.b16 %v1964
    %v1992 = vunpack.c.l.b16 %v1965
    %v1993 = vunpack.c.h.b16 %v1965
    %v1994 = vunpack.c.l.b16 %v1966
    %v1995 = vunpack.c.h.b16 %v1966
    %v1996 = vunpack.c.l.b16 %v1967
    %v1997 = vunpack.c.h.b16 %v1967
    %v1998 = vunpack.c.l.b16 %v1968
    %v1999 = vunpack.c.h.b16 %v1968
    %v2000 = vunpack.c.l.b16 %v1969
    %v2001 = vunpack.c.h.b16 %v1969
    %v2002 = vunpack.c.l.b16 %v1970
    %v2003 = vunpack.c.h.b16 %v1970
    %v2004 = vpack.c.b16 %v1984, %v1982
    %v2005 = vpack.c.b16 %v1985, %v1983
    %v2006 = vpack.c.b16 %v1988, %v1986
    %v2007 = vpack.c.b16 %v1989, %v1987
    %v2008 = vpack.c.b16 %v1992, %v1990
    %v2009 = vpack.c.b16 %v1993, %v1991
    %v2010 = vpack.c.b16 %v1996, %v1994
    %v2011 = vpack.c.b16 %v1997, %v1995
    %v2012 = vpack.c.b16 %v2000, %v1998
    %v2013 = vpack.c.b16 %v2001, %v1999
    %v2014 = vpack.c.b16 %v2002, %v2002
    %v2015 = vpack.c.b16 %v2003, %v2003
    %v2027 = vsel %vm1484, %v1957, 0
    %v2030 = vsel %vm1484, %v1958, 0
    %v2033 = vsel %vm390, %v2014, 0
    %v2036 = vsel %vm390, %v2015, 0
    %2038 = vmatpush.bf16.msra.mxu0 0
    %2039 = vmatpush.bf16.msra.mxu0 0
    %2040 = vmatpush.bf16.msra.mxu0 %v2033
    %2041 = vmatpush.bf16.msra.mxu0 %v2012
    %2042 = vmatpush.bf16.msra.mxu0 %v2010
    %2043 = vmatpush.bf16.msra.mxu0 %v2008
    %2044 = vmatpush.bf16.msra.mxu0 %v2006
    %2045 = vmatpush.bf16.msra.mxu0 %v2004
    %2046 = vmatmul.bf16.gmra.mxu0 %v2027
    %v2047 = vpop.f32.mrf.mxu0
    %v2048 = vadd.f32 0.0, %v2047
    %v2049 = vpop.f32.mrf.mxu0
    %v2050 = vadd.f32 0.0, %v2049
    %2051 = vmatmul.bf16.gmra.mxu0 %v2030
    %v2052 = vpop.f32.mrf.mxu0
    %v2053 = vadd.f32 0.0, %v2052
    %v2054 = vpop.f32.mrf.mxu0
    %2055 = vdwg.mxu0
    %2056 = vmatpush.bf16.msra.mxu0 0
    %2057 = vmatpush.bf16.msra.mxu0 0
    %2058 = vmatpush.bf16.msra.mxu0 %v2036
    %2059 = vmatpush.bf16.msra.mxu0 %v2013
    %2060 = vmatpush.bf16.msra.mxu0 %v2011
    %2061 = vmatpush.bf16.msra.mxu0 %v2009
    %2062 = vmatpush.bf16.msra.mxu0 %v2007
    %2063 = vmatpush.bf16.msra.mxu0 %v2005
    %2064 = vmatmul.bf16.gmra.mxu0 %v2027
    %v2065 = vpop.f32.mrf.mxu0
    %v2066 = vadd.f32 0.0, %v2065
    %v2067 = vpop.f32.mrf.mxu0
    %v2068 = vadd.f32 0.0, %v2067
    %2069 = vmatmul.bf16.gmra.mxu0 %v2030
    %v2070 = vpop.f32.mrf.mxu0
    %v2071 = vadd.f32 0.0, %v2070
    %v2072 = vpop.f32.mrf.mxu0
    %2073 = vdwg.mxu0
    %v2074 = vadd.f32 %v1928, %v2048
    %v2075 = vadd.f32 %v1929, %v2066
    %v2076 = vadd.f32 %v1930, %v2050
    %v2077 = vadd.f32 %v1931, %v2068
    %v2078 = vadd.f32 %v1932, %v2053
    %v2079 = vadd.f32 %v1933, %v2071
    %v2080 = vld [vmem:[%s6] sm:$0x3]
    %v2082 = vperm.slane %v2080, 0
    %v2083 = vperm.slane %v2080, 1
    %v2086 = vadd.f32 %v2074, %v2082
    %v2087 = vadd.f32 %v2075, %v2083
    %v2088 = vadd.f32 %v2076, %v2082
    %v2089 = vadd.f32 %v2077, %v2083
    %v2090 = vadd.f32 %v2078, %v2082
    %v2091 = vadd.f32 %v2079, %v2083
    %v2092 = vmax.f32 %v2086, 0.0
    %v2093 = vmax.f32 %v2087, 0.0
    %v2094 = vmax.f32 %v2088, 0.0
    %v2095 = vmax.f32 %v2089, 0.0
    %v2096 = vmax.f32 %v2090, 0.0
    %v2097 = vmax.f32 %v2091, 0.0
    %v2098 = vld [vmem:[%s7] sm:$0xff]
    %v2099 = vld [vmem:[%s7 + $0x8] sm:$0xff]
    %v2100 = vld [vmem:[%s7 + $0x10] sm:$0xff]
    %v2101 = vld [vmem:[%s7 + $0x18] sm:$0xff]
    %v2102 = vld [vmem:[%s7 + $0x20] sm:$0xff]
    %v2103 = vld [vmem:[%s7 + $0x28] sm:$0xff]
    %v2104 = vld [vmem:[%s7 + $0x30] sm:$0xff]
    %v2105 = vld [vmem:[%s7 + $0x38] sm:$0xff]
    %v2106 = vld [vmem:[%s7 + $0x40] sm:$0xff]
    %v2107 = vld [vmem:[%s7 + $0x48] sm:$0xff]
    %v2108 = vld [vmem:[%s7 + $0x50] sm:$0xff]
    %v2109 = vld [vmem:[%s7 + $0x58] sm:$0xff]
    %v2110 = vld [vmem:[%s7 + $0x60] sm:$0xff]
    %v2111 = vld [vmem:[%s7 + $0x68] sm:$0xff]
    %v2112 = vld [vmem:[%s7 + $0x70] sm:$0xff]
    %v2113 = vld [vmem:[%s7 + $0x78] sm:$0xff]
    %v2114 = vld [vmem:[%s7 + $0x80] sm:$0xff]
    %v2115 = vld [vmem:[%s7 + $0x88] sm:$0xff]
    %v2116 = vld [vmem:[%s7 + $0x90] sm:$0xff]
    %v2117 = vld [vmem:[%s7 + $0x98] sm:$0xff]
    %v2119 = vsel %vm233, %v2093, 0
    %v2122 = vsel %vm233, %v2095, 0
    %v2125 = vsel %vm233, %v2097, 0
    %2127 = vmatpush.msra.mxu0 %v2113
    %2128 = vmatpush.msra.mxu0 %v2112
    %2129 = vmatpush.msra.mxu0 %v2111
    %2130 = vmatpush.msra.mxu0 %v2110
    %2131 = vmatpush.msra.mxu0 %v2109
    %2132 = vmatpush.msra.mxu0 %v2108
    %2133 = vmatpush.msra.mxu0 %v2107
    %2134 = vmatpush.msra.mxu0 %v2106
    %2135 = vmatpush.msra.mxu0 %v2105
    %2136 = vmatpush.msra.mxu0 %v2104
    %2137 = vmatpush.msra.mxu0 %v2103
    %2138 = vmatpush.msra.mxu0 %v2102
    %2139 = vmatpush.msra.mxu0 %v2101
    %2140 = vmatpush.msra.mxu0 %v2100
    %2141 = vmatpush.msra.mxu0 %v2099
    %2142 = vmatpush.msra.mxu0 %v2098
    %2143 = vmatmul.f32.gmra.mxu0 %v2092
    %v2144 = vpop.f32.mrf.mxu0
    %v2145 = vadd.f32 0.0, %v2144
    %2146 = vmatmul.f32.gmra.mxu0 %v2094
    %v2147 = vpop.f32.mrf.mxu0
    %v2148 = vadd.f32 0.0, %v2147
    %2149 = vmatmul.f32.gmra.mxu0 %v2096
    %v2150 = vpop.f32.mrf.mxu0
    %v2151 = vadd.f32 0.0, %v2150
    %2152 = vdwg.mxu0
    %2153 = vmatpush.msra.mxu0 0.0
    %2154 = vmatpush.msra.mxu0 0.0
    %2155 = vmatpush.msra.mxu0 0.0
    %2156 = vmatpush.msra.mxu0 0.0
    %2157 = vmatpush.msra.mxu0 0.0
    %2158 = vmatpush.msra.mxu0 0.0
    %2159 = vmatpush.msra.mxu0 0.0
    %2160 = vmatpush.msra.mxu0 0.0
    %2161 = vmatpush.msra.mxu0 0.0
    %2162 = vmatpush.msra.mxu0 0.0
    %2163 = vmatpush.msra.mxu0 0.0
    %2164 = vmatpush.msra.mxu0 0.0
    %2165 = vmatpush.msra.mxu0 %v2117
    %2166 = vmatpush.msra.mxu0 %v2116
    %2167 = vmatpush.msra.mxu0 %v2115
    %2168 = vmatpush.msra.mxu0 %v2114
    %2169 = vmatmul.f32.gmra.mxu0 %v2119
    %v2170 = vpop.f32.mrf.mxu0
    %v2171 = vadd.f32 %v2145, %v2170
    %2172 = vmatmul.f32.gmra.mxu0 %v2122
    %v2173 = vpop.f32.mrf.mxu0
    %v2174 = vadd.f32 %v2148, %v2173
    %2175 = vmatmul.f32.gmra.mxu0 %v2125
    %v2176 = vpop.f32.mrf.mxu0
    %v2177 = vadd.f32 %v2151, %v2176
    %2178 = vdwg.mxu0
    %s2179 = scalar_lea.vmem %s7, 160
    %v2180 = vld [vmem:[%s2179] sm:$0xff]
    %v2181 = vld [vmem:[%s2179 + $0x8] sm:$0xff]
    %v2182 = vld [vmem:[%s2179 + $0x10] sm:$0xff]
    %v2183 = vld [vmem:[%s2179 + $0x18] sm:$0xff]
    %v2184 = vld [vmem:[%s2179 + $0x20] sm:$0xff]
    %v2185 = vld [vmem:[%s2179 + $0x28] sm:$0xff]
    %v2186 = vld [vmem:[%s2179 + $0x30] sm:$0xff]
    %v2187 = vld [vmem:[%s2179 + $0x38] sm:$0xff]
    %v2188 = vld [vmem:[%s2179 + $0x40] sm:$0xff]
    %v2189 = vld [vmem:[%s2179 + $0x48] sm:$0xff]
    %v2190 = vld [vmem:[%s2179 + $0x50] sm:$0xff]
    %v2191 = vld [vmem:[%s2179 + $0x58] sm:$0xff]
    %v2192 = vld [vmem:[%s2179 + $0x60] sm:$0xff]
    %v2193 = vld [vmem:[%s2179 + $0x68] sm:$0xff]
    %v2194 = vld [vmem:[%s2179 + $0x70] sm:$0xff]
    %v2195 = vld [vmem:[%s2179 + $0x78] sm:$0xff]
    %v2196 = vld [vmem:[%s2179 + $0x80] sm:$0xff]
    %v2197 = vld [vmem:[%s2179 + $0x88] sm:$0xff]
    %v2198 = vld [vmem:[%s2179 + $0x90] sm:$0xff]
    %v2199 = vld [vmem:[%s2179 + $0x98] sm:$0xff]
    %2200 = vmatpush.msra.mxu0 %v2195
    %2201 = vmatpush.msra.mxu0 %v2194
    %2202 = vmatpush.msra.mxu0 %v2193
    %2203 = vmatpush.msra.mxu0 %v2192
    %2204 = vmatpush.msra.mxu0 %v2191
    %2205 = vmatpush.msra.mxu0 %v2190
    %2206 = vmatpush.msra.mxu0 %v2189
    %2207 = vmatpush.msra.mxu0 %v2188
    %2208 = vmatpush.msra.mxu0 %v2187
    %2209 = vmatpush.msra.mxu0 %v2186
    %2210 = vmatpush.msra.mxu0 %v2185
    %2211 = vmatpush.msra.mxu0 %v2184
    %2212 = vmatpush.msra.mxu0 %v2183
    %2213 = vmatpush.msra.mxu0 %v2182
    %2214 = vmatpush.msra.mxu0 %v2181
    %2215 = vmatpush.msra.mxu0 %v2180
    %2216 = vmatmul.f32.gmra.mxu0 %v2092
    %v2217 = vpop.f32.mrf.mxu0
    %v2218 = vadd.f32 0.0, %v2217
    %2219 = vmatmul.f32.gmra.mxu0 %v2094
    %v2220 = vpop.f32.mrf.mxu0
    %v2221 = vadd.f32 0.0, %v2220
    %2222 = vmatmul.f32.gmra.mxu0 %v2096
    %v2223 = vpop.f32.mrf.mxu0
    %v2224 = vadd.f32 0.0, %v2223
    %2225 = vdwg.mxu0
    %2226 = vmatpush.msra.mxu0 0.0
    %2227 = vmatpush.msra.mxu0 0.0
    %2228 = vmatpush.msra.mxu0 0.0
    %2229 = vmatpush.msra.mxu0 0.0
    %2230 = vmatpush.msra.mxu0 0.0
    %2231 = vmatpush.msra.mxu0 0.0
    %2232 = vmatpush.msra.mxu0 0.0
    %2233 = vmatpush.msra.mxu0 0.0
    %2234 = vmatpush.msra.mxu0 0.0
    %2235 = vmatpush.msra.mxu0 0.0
    %2236 = vmatpush.msra.mxu0 0.0
    %2237 = vmatpush.msra.mxu0 0.0
    %2238 = vmatpush.msra.mxu0 %v2199
    %2239 = vmatpush.msra.mxu0 %v2198
    %2240 = vmatpush.msra.mxu0 %v2197
    %2241 = vmatpush.msra.mxu0 %v2196
    %2242 = vmatmul.f32.gmra.mxu0 %v2119
    %v2243 = vpop.f32.mrf.mxu0
    %v2244 = vadd.f32 %v2218, %v2243
    %2245 = vmatmul.f32.gmra.mxu0 %v2122
    %v2246 = vpop.f32.mrf.mxu0
    %v2247 = vadd.f32 %v2221, %v2246
    %2248 = vmatmul.f32.gmra.mxu0 %v2125
    %v2249 = vpop.f32.mrf.mxu0
    %v2250 = vadd.f32 %v2224, %v2249
    %2251 = vdwg.mxu0
    %v2252 = vmax.f32 %v2171, %v2244
    %v2253 = vmax.f32 %v2174, %v2247
    %v2254 = vmax.f32 %v2177, %v2250
    %v2255 = vld [vmem:[%s8] sm:$0xff]
    %v2256 = vld [vmem:[%s8 + $0x8] sm:$0x3]
    %vm2257 = vcmask 162816
    %v2259 = vsel %vm2257, %v2255, 0
    %v2262 = vsel %vm2257, %v2256, 0
    %vm2264 = vcmask 1043456
    %v2266 = vsel %vm2264, %v2254, 0
    %2268 = vmatpush.msra.mxu0 0.0
    %2269 = vmatpush.msra.mxu0 0.0
    %2270 = vmatpush.msra.mxu0 0.0
    %2271 = vmatpush.msra.mxu0 0.0
    %2272 = vmatpush.msra.mxu0 0.0
    %2273 = vmatpush.msra.mxu0 0.0
    %2274 = vmatpush.msra.mxu0 0.0
    %2275 = vmatpush.msra.mxu0 0.0
    %2276 = vmatpush.msra.mxu0 0.0
    %2277 = vmatpush.msra.mxu0 0.0
    %2278 = vmatpush.msra.mxu0 0.0
    %2279 = vmatpush.msra.mxu0 0.0
    %2280 = vmatpush.msra.mxu0 0.0
    %2281 = vmatpush.msra.mxu0 %v2266
    %2282 = vmatpush.msra.mxu0 %v2253
    %2283 = vmatpush.msra.mxu0 %v2252
    %2284 = vmatmul.f32.gmra.mxu0 %v2259
    %v2285 = vpop.f32.mrf.mxu0
    %v2286 = vadd.f32 0.0, %v2285
    %2287 = vmatmul.f32.gmra.mxu0 %v2262
    %v2288 = vpop.f32.mrf.mxu0
    %v2289 = vadd.f32 0.0, %v2288
    %2290 = vdwg.mxu0
    %s2291 = scalar_lea.vmem %s8, 16
    %v2292 = vld [vmem:[%s2291] sm:$0xff]
    %v2293 = vld [vmem:[%s2291 + $0x8] sm:$0x3]
    %v2295 = vsel %vm2257, %v2292, 0
    %v2298 = vsel %vm2257, %v2293, 0
    %2300 = vmatpush.msra.mxu0 0.0
    %2301 = vmatpush.msra.mxu0 0.0
    %2302 = vmatpush.msra.mxu0 0.0
    %2303 = vmatpush.msra.mxu0 0.0
    %2304 = vmatpush.msra.mxu0 0.0
    %2305 = vmatpush.msra.mxu0 0.0
    %2306 = vmatpush.msra.mxu0 0.0
    %2307 = vmatpush.msra.mxu0 0.0
    %2308 = vmatpush.msra.mxu0 0.0
    %2309 = vmatpush.msra.mxu0 0.0
    %2310 = vmatpush.msra.mxu0 0.0
    %2311 = vmatpush.msra.mxu0 0.0
    %2312 = vmatpush.msra.mxu0 0.0
    %2313 = vmatpush.msra.mxu0 %v2266
    %2314 = vmatpush.msra.mxu0 %v2253
    %2315 = vmatpush.msra.mxu0 %v2252
    %2316 = vmatmul.f32.gmra.mxu0 %v2295
    %v2317 = vpop.f32.mrf.mxu0
    %v2318 = vadd.f32 0.0, %v2317
    %2319 = vmatmul.f32.gmra.mxu0 %v2298
    %v2320 = vpop.f32.mrf.mxu0
    %v2321 = vadd.f32 0.0, %v2320
    %2322 = vdwg.mxu0
    %v2323 = vmax.f32 %v2286, %v2318
    %v2324 = vmax.f32 %v2289, %v2321
    %v2325 = vld [vmem:[%s9] sm:$0x3]
    %vm2326 = vcmask 80896
    %v2328 = vsel %vm2326, %v2325, 0
    %v2331 = vsel %vm390, %v2324, 0
    %2333 = vmatpush.msra.mxu0 0.0
    %2334 = vmatpush.msra.mxu0 0.0
    %2335 = vmatpush.msra.mxu0 0.0
    %2336 = vmatpush.msra.mxu0 0.0
    %2337 = vmatpush.msra.mxu0 0.0
    %2338 = vmatpush.msra.mxu0 0.0
    %2339 = vmatpush.msra.mxu0 0.0
    %2340 = vmatpush.msra.mxu0 0.0
    %2341 = vmatpush.msra.mxu0 0.0
    %2342 = vmatpush.msra.mxu0 0.0
    %2343 = vmatpush.msra.mxu0 0.0
    %2344 = vmatpush.msra.mxu0 0.0
    %2345 = vmatpush.msra.mxu0 0.0
    %2346 = vmatpush.msra.mxu0 0.0
    %2347 = vmatpush.msra.mxu0 %v2331
    %2348 = vmatpush.msra.mxu0 %v2323
    %2349 = vmatmul.f32.gmra.mxu0 %v2328
    %v2350 = vpop.f32.mrf.mxu0
    %v2351 = vadd.f32 0.0, %v2350
    %2352 = vdwg.mxu0
    %v2353 = vpack.c.bf16 %v2351, %v2351
    %v2354 = vld [vmem:[%s10] sm:$0xf]
    %v2355 = vld [vmem:[%s10 + $0x4] sm:$0xf]
    %v2356 = vld [vmem:[%s10 + $0x8] sm:$0xf]
    %v2357 = vld [vmem:[%s10 + $0xc] sm:$0xf]
    %v2358 = vld [vmem:[%s10 + $0x10] sm:$0xf]
    %v2359 = vld [vmem:[%s10 + $0x14] sm:$0xf]
    %v2360 = vld [vmem:[%s10 + $0x18] sm:$0xf]
    %v2361 = vld [vmem:[%s10 + $0x1c] sm:$0xf]
    %v2362 = vld [vmem:[%s10 + $0x20] sm:$0xf]
    %v2363 = vld [vmem:[%s10 + $0x24] sm:$0xf]
    %s2364 = scalar_lea.vmem %s9, 2
    %v2365 = vld [vmem:[%s2364] sm:$0x3]
    %v2367 = vsel %vm2326, %v2365, 0
    %2369 = vmatpush.msra.mxu0 0.0
    %2370 = vmatpush.msra.mxu0 0.0
    %2371 = vmatpush.msra.mxu0 0.0
    %2372 = vmatpush.msra.mxu0 0.0
    %2373 = vmatpush.msra.mxu0 0.0
    %2374 = vmatpush.msra.mxu0 0.0
    %2375 = vmatpush.msra.mxu0 0.0
    %2376 = vmatpush.msra.mxu0 0.0
    %2377 = vmatpush.msra.mxu0 0.0
    %2378 = vmatpush.msra.mxu0 0.0
    %2379 = vmatpush.msra.mxu0 0.0
    %2380 = vmatpush.msra.mxu0 0.0
    %2381 = vmatpush.msra.mxu0 0.0
    %2382 = vmatpush.msra.mxu0 0.0
    %2383 = vmatpush.msra.mxu0 %v2331
    %2384 = vmatpush.msra.mxu0 %v2323
    %2385 = vmatmul.f32.gmra.mxu0 %v2367
    %v2386 = vpop.f32.mrf.mxu0
    %v2387 = vadd.f32 0.0, %v2386
    %2388 = vdwg.mxu0
    %v2389 = vpack.c.bf16 %v2387, %v2387
    %s2390 = scalar_lea.vmem %s10, 40
    %v2391 = vld [vmem:[%s2390] sm:$0xf]
    %v2392 = vld [vmem:[%s2390 + $0x4] sm:$0xf]
    %v2393 = vld [vmem:[%s2390 + $0x8] sm:$0xf]
    %v2394 = vld [vmem:[%s2390 + $0xc] sm:$0xf]
    %v2395 = vld [vmem:[%s2390 + $0x10] sm:$0xf]
    %v2396 = vld [vmem:[%s2390 + $0x14] sm:$0xf]
    %v2397 = vld [vmem:[%s2390 + $0x18] sm:$0xf]
    %v2398 = vld [vmem:[%s2390 + $0x1c] sm:$0xf]
    %v2399 = vld [vmem:[%s2390 + $0x20] sm:$0xf]
    %v2400 = vld [vmem:[%s2390 + $0x24] sm:$0xf]
    %v2411 = vunpack.c.l.b16 %v2391
    %v2412 = vunpack.c.l.b16 %v2392
    %v2413 = vunpack.c.l.b16 %v2393
    %v2414 = vunpack.c.l.b16 %v2394
    %v2415 = vunpack.c.l.b16 %v2395
    %v2416 = vunpack.c.l.b16 %v2396
    %v2417 = vunpack.c.l.b16 %v2397
    %v2418 = vunpack.c.l.b16 %v2398
    %v2419 = vunpack.c.l.b16 %v2399
    %v2420 = vunpack.c.l.b16 %v2400
    %v2421 = vpack.c.b16 %v2412, %v2411
    %v2422 = vpack.c.b16 %v2414, %v2413
    %v2423 = vpack.c.b16 %v2416, %v2415
    %v2424 = vpack.c.b16 %v2418, %v2417
    %v2425 = vpack.c.b16 %v2420, %v2419
    %vm2431 = vcmask 654336
    %v2433 = vsel %vm2431, %v2389, 0
    %2435 = vmatpush.bf16.msra.mxu0 0
    %2436 = vmatpush.bf16.msra.mxu0 0
    %2437 = vmatpush.bf16.msra.mxu0 0
    %2438 = vmatpush.bf16.msra.mxu0 %v2425
    %2439 = vmatpush.bf16.msra.mxu0 %v2424
    %2440 = vmatpush.bf16.msra.mxu0 %v2423
    %2441 = vmatpush.bf16.msra.mxu0 %v2422
    %2442 = vmatpush.bf16.msra.mxu0 %v2421
    %2443 = vmatmul.bf16.gmra.mxu0 %v2433
    %v2444 = vpop.f32.mrf.mxu0
    %v2445 = vadd.f32 0.0, %v2444
    %v2446 = vpop.f32.mrf.mxu0
    %2447 = vdwg.mxu0
    %v2458 = vunpack.c.l.b16 %v2354
    %v2459 = vunpack.c.l.b16 %v2355
    %v2460 = vunpack.c.l.b16 %v2356
    %v2461 = vunpack.c.l.b16 %v2357
    %v2462 = vunpack.c.l.b16 %v2358
    %v2463 = vunpack.c.l.b16 %v2359
    %v2464 = vunpack.c.l.b16 %v2360
    %v2465 = vunpack.c.l.b16 %v2361
    %v2466 = vunpack.c.l.b16 %v2362
    %v2467 = vunpack.c.l.b16 %v2363
    %v2468 = vpack.c.b16 %v2459, %v2458
    %v2469 = vpack.c.b16 %v2461, %v2460
    %v2470 = vpack.c.b16 %v2463, %v2462
    %v2471 = vpack.c.b16 %v2465, %v2464
    %v2472 = vpack.c.b16 %v2467, %v2466
    %v2479 = vsel %vm2431, %v2353, 0
    %2481 = vmatpush.bf16.msra.mxu0 0
    %2482 = vmatpush.bf16.msra.mxu0 0
    %2483 = vmatpush.bf16.msra.mxu0 0
    %2484 = vmatpush.bf16.msra.mxu0 %v2472
    %2485 = vmatpush.bf16.msra.mxu0 %v2471
    %2486 = vmatpush.bf16.msra.mxu0 %v2470
    %2487 = vmatpush.bf16.msra.mxu0 %v2469
    %2488 = vmatpush.bf16.msra.mxu0 %v2468
    %2489 = vmatmul.bf16.gmra.mxu0 %v2479
    %v2490 = vpop.f32.mrf.mxu0
    %v2491 = vadd.f32 %v2445, %v2490
    %v2492 = vpop.f32.mrf.mxu0
    %2493 = vdwg.mxu0
    %s2494 = scalar_lea.vmem %s9, 4
    %v2495 = vld [vmem:[%s2494] sm:$0x3]
    %v2497 = vsel %vm2326, %v2495, 0
    %2499 = vmatpush.msra.mxu0 0.0
    %2500 = vmatpush.msra.mxu0 0.0
    %2501 = vmatpush.msra.mxu0 0.0
    %2502 = vmatpush.msra.mxu0 0.0
    %2503 = vmatpush.msra.mxu0 0.0
    %2504 = vmatpush.msra.mxu0 0.0
    %2505 = vmatpush.msra.mxu0 0.0
    %2506 = vmatpush.msra.mxu0 0.0
    %2507 = vmatpush.msra.mxu0 0.0
    %2508 = vmatpush.msra.mxu0 0.0
    %2509 = vmatpush.msra.mxu0 0.0
    %2510 = vmatpush.msra.mxu0 0.0
    %2511 = vmatpush.msra.mxu0 0.0
    %2512 = vmatpush.msra.mxu0 0.0
    %2513 = vmatpush.msra.mxu0 %v2331
    %2514 = vmatpush.msra.mxu0 %v2323
    %2515 = vmatmul.f32.gmra.mxu0 %v2497
    %v2516 = vpop.f32.mrf.mxu0
    %v2517 = vadd.f32 0.0, %v2516
    %2518 = vdwg.mxu0
    %v2519 = vpack.c.bf16 %v2517, %v2517
    %s2520 = scalar_lea.vmem %s10, 80
    %v2521 = vld [vmem:[%s2520] sm:$0xf]
    %v2522 = vld [vmem:[%s2520 + $0x4] sm:$0xf]
    %v2523 = vld [vmem:[%s2520 + $0x8] sm:$0xf]
    %v2524 = vld [vmem:[%s2520 + $0xc] sm:$0xf]
    %v2525 = vld [vmem:[%s2520 + $0x10] sm:$0xf]
    %v2526 = vld [vmem:[%s2520 + $0x14] sm:$0xf]
    %v2527 = vld [vmem:[%s2520 + $0x18] sm:$0xf]
    %v2528 = vld [vmem:[%s2520 + $0x1c] sm:$0xf]
    %v2529 = vld [vmem:[%s2520 + $0x20] sm:$0xf]
    %v2530 = vld [vmem:[%s2520 + $0x24] sm:$0xf]
    %v2541 = vunpack.c.l.b16 %v2521
    %v2542 = vunpack.c.l.b16 %v2522
    %v2543 = vunpack.c.l.b16 %v2523
    %v2544 = vunpack.c.l.b16 %v2524
    %v2545 = vunpack.c.l.b16 %v2525
    %v2546 = vunpack.c.l.b16 %v2526
    %v2547 = vunpack.c.l.b16 %v2527
    %v2548 = vunpack.c.l.b16 %v2528
    %v2549 = vunpack.c.l.b16 %v2529
    %v2550 = vunpack.c.l.b16 %v2530
    %v2551 = vpack.c.b16 %v2542, %v2541
    %v2552 = vpack.c.b16 %v2544, %v2543
    %v2553 = vpack.c.b16 %v2546, %v2545
    %v2554 = vpack.c.b16 %v2548, %v2547
    %v2555 = vpack.c.b16 %v2550, %v2549
    %v2562 = vsel %vm2431, %v2519, 0
    %2564 = vmatpush.bf16.msra.mxu0 0
    %2565 = vmatpush.bf16.msra.mxu0 0
    %2566 = vmatpush.bf16.msra.mxu0 0
    %2567 = vmatpush.bf16.msra.mxu0 %v2555
    %2568 = vmatpush.bf16.msra.mxu0 %v2554
    %2569 = vmatpush.bf16.msra.mxu0 %v2553
    %2570 = vmatpush.bf16.msra.mxu0 %v2552
    %2571 = vmatpush.bf16.msra.mxu0 %v2551
    %2572 = vmatmul.bf16.gmra.mxu0 %v2562
    %v2573 = vpop.f32.mrf.mxu0
    %v2574 = vadd.f32 0.0, %v2573
    %v2575 = vpop.f32.mrf.mxu0
    %2576 = vdwg.mxu0
    %v2577 = vadd.f32 %v2491, %v2574
    %s2578 = scalar_lea.vmem %s9, 6
    %v2579 = vld [vmem:[%s2578] sm:$0x3]
    %v2581 = vsel %vm2326, %v2579, 0
    %2583 = vmatpush.msra.mxu0 0.0
    %2584 = vmatpush.msra.mxu0 0.0
    %2585 = vmatpush.msra.mxu0 0.0
    %2586 = vmatpush.msra.mxu0 0.0
    %2587 = vmatpush.msra.mxu0 0.0
    %2588 = vmatpush.msra.mxu0 0.0
    %2589 = vmatpush.msra.mxu0 0.0
    %2590 = vmatpush.msra.mxu0 0.0
    %2591 = vmatpush.msra.mxu0 0.0
    %2592 = vmatpush.msra.mxu0 0.0
    %2593 = vmatpush.msra.mxu0 0.0
    %2594 = vmatpush.msra.mxu0 0.0
    %2595 = vmatpush.msra.mxu0 0.0
    %2596 = vmatpush.msra.mxu0 0.0
    %2597 = vmatpush.msra.mxu0 %v2331
    %2598 = vmatpush.msra.mxu0 %v2323
    %2599 = vmatmul.f32.gmra.mxu0 %v2581
    %v2600 = vpop.f32.mrf.mxu0
    %v2601 = vadd.f32 0.0, %v2600
    %2602 = vdwg.mxu0
    %v2603 = vpack.c.bf16 %v2601, %v2601
    %s2604 = scalar_lea.vmem %s10, 120
    %v2605 = vld [vmem:[%s2604] sm:$0xf]
    %v2606 = vld [vmem:[%s2604 + $0x4] sm:$0xf]
    %v2607 = vld [vmem:[%s2604 + $0x8] sm:$0xf]
    %v2608 = vld [vmem:[%s2604 + $0xc] sm:$0xf]
    %v2609 = vld [vmem:[%s2604 + $0x10] sm:$0xf]
    %v2610 = vld [vmem:[%s2604 + $0x14] sm:$0xf]
    %v2611 = vld [vmem:[%s2604 + $0x18] sm:$0xf]
    %v2612 = vld [vmem:[%s2604 + $0x1c] sm:$0xf]
    %v2613 = vld [vmem:[%s2604 + $0x20] sm:$0xf]
    %v2614 = vld [vmem:[%s2604 + $0x24] sm:$0xf]
    %v2625 = vunpack.c.l.b16 %v2605
    %v2626 = vunpack.c.l.b16 %v2606
    %v2627 = vunpack.c.l.b16 %v2607
    %v2628 = vunpack.c.l.b16 %v2608
    %v2629 = vunpack.c.l.b16 %v2609
    %v2630 = vunpack.c.l.b16 %v2610
    %v2631 = vunpack.c.l.b16 %v2611
    %v2632 = vunpack.c.l.b16 %v2612
    %v2633 = vunpack.c.l.b16 %v2613
    %v2634 = vunpack.c.l.b16 %v2614
    %v2635 = vpack.c.b16 %v2626, %v2625
    %v2636 = vpack.c.b16 %v2628, %v2627
    %v2637 = vpack.c.b16 %v2630, %v2629
    %v2638 = vpack.c.b16 %v2632, %v2631
    %v2639 = vpack.c.b16 %v2634, %v2633
    %v2646 = vsel %vm2431, %v2603, 0
    %2648 = vmatpush.bf16.msra.mxu0 0
    %2649 = vmatpush.bf16.msra.mxu0 0
    %2650 = vmatpush.bf16.msra.mxu0 0
    %2651 = vmatpush.bf16.msra.mxu0 %v2639
    %2652 = vmatpush.bf16.msra.mxu0 %v2638
    %2653 = vmatpush.bf16.msra.mxu0 %v2637
    %2654 = vmatpush.bf16.msra.mxu0 %v2636
    %2655 = vmatpush.bf16.msra.mxu0 %v2635
    %2656 = vmatmul.bf16.gmra.mxu0 %v2646
    %v2657 = vpop.f32.mrf.mxu0
    %v2658 = vadd.f32 0.0, %v2657
    %v2659 = vpop.f32.mrf.mxu0
    %2660 = vdwg.mxu0
    %v2661 = vadd.f32 %v2577, %v2658
    %s2662 = scalar_lea.vmem %s9, 8
    %v2663 = vld [vmem:[%s2662] sm:$0x3]
    %v2665 = vsel %vm2326, %v2663, 0
    %2667 = vmatpush.msra.mxu0 0.0
    %2668 = vmatpush.msra.mxu0 0.0
    %2669 = vmatpush.msra.mxu0 0.0
    %2670 = vmatpush.msra.mxu0 0.0
    %2671 = vmatpush.msra.mxu0 0.0
    %2672 = vmatpush.msra.mxu0 0.0
    %2673 = vmatpush.msra.mxu0 0.0
    %2674 = vmatpush.msra.mxu0 0.0
    %2675 = vmatpush.msra.mxu0 0.0
    %2676 = vmatpush.msra.mxu0 0.0
    %2677 = vmatpush.msra.mxu0 0.0
    %2678 = vmatpush.msra.mxu0 0.0
    %2679 = vmatpush.msra.mxu0 0.0
    %2680 = vmatpush.msra.mxu0 0.0
    %2681 = vmatpush.msra.mxu0 %v2331
    %2682 = vmatpush.msra.mxu0 %v2323
    %2683 = vmatmul.f32.gmra.mxu0 %v2665
    %v2684 = vpop.f32.mrf.mxu0
    %v2685 = vadd.f32 0.0, %v2684
    %2686 = vdwg.mxu0
    %v2687 = vpack.c.bf16 %v2685, %v2685
    %s2688 = scalar_lea.vmem %s10, 160
    %v2689 = vld [vmem:[%s2688] sm:$0xf]
    %v2690 = vld [vmem:[%s2688 + $0x4] sm:$0xf]
    %v2691 = vld [vmem:[%s2688 + $0x8] sm:$0xf]
    %v2692 = vld [vmem:[%s2688 + $0xc] sm:$0xf]
    %v2693 = vld [vmem:[%s2688 + $0x10] sm:$0xf]
    %v2694 = vld [vmem:[%s2688 + $0x14] sm:$0xf]
    %v2695 = vld [vmem:[%s2688 + $0x18] sm:$0xf]
    %v2696 = vld [vmem:[%s2688 + $0x1c] sm:$0xf]
    %v2697 = vld [vmem:[%s2688 + $0x20] sm:$0xf]
    %v2698 = vld [vmem:[%s2688 + $0x24] sm:$0xf]
    %v2709 = vunpack.c.l.b16 %v2689
    %v2710 = vunpack.c.l.b16 %v2690
    %v2711 = vunpack.c.l.b16 %v2691
    %v2712 = vunpack.c.l.b16 %v2692
    %v2713 = vunpack.c.l.b16 %v2693
    %v2714 = vunpack.c.l.b16 %v2694
    %v2715 = vunpack.c.l.b16 %v2695
    %v2716 = vunpack.c.l.b16 %v2696
    %v2717 = vunpack.c.l.b16 %v2697
    %v2718 = vunpack.c.l.b16 %v2698
    %v2719 = vpack.c.b16 %v2710, %v2709
    %v2720 = vpack.c.b16 %v2712, %v2711
    %v2721 = vpack.c.b16 %v2714, %v2713
    %v2722 = vpack.c.b16 %v2716, %v2715
    %v2723 = vpack.c.b16 %v2718, %v2717
    %v2730 = vsel %vm2431, %v2687, 0
    %2732 = vmatpush.bf16.msra.mxu0 0
    %2733 = vmatpush.bf16.msra.mxu0 0
    %2734 = vmatpush.bf16.msra.mxu0 0
    %2735 = vmatpush.bf16.msra.mxu0 %v2723
    %2736 = vmatpush.bf16.msra.mxu0 %v2722
    %2737 = vmatpush.bf16.msra.mxu0 %v2721
    %2738 = vmatpush.bf16.msra.mxu0 %v2720
    %2739 = vmatpush.bf16.msra.mxu0 %v2719
    %2740 = vmatmul.bf16.gmra.mxu0 %v2730
    %v2741 = vpop.f32.mrf.mxu0
    %v2742 = vadd.f32 0.0, %v2741
    %v2743 = vpop.f32.mrf.mxu0
    %2744 = vdwg.mxu0
    %v2745 = vadd.f32 %v2661, %v2742
    %v2746 = vld [vmem:[%s11] sm:$0x1]
    %v2748 = vperm.slane %v2746, 0
    %v2750 = vadd.f32 %v2745, %v2748
    %v2751 = vmax.f32 %v2750, 0.0
    %v2752 = vpack.c.bf16 %v2751, %v2751
    %v2753 = vld [vmem:[%s12] sm:$0xf]
    %v2754 = vld [vmem:[%s12 + $0x4] sm:$0xf]
    %v2755 = vld [vmem:[%s12 + $0x8] sm:$0xf]
    %v2756 = vld [vmem:[%s12 + $0xc] sm:$0xf]
    %v2757 = vld [vmem:[%s12 + $0x10] sm:$0xf]
    %v2758 = vld [vmem:[%s12 + $0x14] sm:$0xf]
    %v2759 = vld [vmem:[%s12 + $0x18] sm:$0xf]
    %v2760 = vld [vmem:[%s12 + $0x1c] sm:$0xf]
    %v2761 = vld [vmem:[%s12 + $0x20] sm:$0xf]
    %v2762 = vld [vmem:[%s12 + $0x24] sm:$0xf]
    %v2763 = vld [vmem:[%s12 + $0x28] sm:$0xf]
    %v2764 = vld [vmem:[%s12 + $0x2c] sm:$0xf]
    %v2765 = vld [vmem:[%s12 + $0x30] sm:$0xf]
    %v2766 = vld [vmem:[%s12 + $0x34] sm:$0xf]
    %v2767 = vld [vmem:[%s12 + $0x38] sm:$0xf]
    %v2768 = vld [vmem:[%s13] sm:$0x1]
    %v2770 = vperm.slane %v2768, 0
    %v2787 = vunpack.c.l.b16 %v2753
    %v2788 = vunpack.c.l.b16 %v2754
    %v2789 = vunpack.c.l.b16 %v2755
    %v2790 = vunpack.c.l.b16 %v2756
    %v2791 = vunpack.c.l.b16 %v2757
    %v2792 = vunpack.c.l.b16 %v2758
    %v2793 = vunpack.c.l.b16 %v2759
    %v2794 = vunpack.c.l.b16 %v2760
    %v2795 = vunpack.c.l.b16 %v2761
    %v2796 = vunpack.c.l.b16 %v2762
    %v2797 = vunpack.c.l.b16 %v2763
    %v2798 = vunpack.c.l.b16 %v2764
    %v2799 = vunpack.c.l.b16 %v2765
    %v2800 = vunpack.c.l.b16 %v2766
    %v2801 = vunpack.c.l.b16 %v2767
    %v2802 = vpack.c.b16 %v2788, %v2787
    %v2803 = vpack.c.b16 %v2790, %v2789
    %v2804 = vpack.c.b16 %v2792, %v2791
    %v2805 = vpack.c.b16 %v2794, %v2793
    %v2806 = vpack.c.b16 %v2796, %v2795
    %v2807 = vpack.c.b16 %v2798, %v2797
    %v2808 = vpack.c.b16 %v2800, %v2799
    %v2809 = vpack.c.b16 %v2801, %v2801
    %vm2817 = vcmask 982016
    %v2819 = vsel %vm2817, %v2752, 0
    %v2822 = vsel %vm2264, %v2809, 0
    %2824 = vmatpush.bf16.msra.mxu0 %v2822
    %2825 = vmatpush.bf16.msra.mxu0 %v2808
    %2826 = vmatpush.bf16.msra.mxu0 %v2807
    %2827 = vmatpush.bf16.msra.mxu0 %v2806
    %2828 = vmatpush.bf16.msra.mxu0 %v2805
    %2829 = vmatpush.bf16.msra.mxu0 %v2804
    %2830 = vmatpush.bf16.msra.mxu0 %v2803
    %2831 = vmatpush.bf16.msra.mxu0 %v2802
    %2832 = vmatmul.bf16.gmra.mxu0 %v2819
    %v2833 = vpop.f32.mrf.mxu0
    %v2834 = vadd.f32 %v2770, %v2833
    %v2835 = vpop.f32.mrf.mxu0
    %2836 = vdwg.mxu0
    %v2837 = vmax.f32 %v2834, 0.0
    %v2838 = vpack.c.bf16 %v2837, %v2837
    %v2839 = vld [vmem:[%s14] sm:$0xf]
    %v2840 = vld [vmem:[%s14 + $0x4] sm:$0xf]
    %v2841 = vld [vmem:[%s14 + $0x8] sm:$0xf]
    %v2842 = vld [vmem:[%s14 + $0xc] sm:$0xf]
    %v2843 = vld [vmem:[%s14 + $0x10] sm:$0xf]
    %v2844 = vld [vmem:[%s14 + $0x14] sm:$0xf]
    %v2845 = vld [vmem:[%s14 + $0x18] sm:$0xf]
    %v2846 = vld [vmem:[%s14 + $0x1c] sm:$0xf]
    %v2847 = vld [vmem:[%s14 + $0x20] sm:$0xf]
    %v2848 = vld [vmem:[%s14 + $0x24] sm:$0xf]
    %v2849 = vld [vmem:[%s14 + $0x28] sm:$0x3]
    %v2850 = vld [vmem:[%s15] sm:$0x1]
    %v2852 = vperm.slane %v2850, 0
    %v2865 = vunpack.c.l.b16 %v2839
    %v2866 = vunpack.c.l.b16 %v2840
    %v2867 = vunpack.c.l.b16 %v2841
    %v2868 = vunpack.c.l.b16 %v2842
    %v2869 = vunpack.c.l.b16 %v2843
    %v2870 = vunpack.c.l.b16 %v2844
    %v2871 = vunpack.c.l.b16 %v2845
    %v2872 = vunpack.c.l.b16 %v2846
    %v2873 = vunpack.c.l.b16 %v2847
    %v2874 = vunpack.c.l.b16 %v2848
    %v2875 = vunpack.c.l.b16 %v2849
    %v2876 = vpack.c.b16 %v2866, %v2865
    %v2877 = vpack.c.b16 %v2868, %v2867
    %v2878 = vpack.c.b16 %v2870, %v2869
    %v2879 = vpack.c.b16 %v2872, %v2871
    %v2880 = vpack.c.b16 %v2874, %v2873
    %v2881 = vpack.c.b16 %v2875, %v2875
    %v2888 = vsel %vm1484, %v2838, 0
    %v2891 = vsel %vm390, %v2881, 0
    %2893 = vmatpush.bf16.msra.mxu0 0
    %2894 = vmatpush.bf16.msra.mxu0 0
    %2895 = vmatpush.bf16.msra.mxu0 %v2891
    %2896 = vmatpush.bf16.msra.mxu0 %v2880
    %2897 = vmatpush.bf16.msra.mxu0 %v2879
    %2898 = vmatpush.bf16.msra.mxu0 %v2878
    %2899 = vmatpush.bf16.msra.mxu0 %v2877
    %2900 = vmatpush.bf16.msra.mxu0 %v2876
    %2901 = vmatmul.bf16.gmra.mxu0 %v2888
    %v2902 = vpop.f32.mrf.mxu0
    %v2903 = vadd.f32 %v2852, %v2902
    %v2904 = vpop.f32.mrf.mxu0
    %2905 = vdwg.mxu0
    %vm2906 = vcmask 115712
    %2907 = vst.msk [vmem:[#allocation2] sm:$0x3] %vm2906, %v2903
    // Predicated region
    $region66: #{net_forward.1} parent=1 // pred_check
      _
    $region67: #{net_forward.1} parent=1 // pred_check_branch
      %2909 = sbr.rel (0) target = $region69
    $region68: #{net_forward.1} parent=1 // pred_region
      %2911 = vsyncadd [#allocation3], 0
      %s2913 = sshll.u32 [#allocation2], 4
      %s2914 = int_to_ptr.vmem [resolvable:$true] %s2913
      %s2915 = sshll.u32 %s16, 4
      %s2916 = int_to_ptr.hbm [resolvable:$true] %s2915
      %2918 = dma.vmem_to_hbm [thread:$0]  %s2914, 32, %s2916, [#allocation3]
    $region69: #{net_forward.1} parent=1 // pred_fallthru
      _
    // Predicated region
    $region70: #{net_forward.1} parent=1 // pred_check
      _
    $region71: #{net_forward.1} parent=1 // pred_check_branch
      %2920 = sbr.rel (0) target = $region73
    $region72: #{net_forward.1} parent=1 // pred_region
      %2922 = dma.done [#allocation3], 32
    $region73: #{net_forward.1} parent=1 // pred_fallthru
      _
    %2923 = vsyncpa [#allocation3], 1

</llo_original>
